<compile_context>
chip_gen: v6e
topology: v6e:2x2x1
jax: 0.10.0
libtpu: 0.0.40
codegen_flags: <defaults>
</compile_context>

<pallas_src>
import jax
import jax.numpy as jnp
from jax.experimental import pallas as pl
from jax.experimental.pallas import tpu as pltpu


# ----------------------------------------------------------------------------
# Trace-time helpers (plain JAX glue, not hot-path compute).
# ----------------------------------------------------------------------------
def _rope_tables(head_dim, seq_len, batch_tile, theta=100.0):
    """cos / signed-sin tables for the de-interleaved (half-split) RoPE form.

    Row r of the returned (batch_tile*seq_len, 1, head_dim) tables corresponds
    to sequence position r % seq_len (rows are batch-major, position-minor).
    """
    half = head_dim // 2
    inv = 1.0 / (theta ** (jnp.arange(0, head_dim, 2)[:half].astype(jnp.float32)
                           / head_dim))
    t = jnp.arange(seq_len, dtype=jnp.float32)
    freqs = jnp.outer(t, inv)                                # (S, hd/2)
    cos, sin = jnp.cos(freqs), jnp.sin(freqs)
    cos_cat = jnp.concatenate([cos, cos], axis=-1)           # (S, hd)
    sin_signed = jnp.concatenate([-sin, sin], axis=-1)       # (S, hd)
    cos_rows = jnp.tile(cos_cat, (batch_tile, 1))[:, None, :]
    sin_rows = jnp.tile(sin_signed, (batch_tile, 1))[:, None, :]
    return cos_rows, sin_rows


def _deinterleave_heads(w, n_heads, head_dim):
    """Permute the last axis of w so that inside each head the columns are
    [even dims..., odd dims...] (complex real parts, then imag parts).

    Applying the same permutation to wq and wk leaves every q.k dot product —
    and therefore the attention — unchanged, while letting RoPE be applied as
    a rotate-half (slices + concat) instead of an adjacent-lane pair swap.
    """
    half = head_dim // 2
    cols = jnp.concatenate([2 * jnp.arange(half), 2 * jnp.arange(half) + 1])
    idx = (jnp.arange(n_heads)[:, None] * head_dim + cols[None, :]).reshape(-1)
    return jnp.take(w, idx, axis=-1)


def _pick_batch_tile(batch, seq, target_rows=256):
    """Smallest divisor of `batch` whose row count bt*seq reaches target_rows
    (MXU-friendly M for the projections/FFN); falls back to `batch`."""
    bt = batch
    for cand in range(1, batch + 1):
        if batch % cand == 0:
            bt = cand
            if cand * seq >= target_rows:
                break
    return bt


# ----------------------------------------------------------------------------
# Pallas forward
# ----------------------------------------------------------------------------
def td_transformer_pallas(state, params, cfg):
    B, S, F = state.shape
    D = cfg["dim"]
    H = cfg["n_heads"]
    KV = cfg["n_kv_heads"]
    hd = cfg["head_dim"]
    Hi = cfg["hidden_dim"]
    L = cfg["n_layers"]
    A = cfg["action_dim"]
    eps = cfg["norm_eps"]
    half = hd // 2
    scale = hd ** (-0.5)

    Bt = _pick_batch_tile(B, S)
    nb = B // Bt
    R = Bt * S                                     # rows per grid step

    cos_tab, sin_tab = _rope_tables(hd, S, Bt)     # (R, 1, hd) each
    wq_p = _deinterleave_heads(params["wq"], H, hd)
    wk_p = _deinterleave_heads(params["wk"], KV, hd)
    pool_q = params["pool_q"].reshape(1, 1, D)     # (D,1) -> (1,1,D)

    def kernel(state_ref, emb_w_ref, emb_b_ref,
               wq_ref, wk_ref, wv_ref, wo_ref,
               w1_ref, w2_ref, w3_ref,
               attn_norm_ref, ffn_norm_ref, final_norm_ref,
               cos_ref, sin_ref, pool_q_ref, out_w_ref, out_b_ref,
               o_ref, h_ref):
        f32 = jnp.float32
        layer = pl.program_id(1)

        def mm(a, b):
            return jnp.dot(a, b, preferred_element_type=f32)

        def rmsnorm(v, w):
            ms = jnp.mean(v * v, axis=-1, keepdims=True)
            return v * jax.lax.rsqrt(ms + eps) * w

        def rot_half(t):  # (R, nh, hd): swap the two halves of the last axis
            return jnp.concatenate([t[:, :, half:], t[:, :, :half]], axis=-1)

        # ---- embedding: only on the first layer step of this batch block ----
        @pl.when(layer == 0)
        def _embed():
            x = state_ref[...].reshape(R, F)
            h_ref[...] = mm(x, emb_w_ref[...]) + emb_b_ref[...]

        h = h_ref[...]                                        # (R, D)
        cos = cos_ref[...]                                    # (R, 1, hd)
        sin = sin_ref[...]

        # ---- attention block (pre-norm) ------------------------------------
        xn = rmsnorm(h, attn_norm_ref[...])
        q = mm(xn, wq_ref[...]).reshape(R, H, hd)
        k = mm(xn, wk_ref[...]).reshape(R, KV, hd)
        v = mm(xn, wv_ref[...]).reshape(R, KV, hd)
        q = q * cos + rot_half(q) * sin                       # RoPE (half form)
        k = k * cos + rot_half(k) * sin

        # Reference repeat-interleaves k/v to H heads and softmaxes over the
        # (duplicated) head axis; that is numerically identical to a softmax
        # over the KV axis followed by a weighted sum of the unique v heads.
        sc = jnp.einsum("rhd,rkd->rhk", q, k,
                        preferred_element_type=f32) * scale   # (R, H, KV)
        sc = sc - jnp.max(sc, axis=-1, keepdims=True)
        p = jnp.exp(sc)
        p = p * pl.reciprocal(jnp.sum(p, axis=-1, keepdims=True), approx=True)
        attn = jnp.einsum("rhk,rkd->rhd", p, v,
                          preferred_element_type=f32).reshape(R, H * hd)
        h = h + mm(attn, wo_ref[...])

        # ---- feed-forward block (SwiGLU, pre-norm) --------------------------
        hn = rmsnorm(h, ffn_norm_ref[...])
        g = mm(hn, w1_ref[...])
        g = g * (1.0 / (1.0 + jnp.exp(-g)))                   # SiLU (f32)
        h = h + mm(g * mm(hn, w3_ref[...]), w2_ref[...])

        h_ref[...] = h                                        # carry residual

        # ---- epilogue: final norm, seq attention pooling, output head -------
        @pl.when(layer == L - 1)
        def _finalize():
            hf = rmsnorm(h, final_norm_ref[...])              # (R, D)
            hf3 = hf.reshape(Bt, S, D)
            ps = jnp.sum(hf3 * pool_q_ref[...], axis=-1)      # (Bt, S)
            ps = ps - jnp.max(ps, axis=-1, keepdims=True)
            pw = jnp.exp(ps)
            pw = pw * pl.reciprocal(jnp.sum(pw, axis=-1, keepdims=True),
                                    approx=True)
            pooled = jnp.sum(hf3 * pw[:, :, None], axis=1)    # (Bt, D)
            o_ref[...] = mm(pooled, out_w_ref[...]) + out_b_ref[...]

    inputs = [
        state,
        params["emb_w"], params["emb_b"],
        wq_p, wk_p, params["wv"], params["wo"],
        params["w1"], params["w2"], params["w3"],
        params["attn_norm"], params["ffn_norm"], params["final_norm"],
        cos_tab, sin_tab, pool_q, params["out_w"], params["out_b"],
    ]
    per_layer = {3, 4, 5, 6, 7, 8, 9, 10, 11}    # inputs with a leading L axis

    def const_spec(a):
        nd = a.ndim
        return pl.BlockSpec(a.shape, lambda b, l, nd=nd: (0,) * nd)

    def layer_spec(a):
        nd = a.ndim
        return pl.BlockSpec((None,) + a.shape[1:],
                            lambda b, l, nd=nd: (l,) + (0,) * (nd - 1))

    in_specs = [pl.BlockSpec((Bt, S, F), lambda b, l: (b, 0, 0))]
    for idx in range(1, len(inputs)):
        a = inputs[idx]
        in_specs.append(layer_spec(a) if idx in per_layer else const_spec(a))

    flops = int(
        2 * B * S * L * (D * H * hd + 2 * D * KV * hd + H * hd * D
                         + 2 * H * KV * hd + 3 * D * Hi)
        + 2 * B * S * F * D + 2 * B * D * A)
    transcendentals = int(B * S * L * (H * KV + Hi) + B * S)
    bytes_accessed = int(4 * (state.size + sum(a.size for a in inputs[1:])
                              + B * A))
    cost = pl.CostEstimate(flops=flops, transcendentals=transcendentals,
                           bytes_accessed=bytes_accessed)

    out = pl.pallas_call(
        kernel,
        out_shape=jax.ShapeDtypeStruct((nb, Bt, A), jnp.float32),
        grid=(nb, L),
        in_specs=in_specs,
        out_specs=pl.BlockSpec((None, Bt, A), lambda b, l: (b, 0, 0)),
        scratch_shapes=[pltpu.VMEM((R, D), jnp.float32)],
        compiler_params=pltpu.CompilerParams(
            dimension_semantics=("parallel", "arbitrary")),
        cost_estimate=cost,
    )(*inputs)
    return out.reshape(B, A)


# ----------------------------------------------------------------------------
# Pure-JAX reference mirroring the PyTorch module (sanity check).
# ----------------------------------------------------------------------------
def _rmsnorm_ref(x, w, eps):
    ms = jnp.mean(x * x, axis=-1, keepdims=True)
    return x * jax.lax.rsqrt(ms + eps) * w


def td_transformer_reference(state, params, cfg):
    D, H, KV, hd = cfg["dim"], cfg["n_heads"], cfg["n_kv_heads"], cfg["head_dim"]
    L, eps = cfg["n_layers"], cfg["norm_eps"]
    repeats = H // KV
    scale = hd ** (-0.5)
    B, S, F = state.shape
    half = hd // 2
    inv = 1.0 / (100.0 ** (jnp.arange(0, hd, 2)[:half].astype(jnp.float32) / hd))
    freqs = jnp.outer(jnp.arange(S, dtype=jnp.float32), inv)
    fcos, fsin = jnp.cos(freqs), jnp.sin(freqs)

    def rope(t):  # (B, S, nh, hd), interleaved complex pairs
        tr = t.reshape(t.shape[:-1] + (half, 2))
        re, im = tr[..., 0], tr[..., 1]
        c, s = fcos[None, :, None, :], fsin[None, :, None, :]
        return jnp.stack([re * c - im * s, re * s + im * c], axis=-1).reshape(t.shape)

    h = (state.reshape(-1, F) @ params["emb_w"] + params["emb_b"][0]).reshape(B, S, D)
    for l in range(L):
        xn = _rmsnorm_ref(h, params["attn_norm"][l, 0], eps)
        xq = (xn @ params["wq"][l]).reshape(B, S, H, hd)
        xk = (xn @ params["wk"][l]).reshape(B, S, KV, hd)
        xv = (xn @ params["wv"][l]).reshape(B, S, KV, hd)
        xq, xk = rope(xq), rope(xk)
        keys = jnp.repeat(xk, repeats, axis=2)
        vals = jnp.repeat(xv, repeats, axis=2)
        sc = jnp.einsum("bsid,bsjd->bsij", xq, keys) * scale
        w = jax.nn.softmax(sc, axis=-1)
        wv_ = jnp.einsum("bsij,bsjd->bsid", w, vals).reshape(B, S, H * hd)
        h = h + wv_ @ params["wo"][l]
        hn = _rmsnorm_ref(h, params["ffn_norm"][l, 0], eps)
        g = hn @ params["w1"][l]
        g = g * jax.nn.sigmoid(g)
        h = h + (g * (hn @ params["w3"][l])) @ params["w2"][l]
    hf = _rmsnorm_ref(h, params["final_norm"][0], eps)
    sc = jnp.einsum("bsd,d->bs", hf, params["pool_q"][:, 0])
    p = jax.nn.softmax(sc, axis=1)
    pooled = jnp.sum(hf * p[..., None], axis=1)
    return pooled @ params["out_w"] + params["out_b"][0]


# ----------------------------------------------------------------------------
# Deterministic parameter init (synthetic weights; no checkpoint loading).
# ----------------------------------------------------------------------------
def init_params(key, cfg, num_features):
    D, H, KV, hd = cfg["dim"], cfg["n_heads"], cfg["n_kv_heads"], cfg["head_dim"]
    Hi, L, A = cfg["hidden_dim"], cfg["n_layers"], cfg["action_dim"]
    keys = jax.random.split(key, 12)
    s = 0.05
    return {
        "emb_w": jax.random.normal(keys[0], (num_features, D), jnp.float32) * s,
        "emb_b": jax.random.normal(keys[1], (1, D), jnp.float32) * s,
        "wq": jax.random.normal(keys[2], (L, D, H * hd), jnp.float32) * s,
        "wk": jax.random.normal(keys[3], (L, D, KV * hd), jnp.float32) * s,
        "wv": jax.random.normal(keys[4], (L, D, KV * hd), jnp.float32) * s,
        "wo": jax.random.normal(keys[5], (L, H * hd, D), jnp.float32) * s,
        "w1": jax.random.normal(keys[6], (L, D, Hi), jnp.float32) * s,
        "w2": jax.random.normal(keys[7], (L, Hi, D), jnp.float32) * s,
        "w3": jax.random.normal(keys[8], (L, D, Hi), jnp.float32) * s,
        "attn_norm": jnp.ones((L, 1, D), jnp.float32),
        "ffn_norm": jnp.ones((L, 1, D), jnp.float32),
        "final_norm": jnp.ones((1, D), jnp.float32),
        "pool_q": jax.random.normal(keys[9], (D, 1), jnp.float32),
        "out_w": jax.random.normal(keys[10], (D, A), jnp.float32) * s,
        "out_b": jax.random.normal(keys[11], (1, A), jnp.float32) * s,
    }


if __name__ == "__main__":
    cfg = dict(dim=32, n_layers=2, head_dim=8, hidden_dim=64, n_heads=4,
               n_kv_heads=2, context_length=8, num_features=4,
               norm_eps=1e-6, action_dim=2)
    B, S, F = 2, cfg["context_length"], cfg["num_features"]

    key = jax.random.PRNGKey(0)
    kp, kx = jax.random.split(key)
    params = init_params(kp, cfg, F)
    state = jax.random.normal(kx, (B, S, F), jnp.float32)

    out = jax.block_until_ready(td_transformer_pallas(state, params, cfg))
    ref = jax.block_until_ready(td_transformer_reference(state, params, cfg))
    assert out.shape == (B, cfg["action_dim"])
    assert bool(jnp.max(jnp.abs(out - ref)) < 5e-3), (out, ref)
    print("KERNEL_OK")
</pallas_src>

<mosaic_0001>
module attributes {stable_mosaic.version = 11 : i64} {
  func.func @kernel(%arg0: i32, %arg1: i32, %arg2: memref<2x8x4xf32, #tpu.memory_space<vmem>>, %arg3: memref<4x32xf32, #tpu.memory_space<vmem>>, %arg4: memref<1x32xf32, #tpu.memory_space<vmem>>, %arg5: memref<1x32x32xf32, #tpu.memory_space<vmem>>, %arg6: memref<1x32x16xf32, #tpu.memory_space<vmem>>, %arg7: memref<1x32x16xf32, #tpu.memory_space<vmem>>, %arg8: memref<1x32x32xf32, #tpu.memory_space<vmem>>, %arg9: memref<1x32x64xf32, #tpu.memory_space<vmem>>, %arg10: memref<1x64x32xf32, #tpu.memory_space<vmem>>, %arg11: memref<1x32x64xf32, #tpu.memory_space<vmem>>, %arg12: memref<1x1x32xf32, #tpu.memory_space<vmem>>, %arg13: memref<1x1x32xf32, #tpu.memory_space<vmem>>, %arg14: memref<1x32xf32, #tpu.memory_space<vmem>>, %arg15: memref<16x1x8xf32, #tpu.memory_space<vmem>>, %arg16: memref<16x1x8xf32, #tpu.memory_space<vmem>>, %arg17: memref<1x1x32xf32, #tpu.memory_space<vmem>>, %arg18: memref<32x2xf32, #tpu.memory_space<vmem>>, %arg19: memref<1x2xf32, #tpu.memory_space<vmem>>, %arg20: memref<1x2x2xf32, #tpu.memory_space<vmem>>, %arg21: memref<16x32xf32, #tpu.memory_space<vmem>>) attributes {dimension_semantics = [#tpu.dimension_semantics<parallel>, #tpu.dimension_semantics<arbitrary>], iteration_bounds = array<i64: 1, 2>, scalar_prefetch = 0 : i64, scratch_operands = 1 : i64, tpu.core_type = #tpu.core_type<tc>, window_params = [{transform_indices = @transform_0, window_bounds = array<i64: 2, 8, 4>}, {pipeline_mode = #tpu.pipeline_mode<synchronous>, transform_indices = @transform_1, window_bounds = array<i64: 4, 32>}, {pipeline_mode = #tpu.pipeline_mode<synchronous>, transform_indices = @transform_2, window_bounds = array<i64: 1, 32>}, {transform_indices = @transform_3, window_bounds = array<i64: 1, 32, 32>}, {transform_indices = @transform_4, window_bounds = array<i64: 1, 32, 16>}, {transform_indices = @transform_5, window_bounds = array<i64: 1, 32, 16>}, {transform_indices = @transform_6, window_bounds = array<i64: 1, 32, 32>}, {transform_indices = @transform_7, window_bounds = array<i64: 1, 32, 64>}, {transform_indices = @transform_8, window_bounds = array<i64: 1, 64, 32>}, {transform_indices = @transform_9, window_bounds = array<i64: 1, 32, 64>}, {transform_indices = @transform_10, window_bounds = array<i64: 1, 1, 32>}, {transform_indices = @transform_11, window_bounds = array<i64: 1, 1, 32>}, {pipeline_mode = #tpu.pipeline_mode<synchronous>, transform_indices = @transform_12, window_bounds = array<i64: 1, 32>}, {pipeline_mode = #tpu.pipeline_mode<synchronous>, transform_indices = @transform_13, window_bounds = array<i64: 16, 1, 8>}, {pipeline_mode = #tpu.pipeline_mode<synchronous>, transform_indices = @transform_14, window_bounds = array<i64: 16, 1, 8>}, {pipeline_mode = #tpu.pipeline_mode<synchronous>, transform_indices = @transform_15, window_bounds = array<i64: 1, 1, 32>}, {pipeline_mode = #tpu.pipeline_mode<synchronous>, transform_indices = @transform_16, window_bounds = array<i64: 32, 2>}, {pipeline_mode = #tpu.pipeline_mode<synchronous>, transform_indices = @transform_17, window_bounds = array<i64: 1, 2>}, {transform_indices = @transform_18, window_bounds = array<i64: 1, 2, 2>}]} {
    %c0_i32 = arith.constant 0 : i32
    %0 = arith.cmpi eq, %arg1, %c0_i32 : i32
    %1 = arith.extui %0 : i1 to i32
    %c0_i32_0 = arith.constant 0 : i32
    %2 = arith.cmpi ne, %1, %c0_i32_0 : i32
    scf.if %2 {
      %c0_58 = arith.constant 0 : index
      %c0_59 = arith.constant 0 : index
      %c0_60 = arith.constant 0 : index
      %104 = vector.load %arg2[%c0_58, %c0_59, %c0_60] : memref<2x8x4xf32, #tpu.memory_space<vmem>>, vector<2x8x4xf32>
      %105 = vector.shape_cast %104 : vector<2x8x4xf32> to vector<16x4xf32>
      %c0_61 = arith.constant 0 : index
      %c0_62 = arith.constant 0 : index
      %106 = vector.load %arg3[%c0_61, %c0_62] : memref<4x32xf32, #tpu.memory_space<vmem>>, vector<4x32xf32>
      %cst_63 = arith.constant dense<0.000000e+00> : vector<16x32xf32>
      %107 = tpu.matmul %105, %106, %cst_63 {dimension_numbers = #tpu.dot_dimension_numbers<[1], [0], [0], [1], [0, 0, 1, 1], [], []>} : vector<16x4xf32>, vector<4x32xf32>, vector<16x32xf32> -> vector<16x32xf32>
      %c0_64 = arith.constant 0 : index
      %c0_65 = arith.constant 0 : index
      %108 = vector.load %arg4[%c0_64, %c0_65] : memref<1x32xf32, #tpu.memory_space<vmem>>, vector<1x32xf32>
      %109 = vector.broadcast %108 : vector<1x32xf32> to vector<16x32xf32>
      %110 = arith.addf %107, %109 : vector<16x32xf32>
      %c0_66 = arith.constant 0 : index
      %c0_67 = arith.constant 0 : index
      %111 = vector.load %arg21[%c0_66, %c0_67] : memref<16x32xf32, #tpu.memory_space<vmem>>, vector<16x32xf32>
      tpu.vector_store %arg21[%c0_66, %c0_67], %110 {strides = array<i32>} : memref<16x32xf32, #tpu.memory_space<vmem>>, vector<16x32xf32>,
    } else {
    }
    %c0 = arith.constant 0 : index
    %c0_1 = arith.constant 0 : index
    %3 = vector.load %arg21[%c0, %c0_1] : memref<16x32xf32, #tpu.memory_space<vmem>>, vector<16x32xf32>
    %c0_2 = arith.constant 0 : index
    %c0_3 = arith.constant 0 : index
    %c0_4 = arith.constant 0 : index
    %4 = vector.load %arg15[%c0_2, %c0_3, %c0_4] : memref<16x1x8xf32, #tpu.memory_space<vmem>>, vector<16x1x8xf32>
    %c0_5 = arith.constant 0 : index
    %c0_6 = arith.constant 0 : index
    %c0_7 = arith.constant 0 : index
    %5 = vector.load %arg16[%c0_5, %c0_6, %c0_7] : memref<16x1x8xf32, #tpu.memory_space<vmem>>, vector<16x1x8xf32>
    %c0_8 = arith.constant 0 : index
    %c0_9 = arith.constant 0 : index
    %c0_10 = arith.constant 0 : index
    %6 = vector.load %arg12[%c0_8, %c0_9, %c0_10] : memref<1x1x32xf32, #tpu.memory_space<vmem>>, vector<1x1x32xf32>
    %7 = vector.shape_cast %6 : vector<1x1x32xf32> to vector<1x32xf32>
    %8 = arith.mulf %3, %3 : vector<16x32xf32>
    %cst = arith.constant dense<0.000000e+00> : vector<16xf32>
    %9 = vector.multi_reduction <add>, %8, %cst [1] : vector<16x32xf32> to vector<16xf32>
    %10 = vector.shape_cast %9 : vector<16xf32> to vector<16x1xf32>
    %cst_11 = arith.constant 3.200000e+01 : f32
    %11 = vector.broadcast %cst_11 : f32 to vector<16x1xf32>
    %12 = arith.divf %10, %11 : vector<16x1xf32>
    %cst_12 = arith.constant 9.99999997E-7 : f32
    %13 = vector.broadcast %cst_12 : f32 to vector<16x1xf32>
    %14 = arith.addf %12, %13 : vector<16x1xf32>
    %15 = math.rsqrt %14 : vector<16x1xf32>
    %16 = vector.broadcast %15 : vector<16x1xf32> to vector<16x32xf32>
    %17 = arith.mulf %3, %16 : vector<16x32xf32>
    %18 = vector.broadcast %7 : vector<1x32xf32> to vector<16x32xf32>
    %19 = arith.mulf %17, %18 : vector<16x32xf32>
    %c0_13 = arith.constant 0 : index
    %c0_14 = arith.constant 0 : index
    %c0_15 = arith.constant 0 : index
    %20 = vector.load %arg5[%c0_13, %c0_14, %c0_15] : memref<1x32x32xf32, #tpu.memory_space<vmem>>, vector<1x32x32xf32>
    %21 = vector.shape_cast %20 : vector<1x32x32xf32> to vector<32x32xf32>
    %cst_16 = arith.constant dense<0.000000e+00> : vector<16x32xf32>
    %22 = tpu.matmul %19, %21, %cst_16 {dimension_numbers = #tpu.dot_dimension_numbers<[1], [0], [0], [1], [0, 0, 1, 1], [], []>} : vector<16x32xf32>, vector<32x32xf32>, vector<16x32xf32> -> vector<16x32xf32>
    %23 = vector.shape_cast %22 : vector<16x32xf32> to vector<16x4x8xf32>
    %c0_17 = arith.constant 0 : index
    %c0_18 = arith.constant 0 : index
    %c0_19 = arith.constant 0 : index
    %24 = vector.load %arg6[%c0_17, %c0_18, %c0_19] : memref<1x32x16xf32, #tpu.memory_space<vmem>>, vector<1x32x16xf32>
    %25 = vector.shape_cast %24 : vector<1x32x16xf32> to vector<32x16xf32>
    %cst_20 = arith.constant dense<0.000000e+00> : vector<16x16xf32>
    %26 = tpu.matmul %19, %25, %cst_20 {dimension_numbers = #tpu.dot_dimension_numbers<[1], [0], [0], [1], [0, 0, 1, 1], [], []>} : vector<16x32xf32>, vector<32x16xf32>, vector<16x16xf32> -> vector<16x16xf32>
    %27 = vector.shape_cast %26 : vector<16x16xf32> to vector<16x2x8xf32>
    %c0_21 = arith.constant 0 : index
    %c0_22 = arith.constant 0 : index
    %c0_23 = arith.constant 0 : index
    %28 = vector.load %arg7[%c0_21, %c0_22, %c0_23] : memref<1x32x16xf32, #tpu.memory_space<vmem>>, vector<1x32x16xf32>
    %29 = vector.shape_cast %28 : vector<1x32x16xf32> to vector<32x16xf32>
    %cst_24 = arith.constant dense<0.000000e+00> : vector<16x16xf32>
    %30 = tpu.matmul %19, %29, %cst_24 {dimension_numbers = #tpu.dot_dimension_numbers<[1], [0], [0], [1], [0, 0, 1, 1], [], []>} : vector<16x32xf32>, vector<32x16xf32>, vector<16x16xf32> -> vector<16x16xf32>
    %31 = vector.shape_cast %30 : vector<16x16xf32> to vector<16x2x8xf32>
    %32 = vector.broadcast %4 : vector<16x1x8xf32> to vector<16x4x8xf32>
    %33 = arith.mulf %23, %32 : vector<16x4x8xf32>
    %34 = vector.extract_strided_slice %23 {offsets = [0, 0, 4], sizes = [16, 4, 4], strides = [1, 1, 1]} : vector<16x4x8xf32> to vector<16x4x4xf32>
    %35 = vector.extract_strided_slice %23 {offsets = [0, 0, 0], sizes = [16, 4, 4], strides = [1, 1, 1]} : vector<16x4x8xf32> to vector<16x4x4xf32>
    %36 = tpu.concatenate %34, %35 in 2 : vector<16x4x4xf32>, vector<16x4x4xf32> -> vector<16x4x8xf32>
    %37 = vector.broadcast %5 : vector<16x1x8xf32> to vector<16x4x8xf32>
    %38 = arith.mulf %36, %37 : vector<16x4x8xf32>
    %39 = arith.addf %33, %38 : vector<16x4x8xf32>
    %40 = vector.broadcast %4 : vector<16x1x8xf32> to vector<16x2x8xf32>
    %41 = arith.mulf %27, %40 : vector<16x2x8xf32>
    %42 = vector.extract_strided_slice %27 {offsets = [0, 0, 4], sizes = [16, 2, 4], strides = [1, 1, 1]} : vector<16x2x8xf32> to vector<16x2x4xf32>
    %43 = vector.extract_strided_slice %27 {offsets = [0, 0, 0], sizes = [16, 2, 4], strides = [1, 1, 1]} : vector<16x2x8xf32> to vector<16x2x4xf32>
    %44 = tpu.concatenate %42, %43 in 2 : vector<16x2x4xf32>, vector<16x2x4xf32> -> vector<16x2x8xf32>
    %45 = vector.broadcast %5 : vector<16x1x8xf32> to vector<16x2x8xf32>
    %46 = arith.mulf %44, %45 : vector<16x2x8xf32>
    %47 = arith.addf %41, %46 : vector<16x2x8xf32>
    "tpu.trace_start"() <{level = 10 : i32, message = "rhd,rkd->rhk"}> : () -> ()
    %cst_25 = arith.constant dense<0.000000e+00> : vector<16x4x2xf32>
    %48 = tpu.matmul %39, %47, %cst_25 {dimension_numbers = #tpu.dot_dimension_numbers<[2], [2], [1], [1], [0, 0, 0, 1, 1, 1], [0], [0]>} : vector<16x4x8xf32>, vector<16x2x8xf32>, vector<16x4x2xf32> -> vector<16x4x2xf32>
    "tpu.trace_stop"() : () -> ()
    %cst_26 = arith.constant 0.353553385 : f32
    %49 = vector.broadcast %cst_26 : f32 to vector<16x4x2xf32>
    %50 = arith.mulf %48, %49 : vector<16x4x2xf32>
    %cst_27 = arith.constant dense<0xFF800000> : vector<16x4xf32>
    %51 = vector.multi_reduction <maximumf>, %50, %cst_27 [2] : vector<16x4x2xf32> to vector<16x4xf32>
    %52 = vector.shape_cast %51 : vector<16x4xf32> to vector<16x4x1xf32>
    %53 = vector.broadcast %52 : vector<16x4x1xf32> to vector<16x4x2xf32>
    %54 = arith.subf %50, %53 : vector<16x4x2xf32>
    %55 = math.exp %54 : vector<16x4x2xf32>
    %cst_28 = arith.constant dense<0.000000e+00> : vector<16x4xf32>
    %56 = vector.multi_reduction <add>, %55, %cst_28 [2] : vector<16x4x2xf32> to vector<16x4xf32>
    %57 = vector.shape_cast %56 : vector<16x4xf32> to vector<16x4x1xf32>
    %58 = tpu.reciprocal %57 {approx = true} : vector<16x4x1xf32> -> vector<16x4x1xf32>
    %59 = vector.broadcast %58 : vector<16x4x1xf32> to vector<16x4x2xf32>
    %60 = arith.mulf %55, %59 : vector<16x4x2xf32>
    "tpu.trace_start"() <{level = 10 : i32, message = "rhk,rkd->rhd"}> : () -> ()
    %cst_29 = arith.constant dense<0.000000e+00> : vector<16x4x8xf32>
    %61 = tpu.matmul %60, %31, %cst_29 {dimension_numbers = #tpu.dot_dimension_numbers<[2], [1], [1], [2], [0, 0, 0, 1, 1, 2], [0], [0]>} : vector<16x4x2xf32>, vector<16x2x8xf32>, vector<16x4x8xf32> -> vector<16x4x8xf32>
    "tpu.trace_stop"() : () -> ()
    %62 = vector.shape_cast %61 : vector<16x4x8xf32> to vector<16x32xf32>
    %c0_30 = arith.constant 0 : index
    %c0_31 = arith.constant 0 : index
    %c0_32 = arith.constant 0 : index
    %63 = vector.load %arg8[%c0_30, %c0_31, %c0_32] : memref<1x32x32xf32, #tpu.memory_space<vmem>>, vector<1x32x32xf32>
    %64 = vector.shape_cast %63 : vector<1x32x32xf32> to vector<32x32xf32>
    %cst_33 = arith.constant dense<0.000000e+00> : vector<16x32xf32>
    %65 = tpu.matmul %62, %64, %cst_33 {dimension_numbers = #tpu.dot_dimension_numbers<[1], [0], [0], [1], [0, 0, 1, 1], [], []>} : vector<16x32xf32>, vector<32x32xf32>, vector<16x32xf32> -> vector<16x32xf32>
    %66 = arith.addf %3, %65 : vector<16x32xf32>
    %c0_34 = arith.constant 0 : index
    %c0_35 = arith.constant 0 : index
    %c0_36 = arith.constant 0 : index
    %67 = vector.load %arg13[%c0_34, %c0_35, %c0_36] : memref<1x1x32xf32, #tpu.memory_space<vmem>>, vector<1x1x32xf32>
    %68 = vector.shape_cast %67 : vector<1x1x32xf32> to vector<1x32xf32>
    %69 = arith.mulf %66, %66 : vector<16x32xf32>
    %cst_37 = arith.constant dense<0.000000e+00> : vector<16xf32>
    %70 = vector.multi_reduction <add>, %69, %cst_37 [1] : vector<16x32xf32> to vector<16xf32>
    %71 = vector.shape_cast %70 : vector<16xf32> to vector<16x1xf32>
    %cst_38 = arith.constant 3.200000e+01 : f32
    %72 = vector.broadcast %cst_38 : f32 to vector<16x1xf32>
    %73 = arith.divf %71, %72 : vector<16x1xf32>
    %cst_39 = arith.constant 9.99999997E-7 : f32
    %74 = vector.broadcast %cst_39 : f32 to vector<16x1xf32>
    %75 = arith.addf %73, %74 : vector<16x1xf32>
    %76 = math.rsqrt %75 : vector<16x1xf32>
    %77 = vector.broadcast %76 : vector<16x1xf32> to vector<16x32xf32>
    %78 = arith.mulf %66, %77 : vector<16x32xf32>
    %79 = vector.broadcast %68 : vector<1x32xf32> to vector<16x32xf32>
    %80 = arith.mulf %78, %79 : vector<16x32xf32>
    %c0_40 = arith.constant 0 : index
    %c0_41 = arith.constant 0 : index
    %c0_42 = arith.constant 0 : index
    %81 = vector.load %arg9[%c0_40, %c0_41, %c0_42] : memref<1x32x64xf32, #tpu.memory_space<vmem>>, vector<1x32x64xf32>
    %82 = vector.shape_cast %81 : vector<1x32x64xf32> to vector<32x64xf32>
    %cst_43 = arith.constant dense<0.000000e+00> : vector<16x64xf32>
    %83 = tpu.matmul %80, %82, %cst_43 {dimension_numbers = #tpu.dot_dimension_numbers<[1], [0], [0], [1], [0, 0, 1, 1], [], []>} : vector<16x32xf32>, vector<32x64xf32>, vector<16x64xf32> -> vector<16x64xf32>
    %cst_44 = arith.constant 0.000000e+00 : f32
    %84 = vector.broadcast %cst_44 : f32 to vector<16x64xf32>
    %85 = arith.subf %84, %83 : vector<16x64xf32>
    %86 = math.exp %85 : vector<16x64xf32>
    %cst_45 = arith.constant 1.000000e+00 : f32
    %87 = vector.broadcast %cst_45 : f32 to vector<16x64xf32>
    %88 = arith.addf %87, %86 : vector<16x64xf32>
    %cst_46 = arith.constant 1.000000e+00 : f32
    %89 = vector.broadcast %cst_46 : f32 to vector<16x64xf32>
    %90 = arith.divf %89, %88 : vector<16x64xf32>
    %91 = arith.mulf %83, %90 : vector<16x64xf32>
    %c0_47 = arith.constant 0 : index
    %c0_48 = arith.constant 0 : index
    %c0_49 = arith.constant 0 : index
    %92 = vector.load %arg11[%c0_47, %c0_48, %c0_49] : memref<1x32x64xf32, #tpu.memory_space<vmem>>, vector<1x32x64xf32>
    %93 = vector.shape_cast %92 : vector<1x32x64xf32> to vector<32x64xf32>
    %cst_50 = arith.constant dense<0.000000e+00> : vector<16x64xf32>
    %94 = tpu.matmul %80, %93, %cst_50 {dimension_numbers = #tpu.dot_dimension_numbers<[1], [0], [0], [1], [0, 0, 1, 1], [], []>} : vector<16x32xf32>, vector<32x64xf32>, vector<16x64xf32> -> vector<16x64xf32>
    %95 = arith.mulf %91, %94 : vector<16x64xf32>
    %c0_51 = arith.constant 0 : index
    %c0_52 = arith.constant 0 : index
    %c0_53 = arith.constant 0 : index
    %96 = vector.load %arg10[%c0_51, %c0_52, %c0_53] : memref<1x64x32xf32, #tpu.memory_space<vmem>>, vector<1x64x32xf32>
    %97 = vector.shape_cast %96 : vector<1x64x32xf32> to vector<64x32xf32>
    %cst_54 = arith.constant dense<0.000000e+00> : vector<16x32xf32>
    %98 = tpu.matmul %95, %97, %cst_54 {dimension_numbers = #tpu.dot_dimension_numbers<[1], [0], [0], [1], [0, 0, 1, 1], [], []>} : vector<16x64xf32>, vector<64x32xf32>, vector<16x32xf32> -> vector<16x32xf32>
    %99 = arith.addf %66, %98 : vector<16x32xf32>
    %c0_55 = arith.constant 0 : index
    %c0_56 = arith.constant 0 : index
    %100 = vector.load %arg21[%c0_55, %c0_56] : memref<16x32xf32, #tpu.memory_space<vmem>>, vector<16x32xf32>
    tpu.vector_store %arg21[%c0_55, %c0_56], %99 {strides = array<i32>} : memref<16x32xf32, #tpu.memory_space<vmem>>, vector<16x32xf32>,
    %c1_i32 = arith.constant 1 : i32
    %101 = arith.cmpi eq, %arg1, %c1_i32 : i32
    %102 = arith.extui %101 : i1 to i32
    %c0_i32_57 = arith.constant 0 : i32
    %103 = arith.cmpi ne, %102, %c0_i32_57 : i32
    scf.if %103 {
      %c0_58 = arith.constant 0 : index
      %c0_59 = arith.constant 0 : index
      %104 = vector.load %arg14[%c0_58, %c0_59] : memref<1x32xf32, #tpu.memory_space<vmem>>, vector<1x32xf32>
      %105 = arith.mulf %99, %99 : vector<16x32xf32>
      %cst_60 = arith.constant dense<0.000000e+00> : vector<16xf32>
      %106 = vector.multi_reduction <add>, %105, %cst_60 [1] : vector<16x32xf32> to vector<16xf32>
      %107 = vector.shape_cast %106 : vector<16xf32> to vector<16x1xf32>
      %cst_61 = arith.constant 3.200000e+01 : f32
      %108 = vector.broadcast %cst_61 : f32 to vector<16x1xf32>
      %109 = arith.divf %107, %108 : vector<16x1xf32>
      %cst_62 = arith.constant 9.99999997E-7 : f32
      %110 = vector.broadcast %cst_62 : f32 to vector<16x1xf32>
      %111 = arith.addf %109, %110 : vector<16x1xf32>
      %112 = math.rsqrt %111 : vector<16x1xf32>
      %113 = vector.broadcast %112 : vector<16x1xf32> to vector<16x32xf32>
      %114 = arith.mulf %99, %113 : vector<16x32xf32>
      %115 = vector.broadcast %104 : vector<1x32xf32> to vector<16x32xf32>
      %116 = arith.mulf %114, %115 : vector<16x32xf32>
      %117 = vector.shape_cast %116 : vector<16x32xf32> to vector<2x8x32xf32>
      %c0_63 = arith.constant 0 : index
      %c0_64 = arith.constant 0 : index
      %c0_65 = arith.constant 0 : index
      %118 = vector.load %arg17[%c0_63, %c0_64, %c0_65] : memref<1x1x32xf32, #tpu.memory_space<vmem>>, vector<1x1x32xf32>
      %119 = vector.broadcast %118 : vector<1x1x32xf32> to vector<2x8x32xf32>
      %120 = arith.mulf %117, %119 : vector<2x8x32xf32>
      %cst_66 = arith.constant dense<0.000000e+00> : vector<2x8xf32>
      %121 = vector.multi_reduction <add>, %120, %cst_66 [2] : vector<2x8x32xf32> to vector<2x8xf32>
      %cst_67 = arith.constant dense<0xFF800000> : vector<2xf32>
      %122 = vector.multi_reduction <maximumf>, %121, %cst_67 [1] : vector<2x8xf32> to vector<2xf32>
      %123 = vector.shape_cast %122 : vector<2xf32> to vector<2x1xf32>
      %124 = vector.broadcast %123 : vector<2x1xf32> to vector<2x8xf32>
      %125 = arith.subf %121, %124 : vector<2x8xf32>
      %126 = math.exp %125 : vector<2x8xf32>
      %cst_68 = arith.constant dense<0.000000e+00> : vector<2xf32>
      %127 = vector.multi_reduction <add>, %126, %cst_68 [1] : vector<2x8xf32> to vector<2xf32>
      %128 = vector.shape_cast %127 : vector<2xf32> to vector<2x1xf32>
      %129 = tpu.reciprocal %128 {approx = true} : vector<2x1xf32> -> vector<2x1xf32>
      %130 = vector.broadcast %129 : vector<2x1xf32> to vector<2x8xf32>
      %131 = arith.mulf %126, %130 : vector<2x8xf32>
      %132 = vector.shape_cast %131 : vector<2x8xf32> to vector<2x8x1xf32>
      %133 = vector.broadcast %132 : vector<2x8x1xf32> to vector<2x8x32xf32>
      %134 = arith.mulf %117, %133 : vector<2x8x32xf32>
      %cst_69 = arith.constant dense<0.000000e+00> : vector<2x32xf32>
      %135 = vector.multi_reduction <add>, %134, %cst_69 [1] : vector<2x8x32xf32> to vector<2x32xf32>
      %c0_70 = arith.constant 0 : index
      %c0_71 = arith.constant 0 : index
      %136 = vector.load %arg18[%c0_70, %c0_71] : memref<32x2xf32, #tpu.memory_space<vmem>>, vector<32x2xf32>
      %cst_72 = arith.constant dense<0.000000e+00> : vector<2x2xf32>
      %137 = tpu.matmul %135, %136, %cst_72 {dimension_numbers = #tpu.dot_dimension_numbers<[1], [0], [0], [1], [0, 0, 1, 1], [], []>} : vector<2x32xf32>, vector<32x2xf32>, vector<2x2xf32> -> vector<2x2xf32>
      %c0_73 = arith.constant 0 : index
      %c0_74 = arith.constant 0 : index
      %138 = vector.load %arg19[%c0_73, %c0_74] : memref<1x2xf32, #tpu.memory_space<vmem>>, vector<1x2xf32>
      %139 = vector.broadcast %138 : vector<1x2xf32> to vector<2x2xf32>
      %140 = arith.addf %137, %139 : vector<2x2xf32>
      %c0_75 = arith.constant 0 : index
      %c0_76 = arith.constant 0 : index
      %c0_77 = arith.constant 0 : index
      %141 = vector.load %arg20[%c0_75, %c0_76, %c0_77] : memref<1x2x2xf32, #tpu.memory_space<vmem>>, vector<1x2x2xf32>
      %142 = vector.shape_cast %141 : vector<1x2x2xf32> to vector<2x2xf32>
      %143 = vector.shape_cast %140 : vector<2x2xf32> to vector<1x2x2xf32>
      tpu.vector_store %arg20[%c0_75, %c0_76, %c0_77], %143 {strides = array<i32>} : memref<1x2x2xf32, #tpu.memory_space<vmem>>, vector<1x2x2xf32>,
    } else {
    }
    return
  }
  func.func @transform_0(%arg0: i32, %arg1: i32) -> (i32, i32, i32) {
    %c0_i32 = arith.constant 0 : i32
    %c0_i32_0 = arith.constant 0 : i32
    %c0_i32_1 = arith.constant 0 : i32
    return %arg0, %c0_i32, %c0_i32_0 : i32, i32, i32
  }
  func.func @transform_1(%arg0: i32, %arg1: i32) -> (i32, i32) {
    %c0_i32 = arith.constant 0 : i32
    %c0_i32_0 = arith.constant 0 : i32
    %c0_i32_1 = arith.constant 0 : i32
    return %c0_i32, %c0_i32_0 : i32, i32
  }
  func.func @transform_2(%arg0: i32, %arg1: i32) -> (i32, i32) {
    %c0_i32 = arith.constant 0 : i32
    %c0_i32_0 = arith.constant 0 : i32
    %c0_i32_1 = arith.constant 0 : i32
    return %c0_i32, %c0_i32_0 : i32, i32
  }
  func.func @transform_3(%arg0: i32, %arg1: i32) -> (i32, i32, i32) {
    %c0_i32 = arith.constant 0 : i32
    %c0_i32_0 = arith.constant 0 : i32
    %c0_i32_1 = arith.constant 0 : i32
    return %arg1, %c0_i32, %c0_i32_0 : i32, i32, i32
  }
  func.func @transform_4(%arg0: i32, %arg1: i32) -> (i32, i32, i32) {
    %c0_i32 = arith.constant 0 : i32
    %c0_i32_0 = arith.constant 0 : i32
    %c0_i32_1 = arith.constant 0 : i32
    return %arg1, %c0_i32, %c0_i32_0 : i32, i32, i32
  }
  func.func @transform_5(%arg0: i32, %arg1: i32) -> (i32, i32, i32) {
    %c0_i32 = arith.constant 0 : i32
    %c0_i32_0 = arith.constant 0 : i32
    %c0_i32_1 = arith.constant 0 : i32
    return %arg1, %c0_i32, %c0_i32_0 : i32, i32, i32
  }
  func.func @transform_6(%arg0: i32, %arg1: i32) -> (i32, i32, i32) {
    %c0_i32 = arith.constant 0 : i32
    %c0_i32_0 = arith.constant 0 : i32
    %c0_i32_1 = arith.constant 0 : i32
    return %arg1, %c0_i32, %c0_i32_0 : i32, i32, i32
  }
  func.func @transform_7(%arg0: i32, %arg1: i32) -> (i32, i32, i32) {
    %c0_i32 = arith.constant 0 : i32
    %c0_i32_0 = arith.constant 0 : i32
    %c0_i32_1 = arith.constant 0 : i32
    return %arg1, %c0_i32, %c0_i32_0 : i32, i32, i32
  }
  func.func @transform_8(%arg0: i32, %arg1: i32) -> (i32, i32, i32) {
    %c0_i32 = arith.constant 0 : i32
    %c0_i32_0 = arith.constant 0 : i32
    %c0_i32_1 = arith.constant 0 : i32
    return %arg1, %c0_i32, %c0_i32_0 : i32, i32, i32
  }
  func.func @transform_9(%arg0: i32, %arg1: i32) -> (i32, i32, i32) {
    %c0_i32 = arith.constant 0 : i32
    %c0_i32_0 = arith.constant 0 : i32
    %c0_i32_1 = arith.constant 0 : i32
    return %arg1, %c0_i32, %c0_i32_0 : i32, i32, i32
  }
  func.func @transform_10(%arg0: i32, %arg1: i32) -> (i32, i32, i32) {
    %c0_i32 = arith.constant 0 : i32
    %c0_i32_0 = arith.constant 0 : i32
    %c0_i32_1 = arith.constant 0 : i32
    return %arg1, %c0_i32, %c0_i32_0 : i32, i32, i32
  }
  func.func @transform_11(%arg0: i32, %arg1: i32) -> (i32, i32, i32) {
    %c0_i32 = arith.constant 0 : i32
    %c0_i32_0 = arith.constant 0 : i32
    %c0_i32_1 = arith.constant 0 : i32
    return %arg1, %c0_i32, %c0_i32_0 : i32, i32, i32
  }
  func.func @transform_12(%arg0: i32, %arg1: i32) -> (i32, i32) {
    %c0_i32 = arith.constant 0 : i32
    %c0_i32_0 = arith.constant 0 : i32
    %c0_i32_1 = arith.constant 0 : i32
    return %c0_i32, %c0_i32_0 : i32, i32
  }
  func.func @transform_13(%arg0: i32, %arg1: i32) -> (i32, i32, i32) {
    %c0_i32 = arith.constant 0 : i32
    %c0_i32_0 = arith.constant 0 : i32
    %c0_i32_1 = arith.constant 0 : i32
    %c0_i32_2 = arith.constant 0 : i32
    return %c0_i32, %c0_i32_0, %c0_i32_1 : i32, i32, i32
  }
  func.func @transform_14(%arg0: i32, %arg1: i32) -> (i32, i32, i32) {
    %c0_i32 = arith.constant 0 : i32
    %c0_i32_0 = arith.constant 0 : i32
    %c0_i32_1 = arith.constant 0 : i32
    %c0_i32_2 = arith.constant 0 : i32
    return %c0_i32, %c0_i32_0, %c0_i32_1 : i32, i32, i32
  }
  func.func @transform_15(%arg0: i32, %arg1: i32) -> (i32, i32, i32) {
    %c0_i32 = arith.constant 0 : i32
    %c0_i32_0 = arith.constant 0 : i32
    %c0_i32_1 = arith.constant 0 : i32
    %c0_i32_2 = arith.constant 0 : i32
    return %c0_i32, %c0_i32_0, %c0_i32_1 : i32, i32, i32
  }
  func.func @transform_16(%arg0: i32, %arg1: i32) -> (i32, i32) {
    %c0_i32 = arith.constant 0 : i32
    %c0_i32_0 = arith.constant 0 : i32
    %c0_i32_1 = arith.constant 0 : i32
    return %c0_i32, %c0_i32_0 : i32, i32
  }
  func.func @transform_17(%arg0: i32, %arg1: i32) -> (i32, i32) {
    %c0_i32 = arith.constant 0 : i32
    %c0_i32_0 = arith.constant 0 : i32
    %c0_i32_1 = arith.constant 0 : i32
    return %c0_i32, %c0_i32_0 : i32, i32
  }
  func.func @transform_18(%arg0: i32, %arg1: i32) -> (i32, i32, i32) {
    %c0_i32 = arith.constant 0 : i32
    %c0_i32_0 = arith.constant 0 : i32
    %c0_i32_1 = arith.constant 0 : i32
    return %arg0, %c0_i32, %c0_i32_0 : i32, i32, i32
  }
}

</mosaic_0001>

<llo_original>
// kernel: tpu_custom_call.1
$region0: #{tpu_custom_call.1}
  #allocation0 [shape = 'u32[]', space=smem, size = 0x4, offset = 0x4, fixed_abs, tag = 'smem constant byte address 0x4 - core index']
  #allocation1 [shape = 'u32[144,128]{1,0:T(1,128)}', space=vmem, size = 0x12000, scoped, tag = 'internal scratch']
  #allocation2 [shape = 'f32[16,32]{1,0:T(8,128)}', space=vmem, size = 0x2000, scoped, tag = 'scratch operand']
  %s0 = inlined_call_operand.vmem [shape: f32[2,8,4], index: 0, kind: input, shape index: {}]
  %s1 = inlined_call_operand.vmem [shape: f32[4,32], index: 1, kind: input, shape index: {}]
  %s2 = inlined_call_operand.vmem [shape: f32[1,32], index: 2, kind: input, shape index: {}]
  %s3 = inlined_call_operand.vmem [shape: f32[2,32,32], index: 3, kind: input, shape index: {}]
  %s4 = inlined_call_operand.vmem [shape: f32[2,32,16], index: 4, kind: input, shape index: {}]
  %s5 = inlined_call_operand.vmem [shape: f32[2,32,16], index: 5, kind: input, shape index: {}]
  %s6 = inlined_call_operand.vmem [shape: f32[2,32,32], index: 6, kind: input, shape index: {}]
  %s7 = inlined_call_operand.vmem [shape: f32[2,32,64], index: 7, kind: input, shape index: {}]
  %s8 = inlined_call_operand.vmem [shape: f32[2,64,32], index: 8, kind: input, shape index: {}]
  %s9 = inlined_call_operand.vmem [shape: f32[2,32,64], index: 9, kind: input, shape index: {}]
  %s10 = inlined_call_operand.vmem [shape: f32[2,1,32], index: 10, kind: input, shape index: {}]
  %s11 = inlined_call_operand.vmem [shape: f32[2,1,32], index: 11, kind: input, shape index: {}]
  %s12 = inlined_call_operand.vmem [shape: f32[1,32], index: 12, kind: input, shape index: {}]
  %s13 = inlined_call_operand.vmem [shape: f32[16,1,8], index: 13, kind: input, shape index: {}]
  %s14 = inlined_call_operand.vmem [shape: f32[16,1,8], index: 14, kind: input, shape index: {}]
  %s15 = inlined_call_operand.vmem [shape: f32[1,1,32], index: 15, kind: input, shape index: {}]
  %s16 = inlined_call_operand.vmem [shape: f32[32,2], index: 16, kind: input, shape index: {}]
  %s17 = inlined_call_operand.vmem [shape: f32[1,2], index: 17, kind: input, shape index: {}]
  %s18 = inlined_call_operand.hbm [shape: f32[1,2,2], index: 18, kind: output, shape index: {}]
  %s19 = sld [smem:[#allocation0]]
  $region113: #{tpu_custom_call.1} parent=0
    _
  %s21 = ssub.s32 1, %s19
  %s22 = scalar_select 0, %s21, %s19
  $region1: #{tpu_custom_call.1} parent=0
    #allocation3 [shape = 'u8[1024]{0}', space=vmem, size = 0x400, scoped, tag = 'output window, operand 0, single buffered']
    #allocation4 [shape = 's32[2]{0}', space=sflag, size = 0x8, scoped, tag = 'scoped memory for tpu_custom_call.1']
    %23 = vsyncpa [#allocation4], 0
    loop: start=0, step=1, limit=4
    $region2: #{tpu_custom_call.1} parent=1 // loop_pre_header
      _
    $region3: #{tpu_custom_call.1} parent=1 // loop_header
      %s25 = sphi 0, %s29
      %p26 = scmp.ge.s32.totalorder %s25, 4
      %s32 = sphi 0, %s44
      %s33 = sphi 0, %s40
      %s34 = sphi 0, %s32
      %s35 = sphi 0, %s33
      %s36 = sphi 0, %s34
      %s37 = sphi 0, %s35
      %s47 = sphi 0, %s49
      %s50 = sphi 0, %s47
      %s51 = sphi 0, %s50
      %s67 = sphi 0, %s51
      %s71 = sphi 0, %s71
      %s73 = sphi 0, %s71
      %s74 = sphi 0, %s73
      %s88 = sphi 0, %s74
      %s92 = sphi 0, %s92
      %s94 = sphi 0, %s92
      %s95 = sphi 0, %s94
      %s109 = sphi 0, %s95
      %s115 = sphi 0, %s117
      %s118 = sphi 0, %s115
      %s119 = sphi 0, %s118
      %s135 = sphi 0, %s119
      %s141 = sphi 0, %s143
      %s144 = sphi 0, %s141
      %s145 = sphi 0, %s144
      %s161 = sphi 0, %s145
      %s167 = sphi 0, %s169
      %s170 = sphi 0, %s167
      %s171 = sphi 0, %s170
      %s187 = sphi 0, %s171
      %s193 = sphi 0, %s195
      %s196 = sphi 0, %s193
      %s197 = sphi 0, %s196
      %s213 = sphi 0, %s197
      %s219 = sphi 0, %s221
      %s222 = sphi 0, %s219
      %s223 = sphi 0, %s222
      %s239 = sphi 0, %s223
      %s245 = sphi 0, %s247
      %s248 = sphi 0, %s245
      %s249 = sphi 0, %s248
      %s265 = sphi 0, %s249
      %s271 = sphi 0, %s273
      %s274 = sphi 0, %s271
      %s275 = sphi 0, %s274
      %s291 = sphi 0, %s275
      %s297 = sphi 0, %s299
      %s300 = sphi 0, %s297
      %s301 = sphi 0, %s300
      %s317 = sphi 0, %s301
      %s323 = sphi 0, %s325
      %s326 = sphi 0, %s323
      %s327 = sphi 0, %s326
      %s343 = sphi 0, %s327
      %s347 = sphi 0, %s347
      %s349 = sphi 0, %s347
      %s350 = sphi 0, %s349
      %s364 = sphi 0, %s350
      %s368 = sphi 0, %s368
      %s370 = sphi 0, %s368
      %s371 = sphi 0, %s370
      %s385 = sphi 0, %s371
      %s389 = sphi 0, %s389
      %s391 = sphi 0, %s389
      %s392 = sphi 0, %s391
      %s406 = sphi 0, %s392
      %s410 = sphi 0, %s410
      %s412 = sphi 0, %s410
      %s413 = sphi 0, %s412
      %s427 = sphi 0, %s413
      %s431 = sphi 0, %s431
      %s433 = sphi 0, %s431
      %s434 = sphi 0, %s433
      %s448 = sphi 0, %s434
      %s452 = sphi 0, %s452
      %s454 = sphi 0, %s452
      %s455 = sphi 0, %s454
      %s469 = sphi 0, %s455
      %s475 = sphi 0, %s477
      %s478 = sphi 0, %s475
      %s479 = sphi 0, %s478
      %s495 = sphi 0, %s479
    $region4: #{tpu_custom_call.1} parent=1 // loop_header_branch
      %28 = sbr.rel (%p26) target = $region8
    $region5: #{tpu_custom_call.1} parent=1 // loop_body
      %s30 = ssub.s32 %s25, 1
      %s31 = ssub.s32 %s25, 2
      %s38 = sadd.s32 1, %s33
      %p39 = scmp.ge.s32.totalorder %s38, 2
      %s40 = scalar_select %p39, 0, %s38
      %s41 = sadd.s32 1, %s32
      %s42 = scalar_select %p39, %s41, %s32
      %p43 = scmp.ge.s32.totalorder %s42, 1
      %s44 = scalar_select %p43, 0, %s42
      %s45 = ssub.s32 %s32, %s44
      %p46 = scmp.eq.s32.totalorder %s45, 0
      %s48 = sadd.s32 %s47, 1
      %s49 = scalar_select %p46, %s47, %s48
      %p52 = pneg %p46
      %p53 = scmp.eq.s32.totalorder %s25, 1
      %p54 = por %p52, %p53
      %p55 = scmp.ne.s32.totalorder %s47, %s50
      %p56 = scmp.eq.s32.totalorder %s25, 0
      %p57 = por %p55, %p56
      %p58 = scmp.ne.s32.totalorder %s47, %s50
      %p59 = scmp.eq.s32.totalorder %s30, 1
      %p60 = por %p58, %p59
      %p61 = scmp.ne.s32.totalorder %s50, %s51
      %p62 = scmp.eq.s32.totalorder %s30, 0
      %p63 = por %p61, %p62
      %p64 = scmp.ne.s32.totalorder %s50, %s51
      %p65 = scmp.eq.s32.totalorder %s31, 1
      %p66 = por %p64, %p65
      %p68 = scmp.ne.s32.totalorder %s51, %s67
      %p69 = scmp.eq.s32.totalorder %s31, 0
      %p70 = por %p68, %p69
      %s72 = sadd.s32 %s71, 1
      %p75 = scmp.eq.s32.totalorder %s25, 1
      %p76 = scmp.ne.s32.totalorder %s71, %s73
      %p77 = scmp.eq.s32.totalorder %s25, 0
      %p78 = por %p76, %p77
      %p79 = scmp.ne.s32.totalorder %s71, %s73
      %p80 = scmp.eq.s32.totalorder %s30, 1
      %p81 = por %p79, %p80
      %p82 = scmp.ne.s32.totalorder %s73, %s74
      %p83 = scmp.eq.s32.totalorder %s30, 0
      %p84 = por %p82, %p83
      %p85 = scmp.ne.s32.totalorder %s73, %s74
      %p86 = scmp.eq.s32.totalorder %s31, 1
      %p87 = por %p85, %p86
      %p89 = scmp.ne.s32.totalorder %s74, %s88
      %p90 = scmp.eq.s32.totalorder %s31, 0
      %p91 = por %p89, %p90
      %s93 = sadd.s32 %s92, 1
      %p96 = scmp.eq.s32.totalorder %s25, 1
      %p97 = scmp.ne.s32.totalorder %s92, %s94
      %p98 = scmp.eq.s32.totalorder %s25, 0
      %p99 = por %p97, %p98
      %p100 = scmp.ne.s32.totalorder %s92, %s94
      %p101 = scmp.eq.s32.totalorder %s30, 1
      %p102 = por %p100, %p101
      %p103 = scmp.ne.s32.totalorder %s94, %s95
      %p104 = scmp.eq.s32.totalorder %s30, 0
      %p105 = por %p103, %p104
      %p106 = scmp.ne.s32.totalorder %s94, %s95
      %p107 = scmp.eq.s32.totalorder %s31, 1
      %p108 = por %p106, %p107
      %p110 = scmp.ne.s32.totalorder %s95, %s109
      %p111 = scmp.eq.s32.totalorder %s31, 0
      %p112 = por %p110, %p111
      %s113 = ssub.s32 %s33, %s40
      %p114 = scmp.eq.s32.totalorder %s113, 0
      %s116 = sadd.s32 %s115, 1
      %s117 = scalar_select %p114, %s115, %s116
      %p120 = pneg %p114
      %p121 = scmp.eq.s32.totalorder %s25, 1
      %p122 = por %p120, %p121
      %p123 = scmp.ne.s32.totalorder %s115, %s118
      %p124 = scmp.eq.s32.totalorder %s25, 0
      %p125 = por %p123, %p124
      %p126 = scmp.ne.s32.totalorder %s115, %s118
      %p127 = scmp.eq.s32.totalorder %s30, 1
      %p128 = por %p126, %p127
      %p129 = scmp.ne.s32.totalorder %s118, %s119
      %p130 = scmp.eq.s32.totalorder %s30, 0
      %p131 = por %p129, %p130
      %p132 = scmp.ne.s32.totalorder %s118, %s119
      %p133 = scmp.eq.s32.totalorder %s31, 1
      %p134 = por %p132, %p133
      %p136 = scmp.ne.s32.totalorder %s119, %s135
      %p137 = scmp.eq.s32.totalorder %s31, 0
      %p138 = por %p136, %p137
      %s139 = ssub.s32 %s33, %s40
      %p140 = scmp.eq.s32.totalorder %s139, 0
      %s142 = sadd.s32 %s141, 1
      %s143 = scalar_select %p140, %s141, %s142
      %p146 = pneg %p140
      %p147 = scmp.eq.s32.totalorder %s25, 1
      %p148 = por %p146, %p147
      %p149 = scmp.ne.s32.totalorder %s141, %s144
      %p150 = scmp.eq.s32.totalorder %s25, 0
      %p151 = por %p149, %p150
      %p152 = scmp.ne.s32.totalorder %s141, %s144
      %p153 = scmp.eq.s32.totalorder %s30, 1
      %p154 = por %p152, %p153
      %p155 = scmp.ne.s32.totalorder %s144, %s145
      %p156 = scmp.eq.s32.totalorder %s30, 0
      %p157 = por %p155, %p156
      %p158 = scmp.ne.s32.totalorder %s144, %s145
      %p159 = scmp.eq.s32.totalorder %s31, 1
      %p160 = por %p158, %p159
      %p162 = scmp.ne.s32.totalorder %s145, %s161
      %p163 = scmp.eq.s32.totalorder %s31, 0
      %p164 = por %p162, %p163
      %s165 = ssub.s32 %s33, %s40
      %p166 = scmp.eq.s32.totalorder %s165, 0
      %s168 = sadd.s32 %s167, 1
      %s169 = scalar_select %p166, %s167, %s168
      %p172 = pneg %p166
      %p173 = scmp.eq.s32.totalorder %s25, 1
      %p174 = por %p172, %p173
      %p175 = scmp.ne.s32.totalorder %s167, %s170
      %p176 = scmp.eq.s32.totalorder %s25, 0
      %p177 = por %p175, %p176
      %p178 = scmp.ne.s32.totalorder %s167, %s170
      %p179 = scmp.eq.s32.totalorder %s30, 1
      %p180 = por %p178, %p179
      %p181 = scmp.ne.s32.totalorder %s170, %s171
      %p182 = scmp.eq.s32.totalorder %s30, 0
      %p183 = por %p181, %p182
      %p184 = scmp.ne.s32.totalorder %s170, %s171
      %p185 = scmp.eq.s32.totalorder %s31, 1
      %p186 = por %p184, %p185
      %p188 = scmp.ne.s32.totalorder %s171, %s187
      %p189 = scmp.eq.s32.totalorder %s31, 0
      %p190 = por %p188, %p189
      %s191 = ssub.s32 %s33, %s40
      %p192 = scmp.eq.s32.totalorder %s191, 0
      %s194 = sadd.s32 %s193, 1
      %s195 = scalar_select %p192, %s193, %s194
      %p198 = pneg %p192
      %p199 = scmp.eq.s32.totalorder %s25, 1
      %p200 = por %p198, %p199
      %p201 = scmp.ne.s32.totalorder %s193, %s196
      %p202 = scmp.eq.s32.totalorder %s25, 0
      %p203 = por %p201, %p202
      %p204 = scmp.ne.s32.totalorder %s193, %s196
      %p205 = scmp.eq.s32.totalorder %s30, 1
      %p206 = por %p204, %p205
      %p207 = scmp.ne.s32.totalorder %s196, %s197
      %p208 = scmp.eq.s32.totalorder %s30, 0
      %p209 = por %p207, %p208
      %p210 = scmp.ne.s32.totalorder %s196, %s197
      %p211 = scmp.eq.s32.totalorder %s31, 1
      %p212 = por %p210, %p211
      %p214 = scmp.ne.s32.totalorder %s197, %s213
      %p215 = scmp.eq.s32.totalorder %s31, 0
      %p216 = por %p214, %p215
      %s217 = ssub.s32 %s33, %s40
      %p218 = scmp.eq.s32.totalorder %s217, 0
      %s220 = sadd.s32 %s219, 1
      %s221 = scalar_select %p218, %s219, %s220
      %p224 = pneg %p218
      %p225 = scmp.eq.s32.totalorder %s25, 1
      %p226 = por %p224, %p225
      %p227 = scmp.ne.s32.totalorder %s219, %s222
      %p228 = scmp.eq.s32.totalorder %s25, 0
      %p229 = por %p227, %p228
      %p230 = scmp.ne.s32.totalorder %s219, %s222
      %p231 = scmp.eq.s32.totalorder %s30, 1
      %p232 = por %p230, %p231
      %p233 = scmp.ne.s32.totalorder %s222, %s223
      %p234 = scmp.eq.s32.totalorder %s30, 0
      %p235 = por %p233, %p234
      %p236 = scmp.ne.s32.totalorder %s222, %s223
      %p237 = scmp.eq.s32.totalorder %s31, 1
      %p238 = por %p236, %p237
      %p240 = scmp.ne.s32.totalorder %s223, %s239
      %p241 = scmp.eq.s32.totalorder %s31, 0
      %p242 = por %p240, %p241
      %s243 = ssub.s32 %s33, %s40
      %p244 = scmp.eq.s32.totalorder %s243, 0
      %s246 = sadd.s32 %s245, 1
      %s247 = scalar_select %p244, %s245, %s246
      %p250 = pneg %p244
      %p251 = scmp.eq.s32.totalorder %s25, 1
      %p252 = por %p250, %p251
      %p253 = scmp.ne.s32.totalorder %s245, %s248
      %p254 = scmp.eq.s32.totalorder %s25, 0
      %p255 = por %p253, %p254
      %p256 = scmp.ne.s32.totalorder %s245, %s248
      %p257 = scmp.eq.s32.totalorder %s30, 1
      %p258 = por %p256, %p257
      %p259 = scmp.ne.s32.totalorder %s248, %s249
      %p260 = scmp.eq.s32.totalorder %s30, 0
      %p261 = por %p259, %p260
      %p262 = scmp.ne.s32.totalorder %s248, %s249
      %p263 = scmp.eq.s32.totalorder %s31, 1
      %p264 = por %p262, %p263
      %p266 = scmp.ne.s32.totalorder %s249, %s265
      %p267 = scmp.eq.s32.totalorder %s31, 0
      %p268 = por %p266, %p267
      %s269 = ssub.s32 %s33, %s40
      %p270 = scmp.eq.s32.totalorder %s269, 0
      %s272 = sadd.s32 %s271, 1
      %s273 = scalar_select %p270, %s271, %s272
      %p276 = pneg %p270
      %p277 = scmp.eq.s32.totalorder %s25, 1
      %p278 = por %p276, %p277
      %p279 = scmp.ne.s32.totalorder %s271, %s274
      %p280 = scmp.eq.s32.totalorder %s25, 0
      %p281 = por %p279, %p280
      %p282 = scmp.ne.s32.totalorder %s271, %s274
      %p283 = scmp.eq.s32.totalorder %s30, 1
      %p284 = por %p282, %p283
      %p285 = scmp.ne.s32.totalorder %s274, %s275
      %p286 = scmp.eq.s32.totalorder %s30, 0
      %p287 = por %p285, %p286
      %p288 = scmp.ne.s32.totalorder %s274, %s275
      %p289 = scmp.eq.s32.totalorder %s31, 1
      %p290 = por %p288, %p289
      %p292 = scmp.ne.s32.totalorder %s275, %s291
      %p293 = scmp.eq.s32.totalorder %s31, 0
      %p294 = por %p292, %p293
      %s295 = ssub.s32 %s33, %s40
      %p296 = scmp.eq.s32.totalorder %s295, 0
      %s298 = sadd.s32 %s297, 1
      %s299 = scalar_select %p296, %s297, %s298
      %p302 = pneg %p296
      %p303 = scmp.eq.s32.totalorder %s25, 1
      %p304 = por %p302, %p303
      %p305 = scmp.ne.s32.totalorder %s297, %s300
      %p306 = scmp.eq.s32.totalorder %s25, 0
      %p307 = por %p305, %p306
      %p308 = scmp.ne.s32.totalorder %s297, %s300
      %p309 = scmp.eq.s32.totalorder %s30, 1
      %p310 = por %p308, %p309
      %p311 = scmp.ne.s32.totalorder %s300, %s301
      %p312 = scmp.eq.s32.totalorder %s30, 0
      %p313 = por %p311, %p312
      %p314 = scmp.ne.s32.totalorder %s300, %s301
      %p315 = scmp.eq.s32.totalorder %s31, 1
      %p316 = por %p314, %p315
      %p318 = scmp.ne.s32.totalorder %s301, %s317
      %p319 = scmp.eq.s32.totalorder %s31, 0
      %p320 = por %p318, %p319
      %s321 = ssub.s32 %s33, %s40
      %p322 = scmp.eq.s32.totalorder %s321, 0
      %s324 = sadd.s32 %s323, 1
      %s325 = scalar_select %p322, %s323, %s324
      %p328 = pneg %p322
      %p329 = scmp.eq.s32.totalorder %s25, 1
      %p330 = por %p328, %p329
      %p331 = scmp.ne.s32.totalorder %s323, %s326
      %p332 = scmp.eq.s32.totalorder %s25, 0
      %p333 = por %p331, %p332
      %p334 = scmp.ne.s32.totalorder %s323, %s326
      %p335 = scmp.eq.s32.totalorder %s30, 1
      %p336 = por %p334, %p335
      %p337 = scmp.ne.s32.totalorder %s326, %s327
      %p338 = scmp.eq.s32.totalorder %s30, 0
      %p339 = por %p337, %p338
      %p340 = scmp.ne.s32.totalorder %s326, %s327
      %p341 = scmp.eq.s32.totalorder %s31, 1
      %p342 = por %p340, %p341
      %p344 = scmp.ne.s32.totalorder %s327, %s343
      %p345 = scmp.eq.s32.totalorder %s31, 0
      %p346 = por %p344, %p345
      %s348 = sadd.s32 %s347, 1
      %p351 = scmp.eq.s32.totalorder %s25, 1
      %p352 = scmp.ne.s32.totalorder %s347, %s349
      %p353 = scmp.eq.s32.totalorder %s25, 0
      %p354 = por %p352, %p353
      %p355 = scmp.ne.s32.totalorder %s347, %s349
      %p356 = scmp.eq.s32.totalorder %s30, 1
      %p357 = por %p355, %p356
      %p358 = scmp.ne.s32.totalorder %s349, %s350
      %p359 = scmp.eq.s32.totalorder %s30, 0
      %p360 = por %p358, %p359
      %p361 = scmp.ne.s32.totalorder %s349, %s350
      %p362 = scmp.eq.s32.totalorder %s31, 1
      %p363 = por %p361, %p362
      %p365 = scmp.ne.s32.totalorder %s350, %s364
      %p366 = scmp.eq.s32.totalorder %s31, 0
      %p367 = por %p365, %p366
      %s369 = sadd.s32 %s368, 1
      %p372 = scmp.eq.s32.totalorder %s25, 1
      %p373 = scmp.ne.s32.totalorder %s368, %s370
      %p374 = scmp.eq.s32.totalorder %s25, 0
      %p375 = por %p373, %p374
      %p376 = scmp.ne.s32.totalorder %s368, %s370
      %p377 = scmp.eq.s32.totalorder %s30, 1
      %p378 = por %p376, %p377
      %p379 = scmp.ne.s32.totalorder %s370, %s371
      %p380 = scmp.eq.s32.totalorder %s30, 0
      %p381 = por %p379, %p380
      %p382 = scmp.ne.s32.totalorder %s370, %s371
      %p383 = scmp.eq.s32.totalorder %s31, 1
      %p384 = por %p382, %p383
      %p386 = scmp.ne.s32.totalorder %s371, %s385
      %p387 = scmp.eq.s32.totalorder %s31, 0
      %p388 = por %p386, %p387
      %s390 = sadd.s32 %s389, 1
      %p393 = scmp.eq.s32.totalorder %s25, 1
      %p394 = scmp.ne.s32.totalorder %s389, %s391
      %p395 = scmp.eq.s32.totalorder %s25, 0
      %p396 = por %p394, %p395
      %p397 = scmp.ne.s32.totalorder %s389, %s391
      %p398 = scmp.eq.s32.totalorder %s30, 1
      %p399 = por %p397, %p398
      %p400 = scmp.ne.s32.totalorder %s391, %s392
      %p401 = scmp.eq.s32.totalorder %s30, 0
      %p402 = por %p400, %p401
      %p403 = scmp.ne.s32.totalorder %s391, %s392
      %p404 = scmp.eq.s32.totalorder %s31, 1
      %p405 = por %p403, %p404
      %p407 = scmp.ne.s32.totalorder %s392, %s406
      %p408 = scmp.eq.s32.totalorder %s31, 0
      %p409 = por %p407, %p408
      %s411 = sadd.s32 %s410, 1
      %p414 = scmp.eq.s32.totalorder %s25, 1
      %p415 = scmp.ne.s32.totalorder %s410, %s412
      %p416 = scmp.eq.s32.totalorder %s25, 0
      %p417 = por %p415, %p416
      %p418 = scmp.ne.s32.totalorder %s410, %s412
      %p419 = scmp.eq.s32.totalorder %s30, 1
      %p420 = por %p418, %p419
      %p421 = scmp.ne.s32.totalorder %s412, %s413
      %p422 = scmp.eq.s32.totalorder %s30, 0
      %p423 = por %p421, %p422
      %p424 = scmp.ne.s32.totalorder %s412, %s413
      %p425 = scmp.eq.s32.totalorder %s31, 1
      %p426 = por %p424, %p425
      %p428 = scmp.ne.s32.totalorder %s413, %s427
      %p429 = scmp.eq.s32.totalorder %s31, 0
      %p430 = por %p428, %p429
      %s432 = sadd.s32 %s431, 1
      %p435 = scmp.eq.s32.totalorder %s25, 1
      %p436 = scmp.ne.s32.totalorder %s431, %s433
      %p437 = scmp.eq.s32.totalorder %s25, 0
      %p438 = por %p436, %p437
      %p439 = scmp.ne.s32.totalorder %s431, %s433
      %p440 = scmp.eq.s32.totalorder %s30, 1
      %p441 = por %p439, %p440
      %p442 = scmp.ne.s32.totalorder %s433, %s434
      %p443 = scmp.eq.s32.totalorder %s30, 0
      %p444 = por %p442, %p443
      %p445 = scmp.ne.s32.totalorder %s433, %s434
      %p446 = scmp.eq.s32.totalorder %s31, 1
      %p447 = por %p445, %p446
      %p449 = scmp.ne.s32.totalorder %s434, %s448
      %p450 = scmp.eq.s32.totalorder %s31, 0
      %p451 = por %p449, %p450
      %s453 = sadd.s32 %s452, 1
      %p456 = scmp.eq.s32.totalorder %s25, 1
      %p457 = scmp.ne.s32.totalorder %s452, %s454
      %p458 = scmp.eq.s32.totalorder %s25, 0
      %p459 = por %p457, %p458
      %p460 = scmp.ne.s32.totalorder %s452, %s454
      %p461 = scmp.eq.s32.totalorder %s30, 1
      %p462 = por %p460, %p461
      %p463 = scmp.ne.s32.totalorder %s454, %s455
      %p464 = scmp.eq.s32.totalorder %s30, 0
      %p465 = por %p463, %p464
      %p466 = scmp.ne.s32.totalorder %s454, %s455
      %p467 = scmp.eq.s32.totalorder %s31, 1
      %p468 = por %p466, %p467
      %p470 = scmp.ne.s32.totalorder %s455, %s469
      %p471 = scmp.eq.s32.totalorder %s31, 0
      %p472 = por %p470, %p471
      %s473 = ssub.s32 %s32, %s44
      %p474 = scmp.eq.s32.totalorder %s473, 0
      %s476 = sadd.s32 %s475, 1
      %s477 = scalar_select %p474, %s475, %s476
      %p480 = pneg %p474
      %p481 = scmp.eq.s32.totalorder %s25, 1
      %p482 = por %p480, %p481
      %p483 = scmp.ne.s32.totalorder %s475, %s478
      %p484 = scmp.eq.s32.totalorder %s25, 0
      %p485 = por %p483, %p484
      %p486 = scmp.ne.s32.totalorder %s475, %s478
      %p487 = scmp.eq.s32.totalorder %s30, 1
      %p488 = por %p486, %p487
      %p489 = scmp.ne.s32.totalorder %s478, %s479
      %p490 = scmp.eq.s32.totalorder %s30, 0
      %p491 = por %p489, %p490
      %p492 = scmp.ne.s32.totalorder %s478, %s479
      %p493 = scmp.eq.s32.totalorder %s31, 1
      %p494 = por %p492, %p493
      %p496 = scmp.ne.s32.totalorder %s479, %s495
      %p497 = scmp.eq.s32.totalorder %s31, 0
      %p498 = por %p496, %p497
      %p499 = scmp.le.s32.totalorder 1, %s25
      %p500 = scmp.lt.s32.totalorder %s25, 3
      %p501 = pnand %p499, %p500
      %p502 = pneg %p501
      // Predicated region
      $region9: #{tpu_custom_call.1} parent=5 // pred_check
        _
      $region10: #{tpu_custom_call.1} parent=5 // pred_check_branch
        %504 = sbr.rel (%p501) target = $region12
      $region11: #{tpu_custom_call.1} parent=5 // pred_region
        %s505 = ssub.s32 %s25, 1
        // Predicated region
        $region13: #{tpu_custom_call.1} parent=11 // pred_check
          %p506 = pneg %p63
        $region14: #{tpu_custom_call.1} parent=11 // pred_check_branch
          %508 = sbr.rel (%p506) target = $region16
        $region15: #{tpu_custom_call.1} parent=11 // pred_region
          %s509 = smul.u32 2, %s34
          %p510 = scmp.lt.s32.totalorder %s509, 1
          %s511 = scalar_select %p510, %s509, 1
          %s512 = smul.addr %s511, 8
          %s513 = scalar_lea.vmem %s0, %s512
          %s514 = smul.u32 2, %s34
        $region16: #{tpu_custom_call.1} parent=11 // pred_fallthru
          _
        // Predicated region
        $region17: #{tpu_custom_call.1} parent=11 // pred_check
          %p515 = pneg %p84
        $region18: #{tpu_custom_call.1} parent=11 // pred_check_branch
          %517 = sbr.rel (%p515) target = $region20
        $region19: #{tpu_custom_call.1} parent=11 // pred_region
          _
        $region20: #{tpu_custom_call.1} parent=11 // pred_fallthru
          _
        // Predicated region
        $region21: #{tpu_custom_call.1} parent=11 // pred_check
          %p518 = pneg %p105
        $region22: #{tpu_custom_call.1} parent=11 // pred_check_branch
          %520 = sbr.rel (%p518) target = $region24
        $region23: #{tpu_custom_call.1} parent=11 // pred_region
          _
        $region24: #{tpu_custom_call.1} parent=11 // pred_fallthru
          _
        // Predicated region
        $region25: #{tpu_custom_call.1} parent=11 // pred_check
          %p521 = pneg %p360
        $region26: #{tpu_custom_call.1} parent=11 // pred_check_branch
          %523 = sbr.rel (%p521) target = $region28
        $region27: #{tpu_custom_call.1} parent=11 // pred_region
          _
        $region28: #{tpu_custom_call.1} parent=11 // pred_fallthru
          _
        // Predicated region
        $region29: #{tpu_custom_call.1} parent=11 // pred_check
          %p524 = pneg %p381
        $region30: #{tpu_custom_call.1} parent=11 // pred_check_branch
          %526 = sbr.rel (%p524) target = $region32
        $region31: #{tpu_custom_call.1} parent=11 // pred_region
          _
        $region32: #{tpu_custom_call.1} parent=11 // pred_fallthru
          _
        // Predicated region
        $region33: #{tpu_custom_call.1} parent=11 // pred_check
          %p527 = pneg %p402
        $region34: #{tpu_custom_call.1} parent=11 // pred_check_branch
          %529 = sbr.rel (%p527) target = $region36
        $region35: #{tpu_custom_call.1} parent=11 // pred_region
          _
        $region36: #{tpu_custom_call.1} parent=11 // pred_fallthru
          _
        // Predicated region
        $region37: #{tpu_custom_call.1} parent=11 // pred_check
          %p530 = pneg %p423
        $region38: #{tpu_custom_call.1} parent=11 // pred_check_branch
          %532 = sbr.rel (%p530) target = $region40
        $region39: #{tpu_custom_call.1} parent=11 // pred_region
          _
        $region40: #{tpu_custom_call.1} parent=11 // pred_fallthru
          _
        // Predicated region
        $region41: #{tpu_custom_call.1} parent=11 // pred_check
          %p533 = pneg %p444
        $region42: #{tpu_custom_call.1} parent=11 // pred_check_branch
          %535 = sbr.rel (%p533) target = $region44
        $region43: #{tpu_custom_call.1} parent=11 // pred_region
          _
        $region44: #{tpu_custom_call.1} parent=11 // pred_fallthru
          _
        // Predicated region
        $region45: #{tpu_custom_call.1} parent=11 // pred_check
          %p536 = pneg %p465
        $region46: #{tpu_custom_call.1} parent=11 // pred_check_branch
          %538 = sbr.rel (%p536) target = $region48
        $region47: #{tpu_custom_call.1} parent=11 // pred_region
          _
        $region48: #{tpu_custom_call.1} parent=11 // pred_fallthru
          _
      $region12: #{tpu_custom_call.1} parent=5 // pred_fallthru
        _
      %p539 = scmp.lt.s32.totalorder %s25, 2
      // Predicated region
      $region49: #{tpu_custom_call.1} parent=5 // pred_check
        %p540 = pneg %p539
      $region50: #{tpu_custom_call.1} parent=5 // pred_check_branch
        %542 = sbr.rel (%p540) target = $region52
      $region51: #{tpu_custom_call.1} parent=5 // pred_region
        // Predicated region
        $region53: #{tpu_custom_call.1} parent=51 // pred_check
          %p543 = pneg %p125
        $region54: #{tpu_custom_call.1} parent=51 // pred_check_branch
          %545 = sbr.rel (%p543) target = $region56
        $region55: #{tpu_custom_call.1} parent=51 // pred_region
          %p546 = scmp.lt.s32.totalorder %s33, 1
          %s547 = scalar_select %p546, %s33, 1
          %s548 = smul.addr %s547, 4
          %s549 = smul.addr %s548, 8
          %s550 = scalar_lea.vmem %s3, %s549
        $region56: #{tpu_custom_call.1} parent=51 // pred_fallthru
          _
        // Predicated region
        $region57: #{tpu_custom_call.1} parent=51 // pred_check
          %p551 = pneg %p151
        $region58: #{tpu_custom_call.1} parent=51 // pred_check_branch
          %553 = sbr.rel (%p551) target = $region60
        $region59: #{tpu_custom_call.1} parent=51 // pred_region
          %p554 = scmp.lt.s32.totalorder %s33, 1
          %s555 = scalar_select %p554, %s33, 1
          %s556 = smul.addr %s555, 4
          %s557 = smul.addr %s556, 8
          %s558 = scalar_lea.vmem %s4, %s557
        $region60: #{tpu_custom_call.1} parent=51 // pred_fallthru
          _
        // Predicated region
        $region61: #{tpu_custom_call.1} parent=51 // pred_check
          %p559 = pneg %p177
        $region62: #{tpu_custom_call.1} parent=51 // pred_check_branch
          %561 = sbr.rel (%p559) target = $region64
        $region63: #{tpu_custom_call.1} parent=51 // pred_region
          %p562 = scmp.lt.s32.totalorder %s33, 1
          %s563 = scalar_select %p562, %s33, 1
          %s564 = smul.addr %s563, 4
          %s565 = smul.addr %s564, 8
          %s566 = scalar_lea.vmem %s5, %s565
        $region64: #{tpu_custom_call.1} parent=51 // pred_fallthru
          _
        // Predicated region
        $region65: #{tpu_custom_call.1} parent=51 // pred_check
          %p567 = pneg %p203
        $region66: #{tpu_custom_call.1} parent=51 // pred_check_branch
          %569 = sbr.rel (%p567) target = $region68
        $region67: #{tpu_custom_call.1} parent=51 // pred_region
          %p570 = scmp.lt.s32.totalorder %s33, 1
          %s571 = scalar_select %p570, %s33, 1
          %s572 = smul.addr %s571, 4
          %s573 = smul.addr %s572, 8
          %s574 = scalar_lea.vmem %s6, %s573
        $region68: #{tpu_custom_call.1} parent=51 // pred_fallthru
          _
        // Predicated region
        $region69: #{tpu_custom_call.1} parent=51 // pred_check
          %p575 = pneg %p229
        $region70: #{tpu_custom_call.1} parent=51 // pred_check_branch
          %577 = sbr.rel (%p575) target = $region72
        $region71: #{tpu_custom_call.1} parent=51 // pred_region
          %p578 = scmp.lt.s32.totalorder %s33, 1
          %s579 = scalar_select %p578, %s33, 1
          %s580 = smul.addr %s579, 4
          %s581 = smul.addr %s580, 8
          %s582 = scalar_lea.vmem %s7, %s581
        $region72: #{tpu_custom_call.1} parent=51 // pred_fallthru
          _
        // Predicated region
        $region73: #{tpu_custom_call.1} parent=51 // pred_check
          %p583 = pneg %p255
        $region74: #{tpu_custom_call.1} parent=51 // pred_check_branch
          %585 = sbr.rel (%p583) target = $region76
        $region75: #{tpu_custom_call.1} parent=51 // pred_region
          %p586 = scmp.lt.s32.totalorder %s33, 1
          %s587 = scalar_select %p586, %s33, 1
          %s588 = smul.addr %s587, 8
          %s589 = smul.addr %s588, 8
          %s590 = scalar_lea.vmem %s8, %s589
        $region76: #{tpu_custom_call.1} parent=51 // pred_fallthru
          _
        // Predicated region
        $region77: #{tpu_custom_call.1} parent=51 // pred_check
          %p591 = pneg %p281
        $region78: #{tpu_custom_call.1} parent=51 // pred_check_branch
          %593 = sbr.rel (%p591) target = $region80
        $region79: #{tpu_custom_call.1} parent=51 // pred_region
          %p594 = scmp.lt.s32.totalorder %s33, 1
          %s595 = scalar_select %p594, %s33, 1
          %s596 = smul.addr %s595, 4
          %s597 = smul.addr %s596, 8
          %s598 = scalar_lea.vmem %s9, %s597
        $region80: #{tpu_custom_call.1} parent=51 // pred_fallthru
          _
        // Predicated region
        $region81: #{tpu_custom_call.1} parent=51 // pred_check
          %p599 = pneg %p307
        $region82: #{tpu_custom_call.1} parent=51 // pred_check_branch
          %601 = sbr.rel (%p599) target = $region84
        $region83: #{tpu_custom_call.1} parent=51 // pred_region
          %p602 = scmp.lt.s32.totalorder %s33, 1
          %s603 = scalar_select %p602, %s33, 1
          %s604 = scalar_lea.vmem %s10, %s603
        $region84: #{tpu_custom_call.1} parent=51 // pred_fallthru
          _
        // Predicated region
        $region85: #{tpu_custom_call.1} parent=51 // pred_check
          %p605 = pneg %p333
        $region86: #{tpu_custom_call.1} parent=51 // pred_check_branch
          %607 = sbr.rel (%p605) target = $region88
        $region87: #{tpu_custom_call.1} parent=51 // pred_region
          %p608 = scmp.lt.s32.totalorder %s33, 1
          %s609 = scalar_select %p608, %s33, 1
          %s610 = scalar_lea.vmem %s11, %s609
        $region88: #{tpu_custom_call.1} parent=51 // pred_fallthru
          _
      $region52: #{tpu_custom_call.1} parent=5 // pred_fallthru
        _
      %p611 = scmp.le.s32.totalorder 1, %s25
      %p612 = scmp.lt.s32.totalorder %s25, 3
      %p613 = pnand %p611, %p612
      %p614 = pneg %p613
      // Predicated region
      $region89: #{tpu_custom_call.1} parent=5 // pred_check
        _
      $region90: #{tpu_custom_call.1} parent=5 // pred_check_branch
        %616 = sbr.rel (%p613) target = $region92
      $region91: #{tpu_custom_call.1} parent=5 // pred_region
        %s617 = ssub.s32 %s25, 1
        %s618 = smul.u32 2, %s34
        %p619 = scmp.lt.s32.totalorder %s618, 1
        %s620 = scalar_select %p619, %s618, 1
        %s621 = smul.addr %s620, 8
        %s622 = scalar_lea.vmem %s0, %s621
        %p623 = pneg %p63
        %p624 = pneg %p60
        %p625 = pneg %p84
        %p626 = pneg %p81
        %p627 = pneg %p105
        %p628 = pneg %p102
        %p629 = scmp.lt.s32.totalorder %s35, 1
        %s630 = scalar_select %p629, %s35, 1
        %s631 = smul.addr %s630, 4
        %s632 = smul.addr %s631, 8
        %s633 = scalar_lea.vmem %s3, %s632
        %p634 = pneg %p131
        %p635 = pneg %p128
        %p636 = scmp.lt.s32.totalorder %s35, 1
        %s637 = scalar_select %p636, %s35, 1
        %s638 = smul.addr %s637, 4
        %s639 = smul.addr %s638, 8
        %s640 = scalar_lea.vmem %s4, %s639
        %p641 = pneg %p157
        %p642 = pneg %p154
        %p643 = scmp.lt.s32.totalorder %s35, 1
        %s644 = scalar_select %p643, %s35, 1
        %s645 = smul.addr %s644, 4
        %s646 = smul.addr %s645, 8
        %s647 = scalar_lea.vmem %s5, %s646
        %p648 = pneg %p183
        %p649 = pneg %p180
        %p650 = scmp.lt.s32.totalorder %s35, 1
        %s651 = scalar_select %p650, %s35, 1
        %s652 = smul.addr %s651, 4
        %s653 = smul.addr %s652, 8
        %s654 = scalar_lea.vmem %s6, %s653
        %p655 = pneg %p209
        %p656 = pneg %p206
        %p657 = scmp.lt.s32.totalorder %s35, 1
        %s658 = scalar_select %p657, %s35, 1
        %s659 = smul.addr %s658, 4
        %s660 = smul.addr %s659, 8
        %s661 = scalar_lea.vmem %s7, %s660
        %p662 = pneg %p235
        %p663 = pneg %p232
        %p664 = scmp.lt.s32.totalorder %s35, 1
        %s665 = scalar_select %p664, %s35, 1
        %s666 = smul.addr %s665, 8
        %s667 = smul.addr %s666, 8
        %s668 = scalar_lea.vmem %s8, %s667
        %p669 = pneg %p261
        %p670 = pneg %p258
        %p671 = scmp.lt.s32.totalorder %s35, 1
        %s672 = scalar_select %p671, %s35, 1
        %s673 = smul.addr %s672, 4
        %s674 = smul.addr %s673, 8
        %s675 = scalar_lea.vmem %s9, %s674
        %p676 = pneg %p287
        %p677 = pneg %p284
        %p678 = scmp.lt.s32.totalorder %s35, 1
        %s679 = scalar_select %p678, %s35, 1
        %s680 = scalar_lea.vmem %s10, %s679
        %p681 = pneg %p313
        %p682 = pneg %p310
        %p683 = scmp.lt.s32.totalorder %s35, 1
        %s684 = scalar_select %p683, %s35, 1
        %s685 = scalar_lea.vmem %s11, %s684
        %p686 = pneg %p339
        %p687 = pneg %p336
        %p688 = pneg %p360
        %p689 = pneg %p357
        %p690 = pneg %p381
        %p691 = pneg %p378
        %p692 = pneg %p402
        %p693 = pneg %p399
        %p694 = pneg %p423
        %p695 = pneg %p420
        %p696 = pneg %p444
        %p697 = pneg %p441
        %p698 = pneg %p465
        %p699 = pneg %p462
        %p700 = pneg %p491
        %p701 = pneg %p488
        %s702 = smul.u32 2, %s34
        %p703 = scmp.lt.s32.totalorder %s702, 1
        %s704 = scalar_select %p703, %s702, 1
        %s705 = smul.addr %s704, 8
        %s706 = scalar_lea.vmem %s0, %s705
        %s707 = smul.u32 2, %s34
        %p708 = scmp.lt.s32.totalorder %s35, 1
        %s709 = scalar_select %p708, %s35, 1
        %s710 = smul.addr %s709, 4
        %s711 = smul.addr %s710, 8
        %s712 = scalar_lea.vmem %s3, %s711
        %p713 = scmp.lt.s32.totalorder %s35, 1
        %s714 = scalar_select %p713, %s35, 1
        %s715 = smul.addr %s714, 4
        %s716 = smul.addr %s715, 8
        %s717 = scalar_lea.vmem %s4, %s716
        %p718 = scmp.lt.s32.totalorder %s35, 1
        %s719 = scalar_select %p718, %s35, 1
        %s720 = smul.addr %s719, 4
        %s721 = smul.addr %s720, 8
        %s722 = scalar_lea.vmem %s5, %s721
        %p723 = scmp.lt.s32.totalorder %s35, 1
        %s724 = scalar_select %p723, %s35, 1
        %s725 = smul.addr %s724, 4
        %s726 = smul.addr %s725, 8
        %s727 = scalar_lea.vmem %s6, %s726
        %p728 = scmp.lt.s32.totalorder %s35, 1
        %s729 = scalar_select %p728, %s35, 1
        %s730 = smul.addr %s729, 4
        %s731 = smul.addr %s730, 8
        %s732 = scalar_lea.vmem %s7, %s731
        %p733 = scmp.lt.s32.totalorder %s35, 1
        %s734 = scalar_select %p733, %s35, 1
        %s735 = smul.addr %s734, 8
        %s736 = smul.addr %s735, 8
        %s737 = scalar_lea.vmem %s8, %s736
        %p738 = scmp.lt.s32.totalorder %s35, 1
        %s739 = scalar_select %p738, %s35, 1
        %s740 = smul.addr %s739, 4
        %s741 = smul.addr %s740, 8
        %s742 = scalar_lea.vmem %s9, %s741
        %p743 = scmp.lt.s32.totalorder %s35, 1
        %s744 = scalar_select %p743, %s35, 1
        %s745 = scalar_lea.vmem %s10, %s744
        %p746 = scmp.lt.s32.totalorder %s35, 1
        %s747 = scalar_select %p746, %s35, 1
        %s748 = scalar_lea.vmem %s11, %s747
        %p749 = scmp.eq.s32.totalorder %s35, 0
        // Predicated region
        $region93: #{tpu_custom_call.1} parent=91 // pred_check
          %p750 = pneg %p749
        $region94: #{tpu_custom_call.1} parent=91 // pred_check_branch
          %752 = sbr.rel (%p750) target = $region96
        $region95: #{tpu_custom_call.1} parent=91 // pred_region
          %v753 = vld [vmem:[%s706] sm:$0xff]
          %v754 = vld [vmem:[%s706 + $0x8] sm:$0xff]
          %v755 = vld [vmem:[%s1] sm:$0xf]
          %v756 = vld [vmem:[%s2] sm:$0x1]
          %v758 = vlaneseq
          %v759 = vshrl.u32 %v758, 7
          %v760 = vsub.s32 0, %v759
          %v761 = vrot.slane %v756, %v760
          %vm763 = vcmask 31744
          %v765 = vsel %vm763, %v753, 0
          %v768 = vsel %vm763, %v754, 0
          %vm770 = vcmask 1043456
          %v772 = vsel %vm770, %v755, 0
          %774 = vmatprep.subr.mxu0 0.0
          %775 = vmatpush1.msra.mxu0 0.0
          %776 = vmatprep.subr.mxu0 0.0
          %777 = vmatpush1.msra.mxu0 0.0
          %778 = vmatprep.subr.mxu0 0.0
          %779 = vmatpush1.msra.mxu0 0.0
          %780 = vmatprep.subr.mxu0 0.0
          %781 = vmatpush1.msra.mxu0 0.0
          %782 = vmatprep.subr.mxu0 0.0
          %783 = vmatpush1.msra.mxu0 0.0
          %784 = vmatprep.subr.mxu0 0.0
          %785 = vmatpush1.msra.mxu0 0.0
          %786 = vmatprep.subr.mxu0 0.0
          %787 = vmatpush1.msra.mxu0 0.0
          %788 = vmatprep.subr.mxu0 0.0
          %789 = vmatpush1.msra.mxu0 0.0
          %790 = vmatprep.subr.mxu0 0.0
          %791 = vmatpush1.msra.mxu0 0.0
          %792 = vmatprep.subr.mxu0 0.0
          %793 = vmatpush1.msra.mxu0 0.0
          %794 = vmatprep.subr.mxu0 0.0
          %795 = vmatpush1.msra.mxu0 0.0
          %796 = vmatprep.subr.mxu0 0.0
          %797 = vmatpush1.msra.mxu0 0.0
          %798 = vmatprep.subr.mxu0 0.0
          %799 = vmatpush1.msra.mxu0 0.0
          %800 = vmatprep.subr.mxu0 0.0
          %801 = vmatpush1.msra.mxu0 0.0
          %802 = vmatprep.subr.mxu0 0.0
          %803 = vmatpush1.msra.mxu0 0.0
          %804 = vmatprep.subr.mxu0 0.0
          %805 = vmatpush1.msra.mxu0 %v772
          %806 = vmatprep.subr.mxu0 0.0
          %807 = vmatpush2.msra.mxu0 0.0
          %808 = vmatprep.subr.mxu0 0.0
          %809 = vmatpush2.msra.mxu0 0.0
          %810 = vmatprep.subr.mxu0 0.0
          %811 = vmatpush2.msra.mxu0 0.0
          %812 = vmatprep.subr.mxu0 0.0
          %813 = vmatpush2.msra.mxu0 0.0
          %814 = vmatprep.subr.mxu0 0.0
          %815 = vmatpush2.msra.mxu0 0.0
          %816 = vmatprep.subr.mxu0 0.0
          %817 = vmatpush2.msra.mxu0 0.0
          %818 = vmatprep.subr.mxu0 0.0
          %819 = vmatpush2.msra.mxu0 0.0
          %820 = vmatprep.subr.mxu0 0.0
          %821 = vmatpush2.msra.mxu0 0.0
          %822 = vmatprep.subr.mxu0 0.0
          %823 = vmatpush2.msra.mxu0 0.0
          %824 = vmatprep.subr.mxu0 0.0
          %825 = vmatpush2.msra.mxu0 0.0
          %826 = vmatprep.subr.mxu0 0.0
          %827 = vmatpush2.msra.mxu0 0.0
          %828 = vmatprep.subr.mxu0 0.0
          %829 = vmatpush2.msra.mxu0 0.0
          %830 = vmatprep.subr.mxu0 0.0
          %831 = vmatpush2.msra.mxu0 0.0
          %832 = vmatprep.subr.mxu0 0.0
          %833 = vmatpush2.msra.mxu0 0.0
          %834 = vmatprep.subr.mxu0 0.0
          %835 = vmatpush2.msra.mxu0 0.0
          %836 = vmatprep.subr.mxu0 0.0
          %837 = vmatpush2.msra.mxu0 0.0
          %838 = vmatprep.mubr.f32.mxu0 0.0
          %839 = vmatmul.mubr.f32.gmra.mxu0 %v765
          %v840 = vpop.f32.mrf.mxu0
          %v841 = vadd.f32 %v761, %v840
          %v842 = vpop.f32.mrf.mxu0
          %843 = vmatprep.mubr.f32.mxu0 0.0
          %844 = vmatmul.mubr.f32.gmra.mxu0 %v768
          %v845 = vpop.f32.mrf.mxu0
          %v846 = vadd.f32 %v761, %v845
          %v847 = vpop.f32.mrf.mxu0
          %848 = vdwg.mxu0
          %vm849 = vcmask 261120
          %850 = vst.msk [vmem:[#allocation2] sm:$0xff] %vm849, %v841
          %851 = vst.msk [vmem:[#allocation2 + $0x8] sm:$0xff] %vm849, %v846
        $region96: #{tpu_custom_call.1} parent=91 // pred_fallthru
          _
        %v852 = vld [vmem:[#allocation2] sm:$0xff]
        %v853 = vld [vmem:[#allocation2 + $0x8] sm:$0xff]
        %v854 = vld [vmem:[%s13] sm:$0x1]
        %v855 = vld [vmem:[%s13 + $0x1] sm:$0x1]
        %v856 = vld [vmem:[%s13 + $0x2] sm:$0x1]
        %v857 = vld [vmem:[%s13 + $0x3] sm:$0x1]
        %v858 = vld [vmem:[%s13 + $0x4] sm:$0x1]
        %v859 = vld [vmem:[%s13 + $0x5] sm:$0x1]
        %v860 = vld [vmem:[%s13 + $0x6] sm:$0x1]
        %v861 = vld [vmem:[%s13 + $0x7] sm:$0x1]
        %v862 = vld [vmem:[%s13 + $0x8] sm:$0x1]
        %v863 = vld [vmem:[%s13 + $0x9] sm:$0x1]
        %v864 = vld [vmem:[%s13 + $0xa] sm:$0x1]
        %v865 = vld [vmem:[%s13 + $0xb] sm:$0x1]
        %v866 = vld [vmem:[%s13 + $0xc] sm:$0x1]
        %v867 = vld [vmem:[%s13 + $0xd] sm:$0x1]
        %v868 = vld [vmem:[%s13 + $0xe] sm:$0x1]
        %v869 = vld [vmem:[%s13 + $0xf] sm:$0x1]
        %v870 = vld [vmem:[%s14] sm:$0x1]
        %v871 = vld [vmem:[%s14 + $0x1] sm:$0x1]
        %v872 = vld [vmem:[%s14 + $0x2] sm:$0x1]
        %v873 = vld [vmem:[%s14 + $0x3] sm:$0x1]
        %v874 = vld [vmem:[%s14 + $0x4] sm:$0x1]
        %v875 = vld [vmem:[%s14 + $0x5] sm:$0x1]
        %v876 = vld [vmem:[%s14 + $0x6] sm:$0x1]
        %v877 = vld [vmem:[%s14 + $0x7] sm:$0x1]
        %v878 = vld [vmem:[%s14 + $0x8] sm:$0x1]
        %v879 = vld [vmem:[%s14 + $0x9] sm:$0x1]
        %v880 = vld [vmem:[%s14 + $0xa] sm:$0x1]
        %v881 = vld [vmem:[%s14 + $0xb] sm:$0x1]
        %v882 = vld [vmem:[%s14 + $0xc] sm:$0x1]
        %v883 = vld [vmem:[%s14 + $0xd] sm:$0x1]
        %v884 = vld [vmem:[%s14 + $0xe] sm:$0x1]
        %v885 = vld [vmem:[%s14 + $0xf] sm:$0x1]
        %v886 = vld [vmem:[%s745] sm:$0x1]
        %v887 = vmul.f32 %v852, %v852
        %v888 = vmul.f32 %v853, %v853
        %vm889 = vcmask 261120
        %v890 = vsel %vm889, %v887, 0.0
        %891 = vadd.xlane.f32.xlu0 %v890
        %v892 = vpop.xlane.xlu0 %891
        %v893 = vsel %vm889, %v888, 0.0
        %894 = vadd.xlane.f32.xlu0 %v893
        %v895 = vpop.xlane.xlu0 %894
        %v896 = vrcp.pop 32.0
        %v897 = vmul.f32 %v892, %v896
        %v898 = vmul.f32 %v895, %v896
        %v899 = vadd.f32 %v897, 1e-06
        %v900 = vadd.f32 %v898, 1e-06
        %v901 = vrsqrt.pop %v899
        %v902 = vrsqrt.pop %v900
        %v903 = vmul.f32 %v852, %v901
        %v904 = vmul.f32 %v853, %v902
        %v906 = vlaneseq
        %v907 = vshrl.u32 %v906, 7
        %v908 = vsub.s32 0, %v907
        %v909 = vrot.slane %v886, %v908
        %v911 = vmul.f32 %v903, %v909
        %v912 = vmul.f32 %v904, %v909
        %v913 = vld [vmem:[%s712] sm:$0xff]
        %v914 = vld [vmem:[%s712 + $0x8] sm:$0xff]
        %v915 = vld [vmem:[%s712 + $0x10] sm:$0xff]
        %v916 = vld [vmem:[%s712 + $0x18] sm:$0xff]
        %v918 = vsel %vm889, %v911, 0
        %v921 = vsel %vm889, %v912, 0
        %923 = vmatprep.subr.mxu0 0.0
        %924 = vmatpush1.msra.mxu0 0.0
        %925 = vmatprep.subr.mxu0 0.0
        %926 = vmatpush1.msra.mxu0 0.0
        %927 = vmatprep.subr.mxu0 0.0
        %928 = vmatpush1.msra.mxu0 0.0
        %929 = vmatprep.subr.mxu0 0.0
        %930 = vmatpush1.msra.mxu0 0.0
        %931 = vmatprep.subr.mxu0 0.0
        %932 = vmatpush1.msra.mxu0 0.0
        %933 = vmatprep.subr.mxu0 0.0
        %934 = vmatpush1.msra.mxu0 0.0
        %935 = vmatprep.subr.mxu0 0.0
        %936 = vmatpush1.msra.mxu0 0.0
        %937 = vmatprep.subr.mxu0 0.0
        %938 = vmatpush1.msra.mxu0 0.0
        %939 = vmatprep.subr.mxu0 0.0
        %940 = vmatpush1.msra.mxu0 0.0
        %941 = vmatprep.subr.mxu0 0.0
        %942 = vmatpush1.msra.mxu0 0.0
        %943 = vmatprep.subr.mxu0 0.0
        %944 = vmatpush1.msra.mxu0 0.0
        %945 = vmatprep.subr.mxu0 0.0
        %946 = vmatpush1.msra.mxu0 0.0
        %947 = vmatprep.subr.mxu0 0.0
        %948 = vmatpush1.msra.mxu0 %v916
        %949 = vmatprep.subr.mxu0 0.0
        %950 = vmatpush1.msra.mxu0 %v915
        %951 = vmatprep.subr.mxu0 0.0
        %952 = vmatpush1.msra.mxu0 %v914
        %953 = vmatprep.subr.mxu0 0.0
        %954 = vmatpush1.msra.mxu0 %v913
        %955 = vmatprep.subr.mxu0 0.0
        %956 = vmatpush2.msra.mxu0 0.0
        %957 = vmatprep.subr.mxu0 0.0
        %958 = vmatpush2.msra.mxu0 0.0
        %959 = vmatprep.subr.mxu0 0.0
        %960 = vmatpush2.msra.mxu0 0.0
        %961 = vmatprep.subr.mxu0 0.0
        %962 = vmatpush2.msra.mxu0 0.0
        %963 = vmatprep.subr.mxu0 0.0
        %964 = vmatpush2.msra.mxu0 0.0
        %965 = vmatprep.subr.mxu0 0.0
        %966 = vmatpush2.msra.mxu0 0.0
        %967 = vmatprep.subr.mxu0 0.0
        %968 = vmatpush2.msra.mxu0 0.0
        %969 = vmatprep.subr.mxu0 0.0
        %970 = vmatpush2.msra.mxu0 0.0
        %971 = vmatprep.subr.mxu0 0.0
        %972 = vmatpush2.msra.mxu0 0.0
        %973 = vmatprep.subr.mxu0 0.0
        %974 = vmatpush2.msra.mxu0 0.0
        %975 = vmatprep.subr.mxu0 0.0
        %976 = vmatpush2.msra.mxu0 0.0
        %977 = vmatprep.subr.mxu0 0.0
        %978 = vmatpush2.msra.mxu0 0.0
        %979 = vmatprep.subr.mxu0 0.0
        %980 = vmatpush2.msra.mxu0 0.0
        %981 = vmatprep.subr.mxu0 0.0
        %982 = vmatpush2.msra.mxu0 0.0
        %983 = vmatprep.subr.mxu0 0.0
        %984 = vmatpush2.msra.mxu0 0.0
        %985 = vmatprep.subr.mxu0 0.0
        %986 = vmatpush2.msra.mxu0 0.0
        %987 = vmatprep.mubr.f32.mxu0 0.0
        %988 = vmatmul.mubr.f32.gmra.mxu0 %v918
        %v989 = vpop.f32.mrf.mxu0
        %v990 = vadd.f32 0.0, %v989
        %v991 = vpop.f32.mrf.mxu0
        %992 = vmatprep.mubr.f32.mxu0 0.0
        %993 = vmatmul.mubr.f32.gmra.mxu0 %v921
        %v994 = vpop.f32.mrf.mxu0
        %v995 = vadd.f32 0.0, %v994
        %v996 = vpop.f32.mrf.mxu0
        %997 = vdwg.mxu0
        %1000 = vrot.lane.b32.xlu0 %v990, 120
        %v1001 = vpop.permute.xlu0 %1000
        %1002 = vrot.lane.b32.xlu0 %v995, 120
        %v1003 = vpop.permute.xlu0 %1002
        %1006 = vrot.lane.b32.xlu0 %v990, 112
        %v1007 = vpop.permute.xlu0 %1006
        %1008 = vrot.lane.b32.xlu0 %v995, 112
        %v1009 = vpop.permute.xlu0 %1008
        %1012 = vrot.lane.b32.xlu0 %v990, 104
        %v1013 = vpop.permute.xlu0 %1012
        %1014 = vrot.lane.b32.xlu0 %v995, 104
        %v1015 = vpop.permute.xlu0 %1014
        %v1018 = vcombine.low %v990, %v1007
        %v1019 = vcombine.high %v990, %v1007
        %v1021 = vunpack.c.l.s4 1983009808
        %v1022 = vunpack.c.0.s8 %v1021
        %v1023 = vlaneseq
        %v1024 = vshrl.u32 %v1023, 7
        %v1025 = vsub.s32 %v1022, %v1024
        %v1026 = vrot.slane %v1018, %v1025
        %v1028 = vunpack.c.l.s4 1983009808
        %v1029 = vunpack.c.0.s8 %v1028
        %v1030 = vlaneseq
        %v1031 = vshrl.u32 %v1030, 7
        %v1032 = vsub.s32 %v1029, %v1031
        %v1033 = vrot.slane %v1019, %v1032
        %v1034 = vcombine.low %v1001, %v1013
        %v1035 = vcombine.high %v1001, %v1013
        %v1037 = vunpack.c.l.s4 1983009808
        %v1038 = vunpack.c.0.s8 %v1037
        %v1039 = vlaneseq
        %v1040 = vshrl.u32 %v1039, 7
        %v1041 = vsub.s32 %v1038, %v1040
        %v1042 = vrot.slane %v1034, %v1041
        %v1044 = vunpack.c.l.s4 1983009808
        %v1045 = vunpack.c.0.s8 %v1044
        %v1046 = vlaneseq
        %v1047 = vshrl.u32 %v1046, 7
        %v1048 = vsub.s32 %v1045, %v1047
        %v1049 = vrot.slane %v1035, %v1048
        %v1050 = vcombine.low %v1026, %v1042
        %v1051 = vcombine.high %v1026, %v1042
        %v1053 = vunpack.c.l.s4 1934713408
        %v1054 = vunpack.c.0.s8 %v1053
        %v1055 = vlaneseq
        %v1056 = vshrl.u32 %v1055, 7
        %v1057 = vsub.s32 %v1054, %v1056
        %v1058 = vrot.slane %v1050, %v1057
        %v1060 = vunpack.c.l.s4 1934713408
        %v1061 = vunpack.c.0.s8 %v1060
        %v1062 = vlaneseq
        %v1063 = vshrl.u32 %v1062, 7
        %v1064 = vsub.s32 %v1061, %v1063
        %v1065 = vrot.slane %v1051, %v1064
        %v1066 = vcombine.low %v1033, %v1049
        %v1067 = vcombine.high %v1033, %v1049
        %v1069 = vunpack.c.l.s4 1934713408
        %v1070 = vunpack.c.0.s8 %v1069
        %v1071 = vlaneseq
        %v1072 = vshrl.u32 %v1071, 7
        %v1073 = vsub.s32 %v1070, %v1072
        %v1074 = vrot.slane %v1066, %v1073
        %v1076 = vunpack.c.l.s4 1934713408
        %v1077 = vunpack.c.0.s8 %v1076
        %v1078 = vlaneseq
        %v1079 = vshrl.u32 %v1078, 7
        %v1080 = vsub.s32 %v1077, %v1079
        %v1081 = vrot.slane %v1067, %v1080
        %v1082 = vcombine.high %v1058, 0.0
        %v1083 = vcombine.high %v1065, 0.0
        %v1084 = vcombine.high %v1074, 0.0
        %v1085 = vcombine.high %v1081, 0.0
        %v1086 = vcombine.low %v995, %v1009
        %v1087 = vcombine.high %v995, %v1009
        %v1089 = vunpack.c.l.s4 1983009808
        %v1090 = vunpack.c.0.s8 %v1089
        %v1091 = vlaneseq
        %v1092 = vshrl.u32 %v1091, 7
        %v1093 = vsub.s32 %v1090, %v1092
        %v1094 = vrot.slane %v1086, %v1093
        %v1096 = vunpack.c.l.s4 1983009808
        %v1097 = vunpack.c.0.s8 %v1096
        %v1098 = vlaneseq
        %v1099 = vshrl.u32 %v1098, 7
        %v1100 = vsub.s32 %v1097, %v1099
        %v1101 = vrot.slane %v1087, %v1100
        %v1102 = vcombine.low %v1003, %v1015
        %v1103 = vcombine.high %v1003, %v1015
        %v1105 = vunpack.c.l.s4 1983009808
        %v1106 = vunpack.c.0.s8 %v1105
        %v1107 = vlaneseq
        %v1108 = vshrl.u32 %v1107, 7
        %v1109 = vsub.s32 %v1106, %v1108
        %v1110 = vrot.slane %v1102, %v1109
        %v1112 = vunpack.c.l.s4 1983009808
        %v1113 = vunpack.c.0.s8 %v1112
        %v1114 = vlaneseq
        %v1115 = vshrl.u32 %v1114, 7
        %v1116 = vsub.s32 %v1113, %v1115
        %v1117 = vrot.slane %v1103, %v1116
        %v1118 = vcombine.low %v1094, %v1110
        %v1119 = vcombine.high %v1094, %v1110
        %v1121 = vunpack.c.l.s4 1934713408
        %v1122 = vunpack.c.0.s8 %v1121
        %v1123 = vlaneseq
        %v1124 = vshrl.u32 %v1123, 7
        %v1125 = vsub.s32 %v1122, %v1124
        %v1126 = vrot.slane %v1118, %v1125
        %v1128 = vunpack.c.l.s4 1934713408
        %v1129 = vunpack.c.0.s8 %v1128
        %v1130 = vlaneseq
        %v1131 = vshrl.u32 %v1130, 7
        %v1132 = vsub.s32 %v1129, %v1131
        %v1133 = vrot.slane %v1119, %v1132
        %v1134 = vcombine.low %v1101, %v1117
        %v1135 = vcombine.high %v1101, %v1117
        %v1137 = vunpack.c.l.s4 1934713408
        %v1138 = vunpack.c.0.s8 %v1137
        %v1139 = vlaneseq
        %v1140 = vshrl.u32 %v1139, 7
        %v1141 = vsub.s32 %v1138, %v1140
        %v1142 = vrot.slane %v1134, %v1141
        %v1144 = vunpack.c.l.s4 1934713408
        %v1145 = vunpack.c.0.s8 %v1144
        %v1146 = vlaneseq
        %v1147 = vshrl.u32 %v1146, 7
        %v1148 = vsub.s32 %v1145, %v1147
        %v1149 = vrot.slane %v1135, %v1148
        %v1150 = vcombine.high %v1126, 0.0
        %v1151 = vcombine.high %v1133, 0.0
        %v1152 = vcombine.high %v1142, 0.0
        %v1153 = vcombine.high %v1149, 0.0
        %v1154 = vld [vmem:[%s717] sm:$0xff]
        %v1155 = vld [vmem:[%s717 + $0x8] sm:$0xff]
        %v1156 = vld [vmem:[%s717 + $0x10] sm:$0xff]
        %v1157 = vld [vmem:[%s717 + $0x18] sm:$0xff]
        %1158 = vmatprep.subr.mxu0 0.0
        %1159 = vmatpush1.msra.mxu0 0.0
        %1160 = vmatprep.subr.mxu0 0.0
        %1161 = vmatpush1.msra.mxu0 0.0
        %1162 = vmatprep.subr.mxu0 0.0
        %1163 = vmatpush1.msra.mxu0 0.0
        %1164 = vmatprep.subr.mxu0 0.0
        %1165 = vmatpush1.msra.mxu0 0.0
        %1166 = vmatprep.subr.mxu0 0.0
        %1167 = vmatpush1.msra.mxu0 0.0
        %1168 = vmatprep.subr.mxu0 0.0
        %1169 = vmatpush1.msra.mxu0 0.0
        %1170 = vmatprep.subr.mxu0 0.0
        %1171 = vmatpush1.msra.mxu0 0.0
        %1172 = vmatprep.subr.mxu0 0.0
        %1173 = vmatpush1.msra.mxu0 0.0
        %1174 = vmatprep.subr.mxu0 0.0
        %1175 = vmatpush1.msra.mxu0 0.0
        %1176 = vmatprep.subr.mxu0 0.0
        %1177 = vmatpush1.msra.mxu0 0.0
        %1178 = vmatprep.subr.mxu0 0.0
        %1179 = vmatpush1.msra.mxu0 0.0
        %1180 = vmatprep.subr.mxu0 0.0
        %1181 = vmatpush1.msra.mxu0 0.0
        %1182 = vmatprep.subr.mxu0 0.0
        %1183 = vmatpush1.msra.mxu0 %v1157
        %1184 = vmatprep.subr.mxu0 0.0
        %1185 = vmatpush1.msra.mxu0 %v1156
        %1186 = vmatprep.subr.mxu0 0.0
        %1187 = vmatpush1.msra.mxu0 %v1155
        %1188 = vmatprep.subr.mxu0 0.0
        %1189 = vmatpush1.msra.mxu0 %v1154
        %1190 = vmatprep.subr.mxu0 0.0
        %1191 = vmatpush2.msra.mxu0 0.0
        %1192 = vmatprep.subr.mxu0 0.0
        %1193 = vmatpush2.msra.mxu0 0.0
        %1194 = vmatprep.subr.mxu0 0.0
        %1195 = vmatpush2.msra.mxu0 0.0
        %1196 = vmatprep.subr.mxu0 0.0
        %1197 = vmatpush2.msra.mxu0 0.0
        %1198 = vmatprep.subr.mxu0 0.0
        %1199 = vmatpush2.msra.mxu0 0.0
        %1200 = vmatprep.subr.mxu0 0.0
        %1201 = vmatpush2.msra.mxu0 0.0
        %1202 = vmatprep.subr.mxu0 0.0
        %1203 = vmatpush2.msra.mxu0 0.0
        %1204 = vmatprep.subr.mxu0 0.0
        %1205 = vmatpush2.msra.mxu0 0.0
        %1206 = vmatprep.subr.mxu0 0.0
        %1207 = vmatpush2.msra.mxu0 0.0
        %1208 = vmatprep.subr.mxu0 0.0
        %1209 = vmatpush2.msra.mxu0 0.0
        %1210 = vmatprep.subr.mxu0 0.0
        %1211 = vmatpush2.msra.mxu0 0.0
        %1212 = vmatprep.subr.mxu0 0.0
        %1213 = vmatpush2.msra.mxu0 0.0
        %1214 = vmatprep.subr.mxu0 0.0
        %1215 = vmatpush2.msra.mxu0 0.0
        %1216 = vmatprep.subr.mxu0 0.0
        %1217 = vmatpush2.msra.mxu0 0.0
        %1218 = vmatprep.subr.mxu0 0.0
        %1219 = vmatpush2.msra.mxu0 0.0
        %1220 = vmatprep.subr.mxu0 0.0
        %1221 = vmatpush2.msra.mxu0 0.0
        %1222 = vmatprep.mubr.f32.mxu0 0.0
        %1223 = vmatmul.mubr.f32.gmra.mxu0 %v918
        %v1224 = vpop.f32.mrf.mxu0
        %v1225 = vadd.f32 0.0, %v1224
        %v1226 = vpop.f32.mrf.mxu0
        %1227 = vmatprep.mubr.f32.mxu0 0.0
        %1228 = vmatmul.mubr.f32.gmra.mxu0 %v921
        %v1229 = vpop.f32.mrf.mxu0
        %v1230 = vadd.f32 0.0, %v1229
        %v1231 = vpop.f32.mrf.mxu0
        %1232 = vdwg.mxu0
        %1235 = vrot.lane.b32.xlu0 %v1225, 120
        %v1236 = vpop.permute.xlu0 %1235
        %1237 = vrot.lane.b32.xlu0 %v1230, 120
        %v1238 = vpop.permute.xlu0 %1237
        %v1241 = vcombine.high %v1225, 0.0
        %v1243 = vunpack.c.l.s4 1983009808
        %v1244 = vunpack.c.0.s8 %v1243
        %v1245 = vlaneseq
        %v1246 = vshrl.u32 %v1245, 7
        %v1247 = vsub.s32 %v1244, %v1246
        %v1248 = vrot.slane %v1225, %v1247
        %v1250 = vunpack.c.l.s4 1983009808
        %v1251 = vunpack.c.0.s8 %v1250
        %v1252 = vlaneseq
        %v1253 = vshrl.u32 %v1252, 7
        %v1254 = vsub.s32 %v1251, %v1253
        %v1255 = vrot.slane %v1241, %v1254
        %v1256 = vcombine.high %v1236, 0.0
        %v1258 = vunpack.c.l.s4 1983009808
        %v1259 = vunpack.c.0.s8 %v1258
        %v1260 = vlaneseq
        %v1261 = vshrl.u32 %v1260, 7
        %v1262 = vsub.s32 %v1259, %v1261
        %v1263 = vrot.slane %v1236, %v1262
        %v1265 = vunpack.c.l.s4 1983009808
        %v1266 = vunpack.c.0.s8 %v1265
        %v1267 = vlaneseq
        %v1268 = vshrl.u32 %v1267, 7
        %v1269 = vsub.s32 %v1266, %v1268
        %v1270 = vrot.slane %v1256, %v1269
        %v1271 = vcombine.low %v1248, %v1263
        %v1272 = vcombine.high %v1248, %v1263
        %v1274 = vunpack.c.l.s4 1934713408
        %v1275 = vunpack.c.0.s8 %v1274
        %v1276 = vlaneseq
        %v1277 = vshrl.u32 %v1276, 7
        %v1278 = vsub.s32 %v1275, %v1277
        %v1279 = vrot.slane %v1271, %v1278
        %v1281 = vunpack.c.l.s4 1934713408
        %v1282 = vunpack.c.0.s8 %v1281
        %v1283 = vlaneseq
        %v1284 = vshrl.u32 %v1283, 7
        %v1285 = vsub.s32 %v1282, %v1284
        %v1286 = vrot.slane %v1272, %v1285
        %v1287 = vcombine.low %v1255, %v1270
        %v1288 = vcombine.high %v1255, %v1270
        %v1290 = vunpack.c.l.s4 1934713408
        %v1291 = vunpack.c.0.s8 %v1290
        %v1292 = vlaneseq
        %v1293 = vshrl.u32 %v1292, 7
        %v1294 = vsub.s32 %v1291, %v1293
        %v1295 = vrot.slane %v1287, %v1294
        %v1297 = vunpack.c.l.s4 1934713408
        %v1298 = vunpack.c.0.s8 %v1297
        %v1299 = vlaneseq
        %v1300 = vshrl.u32 %v1299, 7
        %v1301 = vsub.s32 %v1298, %v1300
        %v1302 = vrot.slane %v1288, %v1301
        %v1303 = vcombine.high %v1279, 0.0
        %v1304 = vcombine.high %v1286, 0.0
        %v1305 = vcombine.high %v1295, 0.0
        %v1306 = vcombine.high %v1302, 0.0
        %v1307 = vcombine.high %v1230, 0.0
        %v1309 = vunpack.c.l.s4 1983009808
        %v1310 = vunpack.c.0.s8 %v1309
        %v1311 = vlaneseq
        %v1312 = vshrl.u32 %v1311, 7
        %v1313 = vsub.s32 %v1310, %v1312
        %v1314 = vrot.slane %v1230, %v1313
        %v1316 = vunpack.c.l.s4 1983009808
        %v1317 = vunpack.c.0.s8 %v1316
        %v1318 = vlaneseq
        %v1319 = vshrl.u32 %v1318, 7
        %v1320 = vsub.s32 %v1317, %v1319
        %v1321 = vrot.slane %v1307, %v1320
        %v1322 = vcombine.high %v1238, 0.0
        %v1324 = vunpack.c.l.s4 1983009808
        %v1325 = vunpack.c.0.s8 %v1324
        %v1326 = vlaneseq
        %v1327 = vshrl.u32 %v1326, 7
        %v1328 = vsub.s32 %v1325, %v1327
        %v1329 = vrot.slane %v1238, %v1328
        %v1331 = vunpack.c.l.s4 1983009808
        %v1332 = vunpack.c.0.s8 %v1331
        %v1333 = vlaneseq
        %v1334 = vshrl.u32 %v1333, 7
        %v1335 = vsub.s32 %v1332, %v1334
        %v1336 = vrot.slane %v1322, %v1335
        %v1337 = vcombine.low %v1314, %v1329
        %v1338 = vcombine.high %v1314, %v1329
        %v1340 = vunpack.c.l.s4 1934713408
        %v1341 = vunpack.c.0.s8 %v1340
        %v1342 = vlaneseq
        %v1343 = vshrl.u32 %v1342, 7
        %v1344 = vsub.s32 %v1341, %v1343
        %v1345 = vrot.slane %v1337, %v1344
        %v1347 = vunpack.c.l.s4 1934713408
        %v1348 = vunpack.c.0.s8 %v1347
        %v1349 = vlaneseq
        %v1350 = vshrl.u32 %v1349, 7
        %v1351 = vsub.s32 %v1348, %v1350
        %v1352 = vrot.slane %v1338, %v1351
        %v1353 = vcombine.low %v1321, %v1336
        %v1354 = vcombine.high %v1321, %v1336
        %v1356 = vunpack.c.l.s4 1934713408
        %v1357 = vunpack.c.0.s8 %v1356
        %v1358 = vlaneseq
        %v1359 = vshrl.u32 %v1358, 7
        %v1360 = vsub.s32 %v1357, %v1359
        %v1361 = vrot.slane %v1353, %v1360
        %v1363 = vunpack.c.l.s4 1934713408
        %v1364 = vunpack.c.0.s8 %v1363
        %v1365 = vlaneseq
        %v1366 = vshrl.u32 %v1365, 7
        %v1367 = vsub.s32 %v1364, %v1366
        %v1368 = vrot.slane %v1354, %v1367
        %v1369 = vcombine.high %v1345, 0.0
        %v1370 = vcombine.high %v1352, 0.0
        %v1371 = vcombine.high %v1361, 0.0
        %v1372 = vcombine.high %v1368, 0.0
        %v1373 = vld [vmem:[%s722] sm:$0xff]
        %v1374 = vld [vmem:[%s722 + $0x8] sm:$0xff]
        %v1375 = vld [vmem:[%s722 + $0x10] sm:$0xff]
        %v1376 = vld [vmem:[%s722 + $0x18] sm:$0xff]
        %1377 = vmatprep.subr.mxu0 0.0
        %1378 = vmatpush1.msra.mxu0 0.0
        %1379 = vmatprep.subr.mxu0 0.0
        %1380 = vmatpush1.msra.mxu0 0.0
        %1381 = vmatprep.subr.mxu0 0.0
        %1382 = vmatpush1.msra.mxu0 0.0
        %1383 = vmatprep.subr.mxu0 0.0
        %1384 = vmatpush1.msra.mxu0 0.0
        %1385 = vmatprep.subr.mxu0 0.0
        %1386 = vmatpush1.msra.mxu0 0.0
        %1387 = vmatprep.subr.mxu0 0.0
        %1388 = vmatpush1.msra.mxu0 0.0
        %1389 = vmatprep.subr.mxu0 0.0
        %1390 = vmatpush1.msra.mxu0 0.0
        %1391 = vmatprep.subr.mxu0 0.0
        %1392 = vmatpush1.msra.mxu0 0.0
        %1393 = vmatprep.subr.mxu0 0.0
        %1394 = vmatpush1.msra.mxu0 0.0
        %1395 = vmatprep.subr.mxu0 0.0
        %1396 = vmatpush1.msra.mxu0 0.0
        %1397 = vmatprep.subr.mxu0 0.0
        %1398 = vmatpush1.msra.mxu0 0.0
        %1399 = vmatprep.subr.mxu0 0.0
        %1400 = vmatpush1.msra.mxu0 0.0
        %1401 = vmatprep.subr.mxu0 0.0
        %1402 = vmatpush1.msra.mxu0 %v1376
        %1403 = vmatprep.subr.mxu0 0.0
        %1404 = vmatpush1.msra.mxu0 %v1375
        %1405 = vmatprep.subr.mxu0 0.0
        %1406 = vmatpush1.msra.mxu0 %v1374
        %1407 = vmatprep.subr.mxu0 0.0
        %1408 = vmatpush1.msra.mxu0 %v1373
        %1409 = vmatprep.subr.mxu0 0.0
        %1410 = vmatpush2.msra.mxu0 0.0
        %1411 = vmatprep.subr.mxu0 0.0
        %1412 = vmatpush2.msra.mxu0 0.0
        %1413 = vmatprep.subr.mxu0 0.0
        %1414 = vmatpush2.msra.mxu0 0.0
        %1415 = vmatprep.subr.mxu0 0.0
        %1416 = vmatpush2.msra.mxu0 0.0
        %1417 = vmatprep.subr.mxu0 0.0
        %1418 = vmatpush2.msra.mxu0 0.0
        %1419 = vmatprep.subr.mxu0 0.0
        %1420 = vmatpush2.msra.mxu0 0.0
        %1421 = vmatprep.subr.mxu0 0.0
        %1422 = vmatpush2.msra.mxu0 0.0
        %1423 = vmatprep.subr.mxu0 0.0
        %1424 = vmatpush2.msra.mxu0 0.0
        %1425 = vmatprep.subr.mxu0 0.0
        %1426 = vmatpush2.msra.mxu0 0.0
        %1427 = vmatprep.subr.mxu0 0.0
        %1428 = vmatpush2.msra.mxu0 0.0
        %1429 = vmatprep.subr.mxu0 0.0
        %1430 = vmatpush2.msra.mxu0 0.0
        %1431 = vmatprep.subr.mxu0 0.0
        %1432 = vmatpush2.msra.mxu0 0.0
        %1433 = vmatprep.subr.mxu0 0.0
        %1434 = vmatpush2.msra.mxu0 0.0
        %1435 = vmatprep.subr.mxu0 0.0
        %1436 = vmatpush2.msra.mxu0 0.0
        %1437 = vmatprep.subr.mxu0 0.0
        %1438 = vmatpush2.msra.mxu0 0.0
        %1439 = vmatprep.subr.mxu0 0.0
        %1440 = vmatpush2.msra.mxu0 0.0
        %1441 = vmatprep.mubr.f32.mxu0 0.0
        %1442 = vmatmul.mubr.f32.gmra.mxu0 %v918
        %v1443 = vpop.f32.mrf.mxu0
        %v1444 = vadd.f32 0.0, %v1443
        %v1445 = vpop.f32.mrf.mxu0
        %1446 = vmatprep.mubr.f32.mxu0 0.0
        %1447 = vmatmul.mubr.f32.gmra.mxu0 %v921
        %v1448 = vpop.f32.mrf.mxu0
        %v1449 = vadd.f32 0.0, %v1448
        %v1450 = vpop.f32.mrf.mxu0
        %1451 = vdwg.mxu0
        %1454 = vrot.lane.b32.xlu0 %v1444, 120
        %v1455 = vpop.permute.xlu0 %1454
        %1456 = vrot.lane.b32.xlu0 %v1449, 120
        %v1457 = vpop.permute.xlu0 %1456
        %v1460 = vcombine.high %v1444, 0.0
        %v1462 = vunpack.c.l.s4 1983009808
        %v1463 = vunpack.c.0.s8 %v1462
        %v1464 = vlaneseq
        %v1465 = vshrl.u32 %v1464, 7
        %v1466 = vsub.s32 %v1463, %v1465
        %v1467 = vrot.slane %v1444, %v1466
        %v1469 = vunpack.c.l.s4 1983009808
        %v1470 = vunpack.c.0.s8 %v1469
        %v1471 = vlaneseq
        %v1472 = vshrl.u32 %v1471, 7
        %v1473 = vsub.s32 %v1470, %v1472
        %v1474 = vrot.slane %v1460, %v1473
        %v1475 = vcombine.high %v1455, 0.0
        %v1477 = vunpack.c.l.s4 1983009808
        %v1478 = vunpack.c.0.s8 %v1477
        %v1479 = vlaneseq
        %v1480 = vshrl.u32 %v1479, 7
        %v1481 = vsub.s32 %v1478, %v1480
        %v1482 = vrot.slane %v1455, %v1481
        %v1484 = vunpack.c.l.s4 1983009808
        %v1485 = vunpack.c.0.s8 %v1484
        %v1486 = vlaneseq
        %v1487 = vshrl.u32 %v1486, 7
        %v1488 = vsub.s32 %v1485, %v1487
        %v1489 = vrot.slane %v1475, %v1488
        %v1490 = vcombine.low %v1467, %v1482
        %v1491 = vcombine.high %v1467, %v1482
        %v1493 = vunpack.c.l.s4 1934713408
        %v1494 = vunpack.c.0.s8 %v1493
        %v1495 = vlaneseq
        %v1496 = vshrl.u32 %v1495, 7
        %v1497 = vsub.s32 %v1494, %v1496
        %v1498 = vrot.slane %v1490, %v1497
        %v1500 = vunpack.c.l.s4 1934713408
        %v1501 = vunpack.c.0.s8 %v1500
        %v1502 = vlaneseq
        %v1503 = vshrl.u32 %v1502, 7
        %v1504 = vsub.s32 %v1501, %v1503
        %v1505 = vrot.slane %v1491, %v1504
        %v1506 = vcombine.low %v1474, %v1489
        %v1507 = vcombine.high %v1474, %v1489
        %v1509 = vunpack.c.l.s4 1934713408
        %v1510 = vunpack.c.0.s8 %v1509
        %v1511 = vlaneseq
        %v1512 = vshrl.u32 %v1511, 7
        %v1513 = vsub.s32 %v1510, %v1512
        %v1514 = vrot.slane %v1506, %v1513
        %v1516 = vunpack.c.l.s4 1934713408
        %v1517 = vunpack.c.0.s8 %v1516
        %v1518 = vlaneseq
        %v1519 = vshrl.u32 %v1518, 7
        %v1520 = vsub.s32 %v1517, %v1519
        %v1521 = vrot.slane %v1507, %v1520
        %v1522 = vcombine.high %v1498, 0.0
        %v1523 = vcombine.high %v1505, 0.0
        %v1524 = vcombine.high %v1514, 0.0
        %v1525 = vcombine.high %v1521, 0.0
        %v1526 = vcombine.high %v1449, 0.0
        %v1528 = vunpack.c.l.s4 1983009808
        %v1529 = vunpack.c.0.s8 %v1528
        %v1530 = vlaneseq
        %v1531 = vshrl.u32 %v1530, 7
        %v1532 = vsub.s32 %v1529, %v1531
        %v1533 = vrot.slane %v1449, %v1532
        %v1535 = vunpack.c.l.s4 1983009808
        %v1536 = vunpack.c.0.s8 %v1535
        %v1537 = vlaneseq
        %v1538 = vshrl.u32 %v1537, 7
        %v1539 = vsub.s32 %v1536, %v1538
        %v1540 = vrot.slane %v1526, %v1539
        %v1541 = vcombine.high %v1457, 0.0
        %v1543 = vunpack.c.l.s4 1983009808
        %v1544 = vunpack.c.0.s8 %v1543
        %v1545 = vlaneseq
        %v1546 = vshrl.u32 %v1545, 7
        %v1547 = vsub.s32 %v1544, %v1546
        %v1548 = vrot.slane %v1457, %v1547
        %v1550 = vunpack.c.l.s4 1983009808
        %v1551 = vunpack.c.0.s8 %v1550
        %v1552 = vlaneseq
        %v1553 = vshrl.u32 %v1552, 7
        %v1554 = vsub.s32 %v1551, %v1553
        %v1555 = vrot.slane %v1541, %v1554
        %v1556 = vcombine.low %v1533, %v1548
        %v1557 = vcombine.high %v1533, %v1548
        %v1559 = vunpack.c.l.s4 1934713408
        %v1560 = vunpack.c.0.s8 %v1559
        %v1561 = vlaneseq
        %v1562 = vshrl.u32 %v1561, 7
        %v1563 = vsub.s32 %v1560, %v1562
        %v1564 = vrot.slane %v1556, %v1563
        %v1566 = vunpack.c.l.s4 1934713408
        %v1567 = vunpack.c.0.s8 %v1566
        %v1568 = vlaneseq
        %v1569 = vshrl.u32 %v1568, 7
        %v1570 = vsub.s32 %v1567, %v1569
        %v1571 = vrot.slane %v1557, %v1570
        %v1572 = vcombine.low %v1540, %v1555
        %v1573 = vcombine.high %v1540, %v1555
        %v1575 = vunpack.c.l.s4 1934713408
        %v1576 = vunpack.c.0.s8 %v1575
        %v1577 = vlaneseq
        %v1578 = vshrl.u32 %v1577, 7
        %v1579 = vsub.s32 %v1576, %v1578
        %v1580 = vrot.slane %v1572, %v1579
        %v1582 = vunpack.c.l.s4 1934713408
        %v1583 = vunpack.c.0.s8 %v1582
        %v1584 = vlaneseq
        %v1585 = vshrl.u32 %v1584, 7
        %v1586 = vsub.s32 %v1583, %v1585
        %v1587 = vrot.slane %v1573, %v1586
        %v1588 = vcombine.high %v1564, 0.0
        %v1589 = vcombine.high %v1571, 0.0
        %v1590 = vcombine.high %v1580, 0.0
        %v1591 = vcombine.high %v1587, 0.0
        %v1608 = vlaneseq
        %v1609 = vshrl.u32 %v1608, 7
        %v1610 = vsub.s32 0, %v1609
        %v1611 = vrot.slane %v854, %v1610
        %v1612 = vlaneseq
        %v1613 = vshrl.u32 %v1612, 7
        %v1614 = vsub.s32 0, %v1613
        %v1615 = vrot.slane %v855, %v1614
        %v1616 = vlaneseq
        %v1617 = vshrl.u32 %v1616, 7
        %v1618 = vsub.s32 0, %v1617
        %v1619 = vrot.slane %v856, %v1618
        %v1620 = vlaneseq
        %v1621 = vshrl.u32 %v1620, 7
        %v1622 = vsub.s32 0, %v1621
        %v1623 = vrot.slane %v857, %v1622
        %v1624 = vlaneseq
        %v1625 = vshrl.u32 %v1624, 7
        %v1626 = vsub.s32 0, %v1625
        %v1627 = vrot.slane %v858, %v1626
        %v1628 = vlaneseq
        %v1629 = vshrl.u32 %v1628, 7
        %v1630 = vsub.s32 0, %v1629
        %v1631 = vrot.slane %v859, %v1630
        %v1632 = vlaneseq
        %v1633 = vshrl.u32 %v1632, 7
        %v1634 = vsub.s32 0, %v1633
        %v1635 = vrot.slane %v860, %v1634
        %v1636 = vlaneseq
        %v1637 = vshrl.u32 %v1636, 7
        %v1638 = vsub.s32 0, %v1637
        %v1639 = vrot.slane %v861, %v1638
        %v1640 = vlaneseq
        %v1641 = vshrl.u32 %v1640, 7
        %v1642 = vsub.s32 0, %v1641
        %v1643 = vrot.slane %v862, %v1642
        %v1644 = vlaneseq
        %v1645 = vshrl.u32 %v1644, 7
        %v1646 = vsub.s32 0, %v1645
        %v1647 = vrot.slane %v863, %v1646
        %v1648 = vlaneseq
        %v1649 = vshrl.u32 %v1648, 7
        %v1650 = vsub.s32 0, %v1649
        %v1651 = vrot.slane %v864, %v1650
        %v1652 = vlaneseq
        %v1653 = vshrl.u32 %v1652, 7
        %v1654 = vsub.s32 0, %v1653
        %v1655 = vrot.slane %v865, %v1654
        %v1656 = vlaneseq
        %v1657 = vshrl.u32 %v1656, 7
        %v1658 = vsub.s32 0, %v1657
        %v1659 = vrot.slane %v866, %v1658
        %v1660 = vlaneseq
        %v1661 = vshrl.u32 %v1660, 7
        %v1662 = vsub.s32 0, %v1661
        %v1663 = vrot.slane %v867, %v1662
        %v1664 = vlaneseq
        %v1665 = vshrl.u32 %v1664, 7
        %v1666 = vsub.s32 0, %v1665
        %v1667 = vrot.slane %v868, %v1666
        %v1668 = vlaneseq
        %v1669 = vshrl.u32 %v1668, 7
        %v1670 = vsub.s32 0, %v1669
        %v1671 = vrot.slane %v869, %v1670
        %v1688 = vmul.f32 %v1058, %v1611
        %v1689 = vmul.f32 %v1082, %v1615
        %v1690 = vmul.f32 %v1065, %v1619
        %v1691 = vmul.f32 %v1083, %v1623
        %v1692 = vmul.f32 %v1074, %v1627
        %v1693 = vmul.f32 %v1084, %v1631
        %v1694 = vmul.f32 %v1081, %v1635
        %v1695 = vmul.f32 %v1085, %v1639
        %v1696 = vmul.f32 %v1126, %v1643
        %v1697 = vmul.f32 %v1150, %v1647
        %v1698 = vmul.f32 %v1133, %v1651
        %v1699 = vmul.f32 %v1151, %v1655
        %v1700 = vmul.f32 %v1142, %v1659
        %v1701 = vmul.f32 %v1152, %v1663
        %v1702 = vmul.f32 %v1149, %v1667
        %v1703 = vmul.f32 %v1153, %v1671
        %1720 = vrot.lane.b32.xlu0 %v1058, 124
        %v1721 = vpop.permute.xlu0 %1720
        %1722 = vrot.lane.b32.xlu0 %v1082, 124
        %v1723 = vpop.permute.xlu0 %1722
        %1724 = vrot.lane.b32.xlu0 %v1065, 124
        %v1725 = vpop.permute.xlu0 %1724
        %1726 = vrot.lane.b32.xlu0 %v1083, 124
        %v1727 = vpop.permute.xlu0 %1726
        %1728 = vrot.lane.b32.xlu0 %v1074, 124
        %v1729 = vpop.permute.xlu0 %1728
        %1730 = vrot.lane.b32.xlu0 %v1084, 124
        %v1731 = vpop.permute.xlu0 %1730
        %1732 = vrot.lane.b32.xlu0 %v1081, 124
        %v1733 = vpop.permute.xlu0 %1732
        %1734 = vrot.lane.b32.xlu0 %v1085, 124
        %v1735 = vpop.permute.xlu0 %1734
        %1736 = vrot.lane.b32.xlu0 %v1126, 124
        %v1737 = vpop.permute.xlu0 %1736
        %1738 = vrot.lane.b32.xlu0 %v1150, 124
        %v1739 = vpop.permute.xlu0 %1738
        %1740 = vrot.lane.b32.xlu0 %v1133, 124
        %v1741 = vpop.permute.xlu0 %1740
        %1742 = vrot.lane.b32.xlu0 %v1151, 124
        %v1743 = vpop.permute.xlu0 %1742
        %1744 = vrot.lane.b32.xlu0 %v1142, 124
        %v1745 = vpop.permute.xlu0 %1744
        %1746 = vrot.lane.b32.xlu0 %v1152, 124
        %v1747 = vpop.permute.xlu0 %1746
        %1748 = vrot.lane.b32.xlu0 %v1149, 124
        %v1749 = vpop.permute.xlu0 %1748
        %1750 = vrot.lane.b32.xlu0 %v1153, 124
        %v1751 = vpop.permute.xlu0 %1750
        %1768 = vrot.lane.b32.xlu0 %v1058, 4
        %v1769 = vpop.permute.xlu0 %1768
        %1770 = vrot.lane.b32.xlu0 %v1082, 4
        %v1771 = vpop.permute.xlu0 %1770
        %1772 = vrot.lane.b32.xlu0 %v1065, 4
        %v1773 = vpop.permute.xlu0 %1772
        %1774 = vrot.lane.b32.xlu0 %v1083, 4
        %v1775 = vpop.permute.xlu0 %1774
        %1776 = vrot.lane.b32.xlu0 %v1074, 4
        %v1777 = vpop.permute.xlu0 %1776
        %1778 = vrot.lane.b32.xlu0 %v1084, 4
        %v1779 = vpop.permute.xlu0 %1778
        %1780 = vrot.lane.b32.xlu0 %v1081, 4
        %v1781 = vpop.permute.xlu0 %1780
        %1782 = vrot.lane.b32.xlu0 %v1085, 4
        %v1783 = vpop.permute.xlu0 %1782
        %1784 = vrot.lane.b32.xlu0 %v1126, 4
        %v1785 = vpop.permute.xlu0 %1784
        %1786 = vrot.lane.b32.xlu0 %v1150, 4
        %v1787 = vpop.permute.xlu0 %1786
        %1788 = vrot.lane.b32.xlu0 %v1133, 4
        %v1789 = vpop.permute.xlu0 %1788
        %1790 = vrot.lane.b32.xlu0 %v1151, 4
        %v1791 = vpop.permute.xlu0 %1790
        %1792 = vrot.lane.b32.xlu0 %v1142, 4
        %v1793 = vpop.permute.xlu0 %1792
        %1794 = vrot.lane.b32.xlu0 %v1152, 4
        %v1795 = vpop.permute.xlu0 %1794
        %1796 = vrot.lane.b32.xlu0 %v1149, 4
        %v1797 = vpop.permute.xlu0 %1796
        %1798 = vrot.lane.b32.xlu0 %v1153, 4
        %v1799 = vpop.permute.xlu0 %1798
        %vm1816 = vcmask 31744
        %v1817 = vsel %vm1816, %v1721, %v1769
        %v1818 = vsel %vm1816, %v1723, %v1771
        %v1819 = vsel %vm1816, %v1725, %v1773
        %v1820 = vsel %vm1816, %v1727, %v1775
        %v1821 = vsel %vm1816, %v1729, %v1777
        %v1822 = vsel %vm1816, %v1731, %v1779
        %v1823 = vsel %vm1816, %v1733, %v1781
        %v1824 = vsel %vm1816, %v1735, %v1783
        %v1825 = vsel %vm1816, %v1737, %v1785
        %v1826 = vsel %vm1816, %v1739, %v1787
        %v1827 = vsel %vm1816, %v1741, %v1789
        %v1828 = vsel %vm1816, %v1743, %v1791
        %v1829 = vsel %vm1816, %v1745, %v1793
        %v1830 = vsel %vm1816, %v1747, %v1795
        %v1831 = vsel %vm1816, %v1749, %v1797
        %v1832 = vsel %vm1816, %v1751, %v1799
        %v1849 = vlaneseq
        %v1850 = vshrl.u32 %v1849, 7
        %v1851 = vsub.s32 0, %v1850
        %v1852 = vrot.slane %v870, %v1851
        %v1853 = vlaneseq
        %v1854 = vshrl.u32 %v1853, 7
        %v1855 = vsub.s32 0, %v1854
        %v1856 = vrot.slane %v871, %v1855
        %v1857 = vlaneseq
        %v1858 = vshrl.u32 %v1857, 7
        %v1859 = vsub.s32 0, %v1858
        %v1860 = vrot.slane %v872, %v1859
        %v1861 = vlaneseq
        %v1862 = vshrl.u32 %v1861, 7
        %v1863 = vsub.s32 0, %v1862
        %v1864 = vrot.slane %v873, %v1863
        %v1865 = vlaneseq
        %v1866 = vshrl.u32 %v1865, 7
        %v1867 = vsub.s32 0, %v1866
        %v1868 = vrot.slane %v874, %v1867
        %v1869 = vlaneseq
        %v1870 = vshrl.u32 %v1869, 7
        %v1871 = vsub.s32 0, %v1870
        %v1872 = vrot.slane %v875, %v1871
        %v1873 = vlaneseq
        %v1874 = vshrl.u32 %v1873, 7
        %v1875 = vsub.s32 0, %v1874
        %v1876 = vrot.slane %v876, %v1875
        %v1877 = vlaneseq
        %v1878 = vshrl.u32 %v1877, 7
        %v1879 = vsub.s32 0, %v1878
        %v1880 = vrot.slane %v877, %v1879
        %v1881 = vlaneseq
        %v1882 = vshrl.u32 %v1881, 7
        %v1883 = vsub.s32 0, %v1882
        %v1884 = vrot.slane %v878, %v1883
        %v1885 = vlaneseq
        %v1886 = vshrl.u32 %v1885, 7
        %v1887 = vsub.s32 0, %v1886
        %v1888 = vrot.slane %v879, %v1887
        %v1889 = vlaneseq
        %v1890 = vshrl.u32 %v1889, 7
        %v1891 = vsub.s32 0, %v1890
        %v1892 = vrot.slane %v880, %v1891
        %v1893 = vlaneseq
        %v1894 = vshrl.u32 %v1893, 7
        %v1895 = vsub.s32 0, %v1894
        %v1896 = vrot.slane %v881, %v1895
        %v1897 = vlaneseq
        %v1898 = vshrl.u32 %v1897, 7
        %v1899 = vsub.s32 0, %v1898
        %v1900 = vrot.slane %v882, %v1899
        %v1901 = vlaneseq
        %v1902 = vshrl.u32 %v1901, 7
        %v1903 = vsub.s32 0, %v1902
        %v1904 = vrot.slane %v883, %v1903
        %v1905 = vlaneseq
        %v1906 = vshrl.u32 %v1905, 7
        %v1907 = vsub.s32 0, %v1906
        %v1908 = vrot.slane %v884, %v1907
        %v1909 = vlaneseq
        %v1910 = vshrl.u32 %v1909, 7
        %v1911 = vsub.s32 0, %v1910
        %v1912 = vrot.slane %v885, %v1911
        %v1929 = vmul.f32 %v1817, %v1852
        %v1930 = vmul.f32 %v1818, %v1856
        %v1931 = vmul.f32 %v1819, %v1860
        %v1932 = vmul.f32 %v1820, %v1864
        %v1933 = vmul.f32 %v1821, %v1868
        %v1934 = vmul.f32 %v1822, %v1872
        %v1935 = vmul.f32 %v1823, %v1876
        %v1936 = vmul.f32 %v1824, %v1880
        %v1937 = vmul.f32 %v1825, %v1884
        %v1938 = vmul.f32 %v1826, %v1888
        %v1939 = vmul.f32 %v1827, %v1892
        %v1940 = vmul.f32 %v1828, %v1896
        %v1941 = vmul.f32 %v1829, %v1900
        %v1942 = vmul.f32 %v1830, %v1904
        %v1943 = vmul.f32 %v1831, %v1908
        %v1944 = vmul.f32 %v1832, %v1912
        %v1945 = vadd.f32 %v1688, %v1929
        %v1946 = vadd.f32 %v1689, %v1930
        %v1947 = vadd.f32 %v1690, %v1931
        %v1948 = vadd.f32 %v1691, %v1932
        %v1949 = vadd.f32 %v1692, %v1933
        %v1950 = vadd.f32 %v1693, %v1934
        %v1951 = vadd.f32 %v1694, %v1935
        %v1952 = vadd.f32 %v1695, %v1936
        %v1953 = vadd.f32 %v1696, %v1937
        %v1954 = vadd.f32 %v1697, %v1938
        %v1955 = vadd.f32 %v1698, %v1939
        %v1956 = vadd.f32 %v1699, %v1940
        %v1957 = vadd.f32 %v1700, %v1941
        %v1958 = vadd.f32 %v1701, %v1942
        %v1959 = vadd.f32 %v1702, %v1943
        %v1960 = vadd.f32 %v1703, %v1944
        %v1961 = vmul.f32 %v1279, %v1611
        %v1962 = vmul.f32 %v1303, %v1615
        %v1963 = vmul.f32 %v1286, %v1619
        %v1964 = vmul.f32 %v1304, %v1623
        %v1965 = vmul.f32 %v1295, %v1627
        %v1966 = vmul.f32 %v1305, %v1631
        %v1967 = vmul.f32 %v1302, %v1635
        %v1968 = vmul.f32 %v1306, %v1639
        %v1969 = vmul.f32 %v1345, %v1643
        %v1970 = vmul.f32 %v1369, %v1647
        %v1971 = vmul.f32 %v1352, %v1651
        %v1972 = vmul.f32 %v1370, %v1655
        %v1973 = vmul.f32 %v1361, %v1659
        %v1974 = vmul.f32 %v1371, %v1663
        %v1975 = vmul.f32 %v1368, %v1667
        %v1976 = vmul.f32 %v1372, %v1671
        %1993 = vrot.lane.b32.xlu0 %v1279, 124
        %v1994 = vpop.permute.xlu0 %1993
        %1995 = vrot.lane.b32.xlu0 %v1303, 124
        %v1996 = vpop.permute.xlu0 %1995
        %1997 = vrot.lane.b32.xlu0 %v1286, 124
        %v1998 = vpop.permute.xlu0 %1997
        %1999 = vrot.lane.b32.xlu0 %v1304, 124
        %v2000 = vpop.permute.xlu0 %1999
        %2001 = vrot.lane.b32.xlu0 %v1295, 124
        %v2002 = vpop.permute.xlu0 %2001
        %2003 = vrot.lane.b32.xlu0 %v1305, 124
        %v2004 = vpop.permute.xlu0 %2003
        %2005 = vrot.lane.b32.xlu0 %v1302, 124
        %v2006 = vpop.permute.xlu0 %2005
        %2007 = vrot.lane.b32.xlu0 %v1306, 124
        %v2008 = vpop.permute.xlu0 %2007
        %2009 = vrot.lane.b32.xlu0 %v1345, 124
        %v2010 = vpop.permute.xlu0 %2009
        %2011 = vrot.lane.b32.xlu0 %v1369, 124
        %v2012 = vpop.permute.xlu0 %2011
        %2013 = vrot.lane.b32.xlu0 %v1352, 124
        %v2014 = vpop.permute.xlu0 %2013
        %2015 = vrot.lane.b32.xlu0 %v1370, 124
        %v2016 = vpop.permute.xlu0 %2015
        %2017 = vrot.lane.b32.xlu0 %v1361, 124
        %v2018 = vpop.permute.xlu0 %2017
        %2019 = vrot.lane.b32.xlu0 %v1371, 124
        %v2020 = vpop.permute.xlu0 %2019
        %2021 = vrot.lane.b32.xlu0 %v1368, 124
        %v2022 = vpop.permute.xlu0 %2021
        %2023 = vrot.lane.b32.xlu0 %v1372, 124
        %v2024 = vpop.permute.xlu0 %2023
        %2041 = vrot.lane.b32.xlu0 %v1279, 4
        %v2042 = vpop.permute.xlu0 %2041
        %2043 = vrot.lane.b32.xlu0 %v1303, 4
        %v2044 = vpop.permute.xlu0 %2043
        %2045 = vrot.lane.b32.xlu0 %v1286, 4
        %v2046 = vpop.permute.xlu0 %2045
        %2047 = vrot.lane.b32.xlu0 %v1304, 4
        %v2048 = vpop.permute.xlu0 %2047
        %2049 = vrot.lane.b32.xlu0 %v1295, 4
        %v2050 = vpop.permute.xlu0 %2049
        %2051 = vrot.lane.b32.xlu0 %v1305, 4
        %v2052 = vpop.permute.xlu0 %2051
        %2053 = vrot.lane.b32.xlu0 %v1302, 4
        %v2054 = vpop.permute.xlu0 %2053
        %2055 = vrot.lane.b32.xlu0 %v1306, 4
        %v2056 = vpop.permute.xlu0 %2055
        %2057 = vrot.lane.b32.xlu0 %v1345, 4
        %v2058 = vpop.permute.xlu0 %2057
        %2059 = vrot.lane.b32.xlu0 %v1369, 4
        %v2060 = vpop.permute.xlu0 %2059
        %2061 = vrot.lane.b32.xlu0 %v1352, 4
        %v2062 = vpop.permute.xlu0 %2061
        %2063 = vrot.lane.b32.xlu0 %v1370, 4
        %v2064 = vpop.permute.xlu0 %2063
        %2065 = vrot.lane.b32.xlu0 %v1361, 4
        %v2066 = vpop.permute.xlu0 %2065
        %2067 = vrot.lane.b32.xlu0 %v1371, 4
        %v2068 = vpop.permute.xlu0 %2067
        %2069 = vrot.lane.b32.xlu0 %v1368, 4
        %v2070 = vpop.permute.xlu0 %2069
        %2071 = vrot.lane.b32.xlu0 %v1372, 4
        %v2072 = vpop.permute.xlu0 %2071
        %v2089 = vsel %vm1816, %v1994, %v2042
        %v2090 = vsel %vm1816, %v1996, %v2044
        %v2091 = vsel %vm1816, %v1998, %v2046
        %v2092 = vsel %vm1816, %v2000, %v2048
        %v2093 = vsel %vm1816, %v2002, %v2050
        %v2094 = vsel %vm1816, %v2004, %v2052
        %v2095 = vsel %vm1816, %v2006, %v2054
        %v2096 = vsel %vm1816, %v2008, %v2056
        %v2097 = vsel %vm1816, %v2010, %v2058
        %v2098 = vsel %vm1816, %v2012, %v2060
        %v2099 = vsel %vm1816, %v2014, %v2062
        %v2100 = vsel %vm1816, %v2016, %v2064
        %v2101 = vsel %vm1816, %v2018, %v2066
        %v2102 = vsel %vm1816, %v2020, %v2068
        %v2103 = vsel %vm1816, %v2022, %v2070
        %v2104 = vsel %vm1816, %v2024, %v2072
        %v2105 = vmul.f32 %v2089, %v1852
        %v2106 = vmul.f32 %v2090, %v1856
        %v2107 = vmul.f32 %v2091, %v1860
        %v2108 = vmul.f32 %v2092, %v1864
        %v2109 = vmul.f32 %v2093, %v1868
        %v2110 = vmul.f32 %v2094, %v1872
        %v2111 = vmul.f32 %v2095, %v1876
        %v2112 = vmul.f32 %v2096, %v1880
        %v2113 = vmul.f32 %v2097, %v1884
        %v2114 = vmul.f32 %v2098, %v1888
        %v2115 = vmul.f32 %v2099, %v1892
        %v2116 = vmul.f32 %v2100, %v1896
        %v2117 = vmul.f32 %v2101, %v1900
        %v2118 = vmul.f32 %v2102, %v1904
        %v2119 = vmul.f32 %v2103, %v1908
        %v2120 = vmul.f32 %v2104, %v1912
        %v2121 = vadd.f32 %v1961, %v2105
        %v2122 = vadd.f32 %v1962, %v2106
        %v2123 = vadd.f32 %v1963, %v2107
        %v2124 = vadd.f32 %v1964, %v2108
        %v2125 = vadd.f32 %v1965, %v2109
        %v2126 = vadd.f32 %v1966, %v2110
        %v2127 = vadd.f32 %v1967, %v2111
        %v2128 = vadd.f32 %v1968, %v2112
        %v2129 = vadd.f32 %v1969, %v2113
        %v2130 = vadd.f32 %v1970, %v2114
        %v2131 = vadd.f32 %v1971, %v2115
        %v2132 = vadd.f32 %v1972, %v2116
        %v2133 = vadd.f32 %v1973, %v2117
        %v2134 = vadd.f32 %v1974, %v2118
        %v2135 = vadd.f32 %v1975, %v2119
        %v2136 = vadd.f32 %v1976, %v2120
        %vm2137 = vcmask 64512
        %v2139 = vsel %vm2137, %v1945, 0
        %v2142 = vsel %vm2137, %v2121, 0
        %2144 = vmatprep.subr.mxu0 0.0
        %2145 = vmatpush1.xpose.msra.mxu0 0.0
        %2146 = vmatprep.subr.mxu0 0.0
        %2147 = vmatpush1.xpose.msra.mxu0 0.0
        %2148 = vmatprep.subr.mxu0 0.0
        %2149 = vmatpush1.xpose.msra.mxu0 0.0
        %2150 = vmatprep.subr.mxu0 0.0
        %2151 = vmatpush1.xpose.msra.mxu0 0.0
        %2152 = vmatprep.subr.mxu0 0.0
        %2153 = vmatpush1.xpose.msra.mxu0 0.0
        %2154 = vmatprep.subr.mxu0 0.0
        %2155 = vmatpush1.xpose.msra.mxu0 0.0
        %2156 = vmatprep.subr.mxu0 0.0
        %2157 = vmatpush1.xpose.msra.mxu0 0.0
        %2158 = vmatprep.subr.mxu0 0.0
        %2159 = vmatpush1.xpose.msra.mxu0 0.0
        %2160 = vmatprep.subr.mxu0 0.0
        %2161 = vmatpush1.xpose.msra.mxu0 0.0
        %2162 = vmatprep.subr.mxu0 0.0
        %2163 = vmatpush1.xpose.msra.mxu0 0.0
        %2164 = vmatprep.subr.mxu0 0.0
        %2165 = vmatpush1.xpose.msra.mxu0 0.0
        %2166 = vmatprep.subr.mxu0 0.0
        %2167 = vmatpush1.xpose.msra.mxu0 0.0
        %2168 = vmatprep.subr.mxu0 0.0
        %2169 = vmatpush1.xpose.msra.mxu0 0.0
        %2170 = vmatprep.subr.mxu0 0.0
        %2171 = vmatpush1.xpose.msra.mxu0 0.0
        %2172 = vmatprep.subr.mxu0 0.0
        %2173 = vmatpush1.xpose.msra.mxu0 0.0
        %2174 = vmatprep.subr.mxu0 0.0
        %2175 = vmatpush1.xpose.msra.mxu0 %v2142
        %2176 = vmatprep.subr.mxu0 0.0
        %2177 = vmatpush2.xpose.msra.mxu0 0.0
        %2178 = vmatprep.subr.mxu0 0.0
        %2179 = vmatpush2.xpose.msra.mxu0 0.0
        %2180 = vmatprep.subr.mxu0 0.0
        %2181 = vmatpush2.xpose.msra.mxu0 0.0
        %2182 = vmatprep.subr.mxu0 0.0
        %2183 = vmatpush2.xpose.msra.mxu0 0.0
        %2184 = vmatprep.subr.mxu0 0.0
        %2185 = vmatpush2.xpose.msra.mxu0 0.0
        %2186 = vmatprep.subr.mxu0 0.0
        %2187 = vmatpush2.xpose.msra.mxu0 0.0
        %2188 = vmatprep.subr.mxu0 0.0
        %2189 = vmatpush2.xpose.msra.mxu0 0.0
        %2190 = vmatprep.subr.mxu0 0.0
        %2191 = vmatpush2.xpose.msra.mxu0 0.0
        %2192 = vmatprep.subr.mxu0 0.0
        %2193 = vmatpush2.xpose.msra.mxu0 0.0
        %2194 = vmatprep.subr.mxu0 0.0
        %2195 = vmatpush2.xpose.msra.mxu0 0.0
        %2196 = vmatprep.subr.mxu0 0.0
        %2197 = vmatpush2.xpose.msra.mxu0 0.0
        %2198 = vmatprep.subr.mxu0 0.0
        %2199 = vmatpush2.xpose.msra.mxu0 0.0
        %2200 = vmatprep.subr.mxu0 0.0
        %2201 = vmatpush2.xpose.msra.mxu0 0.0
        %2202 = vmatprep.subr.mxu0 0.0
        %2203 = vmatpush2.xpose.msra.mxu0 0.0
        %2204 = vmatprep.subr.mxu0 0.0
        %2205 = vmatpush2.xpose.msra.mxu0 0.0
        %2206 = vmatprep.subr.mxu0 0.0
        %2207 = vmatpush2.xpose.msra.mxu0 0.0
        %2208 = vmatprep.mubr.f32.mxu0 0.0
        %2209 = vmatmul.mubr.f32.gmra.mxu0 %v2139
        %v2210 = vpop.f32.mrf.mxu0
        %v2211 = vadd.f32 0.0, %v2210
        %v2212 = vpop.f32.mrf.mxu0
        %2213 = vdwg.mxu0
        %v2215 = vsel %vm2137, %v1946, 0
        %v2218 = vsel %vm2137, %v2122, 0
        %2220 = vmatprep.subr.mxu0 0.0
        %2221 = vmatpush1.xpose.msra.mxu0 0.0
        %2222 = vmatprep.subr.mxu0 0.0
        %2223 = vmatpush1.xpose.msra.mxu0 0.0
        %2224 = vmatprep.subr.mxu0 0.0
        %2225 = vmatpush1.xpose.msra.mxu0 0.0
        %2226 = vmatprep.subr.mxu0 0.0
        %2227 = vmatpush1.xpose.msra.mxu0 0.0
        %2228 = vmatprep.subr.mxu0 0.0
        %2229 = vmatpush1.xpose.msra.mxu0 0.0
        %2230 = vmatprep.subr.mxu0 0.0
        %2231 = vmatpush1.xpose.msra.mxu0 0.0
        %2232 = vmatprep.subr.mxu0 0.0
        %2233 = vmatpush1.xpose.msra.mxu0 0.0
        %2234 = vmatprep.subr.mxu0 0.0
        %2235 = vmatpush1.xpose.msra.mxu0 0.0
        %2236 = vmatprep.subr.mxu0 0.0
        %2237 = vmatpush1.xpose.msra.mxu0 0.0
        %2238 = vmatprep.subr.mxu0 0.0
        %2239 = vmatpush1.xpose.msra.mxu0 0.0
        %2240 = vmatprep.subr.mxu0 0.0
        %2241 = vmatpush1.xpose.msra.mxu0 0.0
        %2242 = vmatprep.subr.mxu0 0.0
        %2243 = vmatpush1.xpose.msra.mxu0 0.0
        %2244 = vmatprep.subr.mxu0 0.0
        %2245 = vmatpush1.xpose.msra.mxu0 0.0
        %2246 = vmatprep.subr.mxu0 0.0
        %2247 = vmatpush1.xpose.msra.mxu0 0.0
        %2248 = vmatprep.subr.mxu0 0.0
        %2249 = vmatpush1.xpose.msra.mxu0 0.0
        %2250 = vmatprep.subr.mxu0 0.0
        %2251 = vmatpush1.xpose.msra.mxu0 %v2218
        %2252 = vmatprep.subr.mxu0 0.0
        %2253 = vmatpush2.xpose.msra.mxu0 0.0
        %2254 = vmatprep.subr.mxu0 0.0
        %2255 = vmatpush2.xpose.msra.mxu0 0.0
        %2256 = vmatprep.subr.mxu0 0.0
        %2257 = vmatpush2.xpose.msra.mxu0 0.0
        %2258 = vmatprep.subr.mxu0 0.0
        %2259 = vmatpush2.xpose.msra.mxu0 0.0
        %2260 = vmatprep.subr.mxu0 0.0
        %2261 = vmatpush2.xpose.msra.mxu0 0.0
        %2262 = vmatprep.subr.mxu0 0.0
        %2263 = vmatpush2.xpose.msra.mxu0 0.0
        %2264 = vmatprep.subr.mxu0 0.0
        %2265 = vmatpush2.xpose.msra.mxu0 0.0
        %2266 = vmatprep.subr.mxu0 0.0
        %2267 = vmatpush2.xpose.msra.mxu0 0.0
        %2268 = vmatprep.subr.mxu0 0.0
        %2269 = vmatpush2.xpose.msra.mxu0 0.0
        %2270 = vmatprep.subr.mxu0 0.0
        %2271 = vmatpush2.xpose.msra.mxu0 0.0
        %2272 = vmatprep.subr.mxu0 0.0
        %2273 = vmatpush2.xpose.msra.mxu0 0.0
        %2274 = vmatprep.subr.mxu0 0.0
        %2275 = vmatpush2.xpose.msra.mxu0 0.0
        %2276 = vmatprep.subr.mxu0 0.0
        %2277 = vmatpush2.xpose.msra.mxu0 0.0
        %2278 = vmatprep.subr.mxu0 0.0
        %2279 = vmatpush2.xpose.msra.mxu0 0.0
        %2280 = vmatprep.subr.mxu0 0.0
        %2281 = vmatpush2.xpose.msra.mxu0 0.0
        %2282 = vmatprep.subr.mxu0 0.0
        %2283 = vmatpush2.xpose.msra.mxu0 0.0
        %2284 = vmatprep.mubr.f32.mxu0 0.0
        %2285 = vmatmul.mubr.f32.gmra.mxu0 %v2215
        %v2286 = vpop.f32.mrf.mxu0
        %v2287 = vadd.f32 0.0, %v2286
        %v2288 = vpop.f32.mrf.mxu0
        %2289 = vdwg.mxu0
        %v2291 = vsel %vm2137, %v1947, 0
        %v2294 = vsel %vm2137, %v2123, 0
        %2296 = vmatprep.subr.mxu0 0.0
        %2297 = vmatpush1.xpose.msra.mxu0 0.0
        %2298 = vmatprep.subr.mxu0 0.0
        %2299 = vmatpush1.xpose.msra.mxu0 0.0
        %2300 = vmatprep.subr.mxu0 0.0
        %2301 = vmatpush1.xpose.msra.mxu0 0.0
        %2302 = vmatprep.subr.mxu0 0.0
        %2303 = vmatpush1.xpose.msra.mxu0 0.0
        %2304 = vmatprep.subr.mxu0 0.0
        %2305 = vmatpush1.xpose.msra.mxu0 0.0
        %2306 = vmatprep.subr.mxu0 0.0
        %2307 = vmatpush1.xpose.msra.mxu0 0.0
        %2308 = vmatprep.subr.mxu0 0.0
        %2309 = vmatpush1.xpose.msra.mxu0 0.0
        %2310 = vmatprep.subr.mxu0 0.0
        %2311 = vmatpush1.xpose.msra.mxu0 0.0
        %2312 = vmatprep.subr.mxu0 0.0
        %2313 = vmatpush1.xpose.msra.mxu0 0.0
        %2314 = vmatprep.subr.mxu0 0.0
        %2315 = vmatpush1.xpose.msra.mxu0 0.0
        %2316 = vmatprep.subr.mxu0 0.0
        %2317 = vmatpush1.xpose.msra.mxu0 0.0
        %2318 = vmatprep.subr.mxu0 0.0
        %2319 = vmatpush1.xpose.msra.mxu0 0.0
        %2320 = vmatprep.subr.mxu0 0.0
        %2321 = vmatpush1.xpose.msra.mxu0 0.0
        %2322 = vmatprep.subr.mxu0 0.0
        %2323 = vmatpush1.xpose.msra.mxu0 0.0
        %2324 = vmatprep.subr.mxu0 0.0
        %2325 = vmatpush1.xpose.msra.mxu0 0.0
        %2326 = vmatprep.subr.mxu0 0.0
        %2327 = vmatpush1.xpose.msra.mxu0 %v2294
        %2328 = vmatprep.subr.mxu0 0.0
        %2329 = vmatpush2.xpose.msra.mxu0 0.0
        %2330 = vmatprep.subr.mxu0 0.0
        %2331 = vmatpush2.xpose.msra.mxu0 0.0
        %2332 = vmatprep.subr.mxu0 0.0
        %2333 = vmatpush2.xpose.msra.mxu0 0.0
        %2334 = vmatprep.subr.mxu0 0.0
        %2335 = vmatpush2.xpose.msra.mxu0 0.0
        %2336 = vmatprep.subr.mxu0 0.0
        %2337 = vmatpush2.xpose.msra.mxu0 0.0
        %2338 = vmatprep.subr.mxu0 0.0
        %2339 = vmatpush2.xpose.msra.mxu0 0.0
        %2340 = vmatprep.subr.mxu0 0.0
        %2341 = vmatpush2.xpose.msra.mxu0 0.0
        %2342 = vmatprep.subr.mxu0 0.0
        %2343 = vmatpush2.xpose.msra.mxu0 0.0
        %2344 = vmatprep.subr.mxu0 0.0
        %2345 = vmatpush2.xpose.msra.mxu0 0.0
        %2346 = vmatprep.subr.mxu0 0.0
        %2347 = vmatpush2.xpose.msra.mxu0 0.0
        %2348 = vmatprep.subr.mxu0 0.0
        %2349 = vmatpush2.xpose.msra.mxu0 0.0
        %2350 = vmatprep.subr.mxu0 0.0
        %2351 = vmatpush2.xpose.msra.mxu0 0.0
        %2352 = vmatprep.subr.mxu0 0.0
        %2353 = vmatpush2.xpose.msra.mxu0 0.0
        %2354 = vmatprep.subr.mxu0 0.0
        %2355 = vmatpush2.xpose.msra.mxu0 0.0
        %2356 = vmatprep.subr.mxu0 0.0
        %2357 = vmatpush2.xpose.msra.mxu0 0.0
        %2358 = vmatprep.subr.mxu0 0.0
        %2359 = vmatpush2.xpose.msra.mxu0 0.0
        %2360 = vmatprep.mubr.f32.mxu0 0.0
        %2361 = vmatmul.mubr.f32.gmra.mxu0 %v2291
        %v2362 = vpop.f32.mrf.mxu0
        %v2363 = vadd.f32 0.0, %v2362
        %v2364 = vpop.f32.mrf.mxu0
        %2365 = vdwg.mxu0
        %v2367 = vsel %vm2137, %v1948, 0
        %v2370 = vsel %vm2137, %v2124, 0
        %2372 = vmatprep.subr.mxu0 0.0
        %2373 = vmatpush1.xpose.msra.mxu0 0.0
        %2374 = vmatprep.subr.mxu0 0.0
        %2375 = vmatpush1.xpose.msra.mxu0 0.0
        %2376 = vmatprep.subr.mxu0 0.0
        %2377 = vmatpush1.xpose.msra.mxu0 0.0
        %2378 = vmatprep.subr.mxu0 0.0
        %2379 = vmatpush1.xpose.msra.mxu0 0.0
        %2380 = vmatprep.subr.mxu0 0.0
        %2381 = vmatpush1.xpose.msra.mxu0 0.0
        %2382 = vmatprep.subr.mxu0 0.0
        %2383 = vmatpush1.xpose.msra.mxu0 0.0
        %2384 = vmatprep.subr.mxu0 0.0
        %2385 = vmatpush1.xpose.msra.mxu0 0.0
        %2386 = vmatprep.subr.mxu0 0.0
        %2387 = vmatpush1.xpose.msra.mxu0 0.0
        %2388 = vmatprep.subr.mxu0 0.0
        %2389 = vmatpush1.xpose.msra.mxu0 0.0
        %2390 = vmatprep.subr.mxu0 0.0
        %2391 = vmatpush1.xpose.msra.mxu0 0.0
        %2392 = vmatprep.subr.mxu0 0.0
        %2393 = vmatpush1.xpose.msra.mxu0 0.0
        %2394 = vmatprep.subr.mxu0 0.0
        %2395 = vmatpush1.xpose.msra.mxu0 0.0
        %2396 = vmatprep.subr.mxu0 0.0
        %2397 = vmatpush1.xpose.msra.mxu0 0.0
        %2398 = vmatprep.subr.mxu0 0.0
        %2399 = vmatpush1.xpose.msra.mxu0 0.0
        %2400 = vmatprep.subr.mxu0 0.0
        %2401 = vmatpush1.xpose.msra.mxu0 0.0
        %2402 = vmatprep.subr.mxu0 0.0
        %2403 = vmatpush1.xpose.msra.mxu0 %v2370
        %2404 = vmatprep.subr.mxu0 0.0
        %2405 = vmatpush2.xpose.msra.mxu0 0.0
        %2406 = vmatprep.subr.mxu0 0.0
        %2407 = vmatpush2.xpose.msra.mxu0 0.0
        %2408 = vmatprep.subr.mxu0 0.0
        %2409 = vmatpush2.xpose.msra.mxu0 0.0
        %2410 = vmatprep.subr.mxu0 0.0
        %2411 = vmatpush2.xpose.msra.mxu0 0.0
        %2412 = vmatprep.subr.mxu0 0.0
        %2413 = vmatpush2.xpose.msra.mxu0 0.0
        %2414 = vmatprep.subr.mxu0 0.0
        %2415 = vmatpush2.xpose.msra.mxu0 0.0
        %2416 = vmatprep.subr.mxu0 0.0
        %2417 = vmatpush2.xpose.msra.mxu0 0.0
        %2418 = vmatprep.subr.mxu0 0.0
        %2419 = vmatpush2.xpose.msra.mxu0 0.0
        %2420 = vmatprep.subr.mxu0 0.0
        %2421 = vmatpush2.xpose.msra.mxu0 0.0
        %2422 = vmatprep.subr.mxu0 0.0
        %2423 = vmatpush2.xpose.msra.mxu0 0.0
        %2424 = vmatprep.subr.mxu0 0.0
        %2425 = vmatpush2.xpose.msra.mxu0 0.0
        %2426 = vmatprep.subr.mxu0 0.0
        %2427 = vmatpush2.xpose.msra.mxu0 0.0
        %2428 = vmatprep.subr.mxu0 0.0
        %2429 = vmatpush2.xpose.msra.mxu0 0.0
        %2430 = vmatprep.subr.mxu0 0.0
        %2431 = vmatpush2.xpose.msra.mxu0 0.0
        %2432 = vmatprep.subr.mxu0 0.0
        %2433 = vmatpush2.xpose.msra.mxu0 0.0
        %2434 = vmatprep.subr.mxu0 0.0
        %2435 = vmatpush2.xpose.msra.mxu0 0.0
        %2436 = vmatprep.mubr.f32.mxu0 0.0
        %2437 = vmatmul.mubr.f32.gmra.mxu0 %v2367
        %v2438 = vpop.f32.mrf.mxu0
        %v2439 = vadd.f32 0.0, %v2438
        %v2440 = vpop.f32.mrf.mxu0
        %2441 = vdwg.mxu0
        %v2443 = vsel %vm2137, %v1949, 0
        %v2446 = vsel %vm2137, %v2125, 0
        %2448 = vmatprep.subr.mxu0 0.0
        %2449 = vmatpush1.xpose.msra.mxu0 0.0
        %2450 = vmatprep.subr.mxu0 0.0
        %2451 = vmatpush1.xpose.msra.mxu0 0.0
        %2452 = vmatprep.subr.mxu0 0.0
        %2453 = vmatpush1.xpose.msra.mxu0 0.0
        %2454 = vmatprep.subr.mxu0 0.0
        %2455 = vmatpush1.xpose.msra.mxu0 0.0
        %2456 = vmatprep.subr.mxu0 0.0
        %2457 = vmatpush1.xpose.msra.mxu0 0.0
        %2458 = vmatprep.subr.mxu0 0.0
        %2459 = vmatpush1.xpose.msra.mxu0 0.0
        %2460 = vmatprep.subr.mxu0 0.0
        %2461 = vmatpush1.xpose.msra.mxu0 0.0
        %2462 = vmatprep.subr.mxu0 0.0
        %2463 = vmatpush1.xpose.msra.mxu0 0.0
        %2464 = vmatprep.subr.mxu0 0.0
        %2465 = vmatpush1.xpose.msra.mxu0 0.0
        %2466 = vmatprep.subr.mxu0 0.0
        %2467 = vmatpush1.xpose.msra.mxu0 0.0
        %2468 = vmatprep.subr.mxu0 0.0
        %2469 = vmatpush1.xpose.msra.mxu0 0.0
        %2470 = vmatprep.subr.mxu0 0.0
        %2471 = vmatpush1.xpose.msra.mxu0 0.0
        %2472 = vmatprep.subr.mxu0 0.0
        %2473 = vmatpush1.xpose.msra.mxu0 0.0
        %2474 = vmatprep.subr.mxu0 0.0
        %2475 = vmatpush1.xpose.msra.mxu0 0.0
        %2476 = vmatprep.subr.mxu0 0.0
        %2477 = vmatpush1.xpose.msra.mxu0 0.0
        %2478 = vmatprep.subr.mxu0 0.0
        %2479 = vmatpush1.xpose.msra.mxu0 %v2446
        %2480 = vmatprep.subr.mxu0 0.0
        %2481 = vmatpush2.xpose.msra.mxu0 0.0
        %2482 = vmatprep.subr.mxu0 0.0
        %2483 = vmatpush2.xpose.msra.mxu0 0.0
        %2484 = vmatprep.subr.mxu0 0.0
        %2485 = vmatpush2.xpose.msra.mxu0 0.0
        %2486 = vmatprep.subr.mxu0 0.0
        %2487 = vmatpush2.xpose.msra.mxu0 0.0
        %2488 = vmatprep.subr.mxu0 0.0
        %2489 = vmatpush2.xpose.msra.mxu0 0.0
        %2490 = vmatprep.subr.mxu0 0.0
        %2491 = vmatpush2.xpose.msra.mxu0 0.0
        %2492 = vmatprep.subr.mxu0 0.0
        %2493 = vmatpush2.xpose.msra.mxu0 0.0
        %2494 = vmatprep.subr.mxu0 0.0
        %2495 = vmatpush2.xpose.msra.mxu0 0.0
        %2496 = vmatprep.subr.mxu0 0.0
        %2497 = vmatpush2.xpose.msra.mxu0 0.0
        %2498 = vmatprep.subr.mxu0 0.0
        %2499 = vmatpush2.xpose.msra.mxu0 0.0
        %2500 = vmatprep.subr.mxu0 0.0
        %2501 = vmatpush2.xpose.msra.mxu0 0.0
        %2502 = vmatprep.subr.mxu0 0.0
        %2503 = vmatpush2.xpose.msra.mxu0 0.0
        %2504 = vmatprep.subr.mxu0 0.0
        %2505 = vmatpush2.xpose.msra.mxu0 0.0
        %2506 = vmatprep.subr.mxu0 0.0
        %2507 = vmatpush2.xpose.msra.mxu0 0.0
        %2508 = vmatprep.subr.mxu0 0.0
        %2509 = vmatpush2.xpose.msra.mxu0 0.0
        %2510 = vmatprep.subr.mxu0 0.0
        %2511 = vmatpush2.xpose.msra.mxu0 0.0
        %2512 = vmatprep.mubr.f32.mxu0 0.0
        %2513 = vmatmul.mubr.f32.gmra.mxu0 %v2443
        %v2514 = vpop.f32.mrf.mxu0
        %v2515 = vadd.f32 0.0, %v2514
        %v2516 = vpop.f32.mrf.mxu0
        %2517 = vdwg.mxu0
        %v2519 = vsel %vm2137, %v1950, 0
        %v2522 = vsel %vm2137, %v2126, 0
        %2524 = vmatprep.subr.mxu0 0.0
        %2525 = vmatpush1.xpose.msra.mxu0 0.0
        %2526 = vmatprep.subr.mxu0 0.0
        %2527 = vmatpush1.xpose.msra.mxu0 0.0
        %2528 = vmatprep.subr.mxu0 0.0
        %2529 = vmatpush1.xpose.msra.mxu0 0.0
        %2530 = vmatprep.subr.mxu0 0.0
        %2531 = vmatpush1.xpose.msra.mxu0 0.0
        %2532 = vmatprep.subr.mxu0 0.0
        %2533 = vmatpush1.xpose.msra.mxu0 0.0
        %2534 = vmatprep.subr.mxu0 0.0
        %2535 = vmatpush1.xpose.msra.mxu0 0.0
        %2536 = vmatprep.subr.mxu0 0.0
        %2537 = vmatpush1.xpose.msra.mxu0 0.0
        %2538 = vmatprep.subr.mxu0 0.0
        %2539 = vmatpush1.xpose.msra.mxu0 0.0
        %2540 = vmatprep.subr.mxu0 0.0
        %2541 = vmatpush1.xpose.msra.mxu0 0.0
        %2542 = vmatprep.subr.mxu0 0.0
        %2543 = vmatpush1.xpose.msra.mxu0 0.0
        %2544 = vmatprep.subr.mxu0 0.0
        %2545 = vmatpush1.xpose.msra.mxu0 0.0
        %2546 = vmatprep.subr.mxu0 0.0
        %2547 = vmatpush1.xpose.msra.mxu0 0.0
        %2548 = vmatprep.subr.mxu0 0.0
        %2549 = vmatpush1.xpose.msra.mxu0 0.0
        %2550 = vmatprep.subr.mxu0 0.0
        %2551 = vmatpush1.xpose.msra.mxu0 0.0
        %2552 = vmatprep.subr.mxu0 0.0
        %2553 = vmatpush1.xpose.msra.mxu0 0.0
        %2554 = vmatprep.subr.mxu0 0.0
        %2555 = vmatpush1.xpose.msra.mxu0 %v2522
        %2556 = vmatprep.subr.mxu0 0.0
        %2557 = vmatpush2.xpose.msra.mxu0 0.0
        %2558 = vmatprep.subr.mxu0 0.0
        %2559 = vmatpush2.xpose.msra.mxu0 0.0
        %2560 = vmatprep.subr.mxu0 0.0
        %2561 = vmatpush2.xpose.msra.mxu0 0.0
        %2562 = vmatprep.subr.mxu0 0.0
        %2563 = vmatpush2.xpose.msra.mxu0 0.0
        %2564 = vmatprep.subr.mxu0 0.0
        %2565 = vmatpush2.xpose.msra.mxu0 0.0
        %2566 = vmatprep.subr.mxu0 0.0
        %2567 = vmatpush2.xpose.msra.mxu0 0.0
        %2568 = vmatprep.subr.mxu0 0.0
        %2569 = vmatpush2.xpose.msra.mxu0 0.0
        %2570 = vmatprep.subr.mxu0 0.0
        %2571 = vmatpush2.xpose.msra.mxu0 0.0
        %2572 = vmatprep.subr.mxu0 0.0
        %2573 = vmatpush2.xpose.msra.mxu0 0.0
        %2574 = vmatprep.subr.mxu0 0.0
        %2575 = vmatpush2.xpose.msra.mxu0 0.0
        %2576 = vmatprep.subr.mxu0 0.0
        %2577 = vmatpush2.xpose.msra.mxu0 0.0
        %2578 = vmatprep.subr.mxu0 0.0
        %2579 = vmatpush2.xpose.msra.mxu0 0.0
        %2580 = vmatprep.subr.mxu0 0.0
        %2581 = vmatpush2.xpose.msra.mxu0 0.0
        %2582 = vmatprep.subr.mxu0 0.0
        %2583 = vmatpush2.xpose.msra.mxu0 0.0
        %2584 = vmatprep.subr.mxu0 0.0
        %2585 = vmatpush2.xpose.msra.mxu0 0.0
        %2586 = vmatprep.subr.mxu0 0.0
        %2587 = vmatpush2.xpose.msra.mxu0 0.0
        %2588 = vmatprep.mubr.f32.mxu0 0.0
        %2589 = vmatmul.mubr.f32.gmra.mxu0 %v2519
        %v2590 = vpop.f32.mrf.mxu0
        %v2591 = vadd.f32 0.0, %v2590
        %v2592 = vpop.f32.mrf.mxu0
        %2593 = vdwg.mxu0
        %v2595 = vsel %vm2137, %v1951, 0
        %v2598 = vsel %vm2137, %v2127, 0
        %2600 = vmatprep.subr.mxu0 0.0
        %2601 = vmatpush1.xpose.msra.mxu0 0.0
        %2602 = vmatprep.subr.mxu0 0.0
        %2603 = vmatpush1.xpose.msra.mxu0 0.0
        %2604 = vmatprep.subr.mxu0 0.0
        %2605 = vmatpush1.xpose.msra.mxu0 0.0
        %2606 = vmatprep.subr.mxu0 0.0
        %2607 = vmatpush1.xpose.msra.mxu0 0.0
        %2608 = vmatprep.subr.mxu0 0.0
        %2609 = vmatpush1.xpose.msra.mxu0 0.0
        %2610 = vmatprep.subr.mxu0 0.0
        %2611 = vmatpush1.xpose.msra.mxu0 0.0
        %2612 = vmatprep.subr.mxu0 0.0
        %2613 = vmatpush1.xpose.msra.mxu0 0.0
        %2614 = vmatprep.subr.mxu0 0.0
        %2615 = vmatpush1.xpose.msra.mxu0 0.0
        %2616 = vmatprep.subr.mxu0 0.0
        %2617 = vmatpush1.xpose.msra.mxu0 0.0
        %2618 = vmatprep.subr.mxu0 0.0
        %2619 = vmatpush1.xpose.msra.mxu0 0.0
        %2620 = vmatprep.subr.mxu0 0.0
        %2621 = vmatpush1.xpose.msra.mxu0 0.0
        %2622 = vmatprep.subr.mxu0 0.0
        %2623 = vmatpush1.xpose.msra.mxu0 0.0
        %2624 = vmatprep.subr.mxu0 0.0
        %2625 = vmatpush1.xpose.msra.mxu0 0.0
        %2626 = vmatprep.subr.mxu0 0.0
        %2627 = vmatpush1.xpose.msra.mxu0 0.0
        %2628 = vmatprep.subr.mxu0 0.0
        %2629 = vmatpush1.xpose.msra.mxu0 0.0
        %2630 = vmatprep.subr.mxu0 0.0
        %2631 = vmatpush1.xpose.msra.mxu0 %v2598
        %2632 = vmatprep.subr.mxu0 0.0
        %2633 = vmatpush2.xpose.msra.mxu0 0.0
        %2634 = vmatprep.subr.mxu0 0.0
        %2635 = vmatpush2.xpose.msra.mxu0 0.0
        %2636 = vmatprep.subr.mxu0 0.0
        %2637 = vmatpush2.xpose.msra.mxu0 0.0
        %2638 = vmatprep.subr.mxu0 0.0
        %2639 = vmatpush2.xpose.msra.mxu0 0.0
        %2640 = vmatprep.subr.mxu0 0.0
        %2641 = vmatpush2.xpose.msra.mxu0 0.0
        %2642 = vmatprep.subr.mxu0 0.0
        %2643 = vmatpush2.xpose.msra.mxu0 0.0
        %2644 = vmatprep.subr.mxu0 0.0
        %2645 = vmatpush2.xpose.msra.mxu0 0.0
        %2646 = vmatprep.subr.mxu0 0.0
        %2647 = vmatpush2.xpose.msra.mxu0 0.0
        %2648 = vmatprep.subr.mxu0 0.0
        %2649 = vmatpush2.xpose.msra.mxu0 0.0
        %2650 = vmatprep.subr.mxu0 0.0
        %2651 = vmatpush2.xpose.msra.mxu0 0.0
        %2652 = vmatprep.subr.mxu0 0.0
        %2653 = vmatpush2.xpose.msra.mxu0 0.0
        %2654 = vmatprep.subr.mxu0 0.0
        %2655 = vmatpush2.xpose.msra.mxu0 0.0
        %2656 = vmatprep.subr.mxu0 0.0
        %2657 = vmatpush2.xpose.msra.mxu0 0.0
        %2658 = vmatprep.subr.mxu0 0.0
        %2659 = vmatpush2.xpose.msra.mxu0 0.0
        %2660 = vmatprep.subr.mxu0 0.0
        %2661 = vmatpush2.xpose.msra.mxu0 0.0
        %2662 = vmatprep.subr.mxu0 0.0
        %2663 = vmatpush2.xpose.msra.mxu0 0.0
        %2664 = vmatprep.mubr.f32.mxu0 0.0
        %2665 = vmatmul.mubr.f32.gmra.mxu0 %v2595
        %v2666 = vpop.f32.mrf.mxu0
        %v2667 = vadd.f32 0.0, %v2666
        %v2668 = vpop.f32.mrf.mxu0
        %2669 = vdwg.mxu0
        %v2671 = vsel %vm2137, %v1952, 0
        %v2674 = vsel %vm2137, %v2128, 0
        %2676 = vmatprep.subr.mxu0 0.0
        %2677 = vmatpush1.xpose.msra.mxu0 0.0
        %2678 = vmatprep.subr.mxu0 0.0
        %2679 = vmatpush1.xpose.msra.mxu0 0.0
        %2680 = vmatprep.subr.mxu0 0.0
        %2681 = vmatpush1.xpose.msra.mxu0 0.0
        %2682 = vmatprep.subr.mxu0 0.0
        %2683 = vmatpush1.xpose.msra.mxu0 0.0
        %2684 = vmatprep.subr.mxu0 0.0
        %2685 = vmatpush1.xpose.msra.mxu0 0.0
        %2686 = vmatprep.subr.mxu0 0.0
        %2687 = vmatpush1.xpose.msra.mxu0 0.0
        %2688 = vmatprep.subr.mxu0 0.0
        %2689 = vmatpush1.xpose.msra.mxu0 0.0
        %2690 = vmatprep.subr.mxu0 0.0
        %2691 = vmatpush1.xpose.msra.mxu0 0.0
        %2692 = vmatprep.subr.mxu0 0.0
        %2693 = vmatpush1.xpose.msra.mxu0 0.0
        %2694 = vmatprep.subr.mxu0 0.0
        %2695 = vmatpush1.xpose.msra.mxu0 0.0
        %2696 = vmatprep.subr.mxu0 0.0
        %2697 = vmatpush1.xpose.msra.mxu0 0.0
        %2698 = vmatprep.subr.mxu0 0.0
        %2699 = vmatpush1.xpose.msra.mxu0 0.0
        %2700 = vmatprep.subr.mxu0 0.0
        %2701 = vmatpush1.xpose.msra.mxu0 0.0
        %2702 = vmatprep.subr.mxu0 0.0
        %2703 = vmatpush1.xpose.msra.mxu0 0.0
        %2704 = vmatprep.subr.mxu0 0.0
        %2705 = vmatpush1.xpose.msra.mxu0 0.0
        %2706 = vmatprep.subr.mxu0 0.0
        %2707 = vmatpush1.xpose.msra.mxu0 %v2674
        %2708 = vmatprep.subr.mxu0 0.0
        %2709 = vmatpush2.xpose.msra.mxu0 0.0
        %2710 = vmatprep.subr.mxu0 0.0
        %2711 = vmatpush2.xpose.msra.mxu0 0.0
        %2712 = vmatprep.subr.mxu0 0.0
        %2713 = vmatpush2.xpose.msra.mxu0 0.0
        %2714 = vmatprep.subr.mxu0 0.0
        %2715 = vmatpush2.xpose.msra.mxu0 0.0
        %2716 = vmatprep.subr.mxu0 0.0
        %2717 = vmatpush2.xpose.msra.mxu0 0.0
        %2718 = vmatprep.subr.mxu0 0.0
        %2719 = vmatpush2.xpose.msra.mxu0 0.0
        %2720 = vmatprep.subr.mxu0 0.0
        %2721 = vmatpush2.xpose.msra.mxu0 0.0
        %2722 = vmatprep.subr.mxu0 0.0
        %2723 = vmatpush2.xpose.msra.mxu0 0.0
        %2724 = vmatprep.subr.mxu0 0.0
        %2725 = vmatpush2.xpose.msra.mxu0 0.0
        %2726 = vmatprep.subr.mxu0 0.0
        %2727 = vmatpush2.xpose.msra.mxu0 0.0
        %2728 = vmatprep.subr.mxu0 0.0
        %2729 = vmatpush2.xpose.msra.mxu0 0.0
        %2730 = vmatprep.subr.mxu0 0.0
        %2731 = vmatpush2.xpose.msra.mxu0 0.0
        %2732 = vmatprep.subr.mxu0 0.0
        %2733 = vmatpush2.xpose.msra.mxu0 0.0
        %2734 = vmatprep.subr.mxu0 0.0
        %2735 = vmatpush2.xpose.msra.mxu0 0.0
        %2736 = vmatprep.subr.mxu0 0.0
        %2737 = vmatpush2.xpose.msra.mxu0 0.0
        %2738 = vmatprep.subr.mxu0 0.0
        %2739 = vmatpush2.xpose.msra.mxu0 0.0
        %2740 = vmatprep.mubr.f32.mxu0 0.0
        %2741 = vmatmul.mubr.f32.gmra.mxu0 %v2671
        %v2742 = vpop.f32.mrf.mxu0
        %v2743 = vadd.f32 0.0, %v2742
        %v2744 = vpop.f32.mrf.mxu0
        %2745 = vdwg.mxu0
        %v2747 = vsel %vm2137, %v1953, 0
        %v2750 = vsel %vm2137, %v2129, 0
        %2752 = vmatprep.subr.mxu0 0.0
        %2753 = vmatpush1.xpose.msra.mxu0 0.0
        %2754 = vmatprep.subr.mxu0 0.0
        %2755 = vmatpush1.xpose.msra.mxu0 0.0
        %2756 = vmatprep.subr.mxu0 0.0
        %2757 = vmatpush1.xpose.msra.mxu0 0.0
        %2758 = vmatprep.subr.mxu0 0.0
        %2759 = vmatpush1.xpose.msra.mxu0 0.0
        %2760 = vmatprep.subr.mxu0 0.0
        %2761 = vmatpush1.xpose.msra.mxu0 0.0
        %2762 = vmatprep.subr.mxu0 0.0
        %2763 = vmatpush1.xpose.msra.mxu0 0.0
        %2764 = vmatprep.subr.mxu0 0.0
        %2765 = vmatpush1.xpose.msra.mxu0 0.0
        %2766 = vmatprep.subr.mxu0 0.0
        %2767 = vmatpush1.xpose.msra.mxu0 0.0
        %2768 = vmatprep.subr.mxu0 0.0
        %2769 = vmatpush1.xpose.msra.mxu0 0.0
        %2770 = vmatprep.subr.mxu0 0.0
        %2771 = vmatpush1.xpose.msra.mxu0 0.0
        %2772 = vmatprep.subr.mxu0 0.0
        %2773 = vmatpush1.xpose.msra.mxu0 0.0
        %2774 = vmatprep.subr.mxu0 0.0
        %2775 = vmatpush1.xpose.msra.mxu0 0.0
        %2776 = vmatprep.subr.mxu0 0.0
        %2777 = vmatpush1.xpose.msra.mxu0 0.0
        %2778 = vmatprep.subr.mxu0 0.0
        %2779 = vmatpush1.xpose.msra.mxu0 0.0
        %2780 = vmatprep.subr.mxu0 0.0
        %2781 = vmatpush1.xpose.msra.mxu0 0.0
        %2782 = vmatprep.subr.mxu0 0.0
        %2783 = vmatpush1.xpose.msra.mxu0 %v2750
        %2784 = vmatprep.subr.mxu0 0.0
        %2785 = vmatpush2.xpose.msra.mxu0 0.0
        %2786 = vmatprep.subr.mxu0 0.0
        %2787 = vmatpush2.xpose.msra.mxu0 0.0
        %2788 = vmatprep.subr.mxu0 0.0
        %2789 = vmatpush2.xpose.msra.mxu0 0.0
        %2790 = vmatprep.subr.mxu0 0.0
        %2791 = vmatpush2.xpose.msra.mxu0 0.0
        %2792 = vmatprep.subr.mxu0 0.0
        %2793 = vmatpush2.xpose.msra.mxu0 0.0
        %2794 = vmatprep.subr.mxu0 0.0
        %2795 = vmatpush2.xpose.msra.mxu0 0.0
        %2796 = vmatprep.subr.mxu0 0.0
        %2797 = vmatpush2.xpose.msra.mxu0 0.0
        %2798 = vmatprep.subr.mxu0 0.0
        %2799 = vmatpush2.xpose.msra.mxu0 0.0
        %2800 = vmatprep.subr.mxu0 0.0
        %2801 = vmatpush2.xpose.msra.mxu0 0.0
        %2802 = vmatprep.subr.mxu0 0.0
        %2803 = vmatpush2.xpose.msra.mxu0 0.0
        %2804 = vmatprep.subr.mxu0 0.0
        %2805 = vmatpush2.xpose.msra.mxu0 0.0
        %2806 = vmatprep.subr.mxu0 0.0
        %2807 = vmatpush2.xpose.msra.mxu0 0.0
        %2808 = vmatprep.subr.mxu0 0.0
        %2809 = vmatpush2.xpose.msra.mxu0 0.0
        %2810 = vmatprep.subr.mxu0 0.0
        %2811 = vmatpush2.xpose.msra.mxu0 0.0
        %2812 = vmatprep.subr.mxu0 0.0
        %2813 = vmatpush2.xpose.msra.mxu0 0.0
        %2814 = vmatprep.subr.mxu0 0.0
        %2815 = vmatpush2.xpose.msra.mxu0 0.0
        %2816 = vmatprep.mubr.f32.mxu0 0.0
        %2817 = vmatmul.mubr.f32.gmra.mxu0 %v2747
        %v2818 = vpop.f32.mrf.mxu0
        %v2819 = vadd.f32 0.0, %v2818
        %v2820 = vpop.f32.mrf.mxu0
        %2821 = vdwg.mxu0
        %v2823 = vsel %vm2137, %v1954, 0
        %v2826 = vsel %vm2137, %v2130, 0
        %2828 = vmatprep.subr.mxu0 0.0
        %2829 = vmatpush1.xpose.msra.mxu0 0.0
        %2830 = vmatprep.subr.mxu0 0.0
        %2831 = vmatpush1.xpose.msra.mxu0 0.0
        %2832 = vmatprep.subr.mxu0 0.0
        %2833 = vmatpush1.xpose.msra.mxu0 0.0
        %2834 = vmatprep.subr.mxu0 0.0
        %2835 = vmatpush1.xpose.msra.mxu0 0.0
        %2836 = vmatprep.subr.mxu0 0.0
        %2837 = vmatpush1.xpose.msra.mxu0 0.0
        %2838 = vmatprep.subr.mxu0 0.0
        %2839 = vmatpush1.xpose.msra.mxu0 0.0
        %2840 = vmatprep.subr.mxu0 0.0
        %2841 = vmatpush1.xpose.msra.mxu0 0.0
        %2842 = vmatprep.subr.mxu0 0.0
        %2843 = vmatpush1.xpose.msra.mxu0 0.0
        %2844 = vmatprep.subr.mxu0 0.0
        %2845 = vmatpush1.xpose.msra.mxu0 0.0
        %2846 = vmatprep.subr.mxu0 0.0
        %2847 = vmatpush1.xpose.msra.mxu0 0.0
        %2848 = vmatprep.subr.mxu0 0.0
        %2849 = vmatpush1.xpose.msra.mxu0 0.0
        %2850 = vmatprep.subr.mxu0 0.0
        %2851 = vmatpush1.xpose.msra.mxu0 0.0
        %2852 = vmatprep.subr.mxu0 0.0
        %2853 = vmatpush1.xpose.msra.mxu0 0.0
        %2854 = vmatprep.subr.mxu0 0.0
        %2855 = vmatpush1.xpose.msra.mxu0 0.0
        %2856 = vmatprep.subr.mxu0 0.0
        %2857 = vmatpush1.xpose.msra.mxu0 0.0
        %2858 = vmatprep.subr.mxu0 0.0
        %2859 = vmatpush1.xpose.msra.mxu0 %v2826
        %2860 = vmatprep.subr.mxu0 0.0
        %2861 = vmatpush2.xpose.msra.mxu0 0.0
        %2862 = vmatprep.subr.mxu0 0.0
        %2863 = vmatpush2.xpose.msra.mxu0 0.0
        %2864 = vmatprep.subr.mxu0 0.0
        %2865 = vmatpush2.xpose.msra.mxu0 0.0
        %2866 = vmatprep.subr.mxu0 0.0
        %2867 = vmatpush2.xpose.msra.mxu0 0.0
        %2868 = vmatprep.subr.mxu0 0.0
        %2869 = vmatpush2.xpose.msra.mxu0 0.0
        %2870 = vmatprep.subr.mxu0 0.0
        %2871 = vmatpush2.xpose.msra.mxu0 0.0
        %2872 = vmatprep.subr.mxu0 0.0
        %2873 = vmatpush2.xpose.msra.mxu0 0.0
        %2874 = vmatprep.subr.mxu0 0.0
        %2875 = vmatpush2.xpose.msra.mxu0 0.0
        %2876 = vmatprep.subr.mxu0 0.0
        %2877 = vmatpush2.xpose.msra.mxu0 0.0
        %2878 = vmatprep.subr.mxu0 0.0
        %2879 = vmatpush2.xpose.msra.mxu0 0.0
        %2880 = vmatprep.subr.mxu0 0.0
        %2881 = vmatpush2.xpose.msra.mxu0 0.0
        %2882 = vmatprep.subr.mxu0 0.0
        %2883 = vmatpush2.xpose.msra.mxu0 0.0
        %2884 = vmatprep.subr.mxu0 0.0
        %2885 = vmatpush2.xpose.msra.mxu0 0.0
        %2886 = vmatprep.subr.mxu0 0.0
        %2887 = vmatpush2.xpose.msra.mxu0 0.0
        %2888 = vmatprep.subr.mxu0 0.0
        %2889 = vmatpush2.xpose.msra.mxu0 0.0
        %2890 = vmatprep.subr.mxu0 0.0
        %2891 = vmatpush2.xpose.msra.mxu0 0.0
        %2892 = vmatprep.mubr.f32.mxu0 0.0
        %2893 = vmatmul.mubr.f32.gmra.mxu0 %v2823
        %v2894 = vpop.f32.mrf.mxu0
        %v2895 = vadd.f32 0.0, %v2894
        %v2896 = vpop.f32.mrf.mxu0
        %2897 = vdwg.mxu0
        %v2899 = vsel %vm2137, %v1955, 0
        %v2902 = vsel %vm2137, %v2131, 0
        %2904 = vmatprep.subr.mxu0 0.0
        %2905 = vmatpush1.xpose.msra.mxu0 0.0
        %2906 = vmatprep.subr.mxu0 0.0
        %2907 = vmatpush1.xpose.msra.mxu0 0.0
        %2908 = vmatprep.subr.mxu0 0.0
        %2909 = vmatpush1.xpose.msra.mxu0 0.0
        %2910 = vmatprep.subr.mxu0 0.0
        %2911 = vmatpush1.xpose.msra.mxu0 0.0
        %2912 = vmatprep.subr.mxu0 0.0
        %2913 = vmatpush1.xpose.msra.mxu0 0.0
        %2914 = vmatprep.subr.mxu0 0.0
        %2915 = vmatpush1.xpose.msra.mxu0 0.0
        %2916 = vmatprep.subr.mxu0 0.0
        %2917 = vmatpush1.xpose.msra.mxu0 0.0
        %2918 = vmatprep.subr.mxu0 0.0
        %2919 = vmatpush1.xpose.msra.mxu0 0.0
        %2920 = vmatprep.subr.mxu0 0.0
        %2921 = vmatpush1.xpose.msra.mxu0 0.0
        %2922 = vmatprep.subr.mxu0 0.0
        %2923 = vmatpush1.xpose.msra.mxu0 0.0
        %2924 = vmatprep.subr.mxu0 0.0
        %2925 = vmatpush1.xpose.msra.mxu0 0.0
        %2926 = vmatprep.subr.mxu0 0.0
        %2927 = vmatpush1.xpose.msra.mxu0 0.0
        %2928 = vmatprep.subr.mxu0 0.0
        %2929 = vmatpush1.xpose.msra.mxu0 0.0
        %2930 = vmatprep.subr.mxu0 0.0
        %2931 = vmatpush1.xpose.msra.mxu0 0.0
        %2932 = vmatprep.subr.mxu0 0.0
        %2933 = vmatpush1.xpose.msra.mxu0 0.0
        %2934 = vmatprep.subr.mxu0 0.0
        %2935 = vmatpush1.xpose.msra.mxu0 %v2902
        %2936 = vmatprep.subr.mxu0 0.0
        %2937 = vmatpush2.xpose.msra.mxu0 0.0
        %2938 = vmatprep.subr.mxu0 0.0
        %2939 = vmatpush2.xpose.msra.mxu0 0.0
        %2940 = vmatprep.subr.mxu0 0.0
        %2941 = vmatpush2.xpose.msra.mxu0 0.0
        %2942 = vmatprep.subr.mxu0 0.0
        %2943 = vmatpush2.xpose.msra.mxu0 0.0
        %2944 = vmatprep.subr.mxu0 0.0
        %2945 = vmatpush2.xpose.msra.mxu0 0.0
        %2946 = vmatprep.subr.mxu0 0.0
        %2947 = vmatpush2.xpose.msra.mxu0 0.0
        %2948 = vmatprep.subr.mxu0 0.0
        %2949 = vmatpush2.xpose.msra.mxu0 0.0
        %2950 = vmatprep.subr.mxu0 0.0
        %2951 = vmatpush2.xpose.msra.mxu0 0.0
        %2952 = vmatprep.subr.mxu0 0.0
        %2953 = vmatpush2.xpose.msra.mxu0 0.0
        %2954 = vmatprep.subr.mxu0 0.0
        %2955 = vmatpush2.xpose.msra.mxu0 0.0
        %2956 = vmatprep.subr.mxu0 0.0
        %2957 = vmatpush2.xpose.msra.mxu0 0.0
        %2958 = vmatprep.subr.mxu0 0.0
        %2959 = vmatpush2.xpose.msra.mxu0 0.0
        %2960 = vmatprep.subr.mxu0 0.0
        %2961 = vmatpush2.xpose.msra.mxu0 0.0
        %2962 = vmatprep.subr.mxu0 0.0
        %2963 = vmatpush2.xpose.msra.mxu0 0.0
        %2964 = vmatprep.subr.mxu0 0.0
        %2965 = vmatpush2.xpose.msra.mxu0 0.0
        %2966 = vmatprep.subr.mxu0 0.0
        %2967 = vmatpush2.xpose.msra.mxu0 0.0
        %2968 = vmatprep.mubr.f32.mxu0 0.0
        %2969 = vmatmul.mubr.f32.gmra.mxu0 %v2899
        %v2970 = vpop.f32.mrf.mxu0
        %v2971 = vadd.f32 0.0, %v2970
        %v2972 = vpop.f32.mrf.mxu0
        %2973 = vdwg.mxu0
        %v2975 = vsel %vm2137, %v1956, 0
        %v2978 = vsel %vm2137, %v2132, 0
        %2980 = vmatprep.subr.mxu0 0.0
        %2981 = vmatpush1.xpose.msra.mxu0 0.0
        %2982 = vmatprep.subr.mxu0 0.0
        %2983 = vmatpush1.xpose.msra.mxu0 0.0
        %2984 = vmatprep.subr.mxu0 0.0
        %2985 = vmatpush1.xpose.msra.mxu0 0.0
        %2986 = vmatprep.subr.mxu0 0.0
        %2987 = vmatpush1.xpose.msra.mxu0 0.0
        %2988 = vmatprep.subr.mxu0 0.0
        %2989 = vmatpush1.xpose.msra.mxu0 0.0
        %2990 = vmatprep.subr.mxu0 0.0
        %2991 = vmatpush1.xpose.msra.mxu0 0.0
        %2992 = vmatprep.subr.mxu0 0.0
        %2993 = vmatpush1.xpose.msra.mxu0 0.0
        %2994 = vmatprep.subr.mxu0 0.0
        %2995 = vmatpush1.xpose.msra.mxu0 0.0
        %2996 = vmatprep.subr.mxu0 0.0
        %2997 = vmatpush1.xpose.msra.mxu0 0.0
        %2998 = vmatprep.subr.mxu0 0.0
        %2999 = vmatpush1.xpose.msra.mxu0 0.0
        %3000 = vmatprep.subr.mxu0 0.0
        %3001 = vmatpush1.xpose.msra.mxu0 0.0
        %3002 = vmatprep.subr.mxu0 0.0
        %3003 = vmatpush1.xpose.msra.mxu0 0.0
        %3004 = vmatprep.subr.mxu0 0.0
        %3005 = vmatpush1.xpose.msra.mxu0 0.0
        %3006 = vmatprep.subr.mxu0 0.0
        %3007 = vmatpush1.xpose.msra.mxu0 0.0
        %3008 = vmatprep.subr.mxu0 0.0
        %3009 = vmatpush1.xpose.msra.mxu0 0.0
        %3010 = vmatprep.subr.mxu0 0.0
        %3011 = vmatpush1.xpose.msra.mxu0 %v2978
        %3012 = vmatprep.subr.mxu0 0.0
        %3013 = vmatpush2.xpose.msra.mxu0 0.0
        %3014 = vmatprep.subr.mxu0 0.0
        %3015 = vmatpush2.xpose.msra.mxu0 0.0
        %3016 = vmatprep.subr.mxu0 0.0
        %3017 = vmatpush2.xpose.msra.mxu0 0.0
        %3018 = vmatprep.subr.mxu0 0.0
        %3019 = vmatpush2.xpose.msra.mxu0 0.0
        %3020 = vmatprep.subr.mxu0 0.0
        %3021 = vmatpush2.xpose.msra.mxu0 0.0
        %3022 = vmatprep.subr.mxu0 0.0
        %3023 = vmatpush2.xpose.msra.mxu0 0.0
        %3024 = vmatprep.subr.mxu0 0.0
        %3025 = vmatpush2.xpose.msra.mxu0 0.0
        %3026 = vmatprep.subr.mxu0 0.0
        %3027 = vmatpush2.xpose.msra.mxu0 0.0
        %3028 = vmatprep.subr.mxu0 0.0
        %3029 = vmatpush2.xpose.msra.mxu0 0.0
        %3030 = vmatprep.subr.mxu0 0.0
        %3031 = vmatpush2.xpose.msra.mxu0 0.0
        %3032 = vmatprep.subr.mxu0 0.0
        %3033 = vmatpush2.xpose.msra.mxu0 0.0
        %3034 = vmatprep.subr.mxu0 0.0
        %3035 = vmatpush2.xpose.msra.mxu0 0.0
        %3036 = vmatprep.subr.mxu0 0.0
        %3037 = vmatpush2.xpose.msra.mxu0 0.0
        %3038 = vmatprep.subr.mxu0 0.0
        %3039 = vmatpush2.xpose.msra.mxu0 0.0
        %3040 = vmatprep.subr.mxu0 0.0
        %3041 = vmatpush2.xpose.msra.mxu0 0.0
        %3042 = vmatprep.subr.mxu0 0.0
        %3043 = vmatpush2.xpose.msra.mxu0 0.0
        %3044 = vmatprep.mubr.f32.mxu0 0.0
        %3045 = vmatmul.mubr.f32.gmra.mxu0 %v2975
        %v3046 = vpop.f32.mrf.mxu0
        %v3047 = vadd.f32 0.0, %v3046
        %v3048 = vpop.f32.mrf.mxu0
        %3049 = vdwg.mxu0
        %v3051 = vsel %vm2137, %v1957, 0
        %v3054 = vsel %vm2137, %v2133, 0
        %3056 = vmatprep.subr.mxu0 0.0
        %3057 = vmatpush1.xpose.msra.mxu0 0.0
        %3058 = vmatprep.subr.mxu0 0.0
        %3059 = vmatpush1.xpose.msra.mxu0 0.0
        %3060 = vmatprep.subr.mxu0 0.0
        %3061 = vmatpush1.xpose.msra.mxu0 0.0
        %3062 = vmatprep.subr.mxu0 0.0
        %3063 = vmatpush1.xpose.msra.mxu0 0.0
        %3064 = vmatprep.subr.mxu0 0.0
        %3065 = vmatpush1.xpose.msra.mxu0 0.0
        %3066 = vmatprep.subr.mxu0 0.0
        %3067 = vmatpush1.xpose.msra.mxu0 0.0
        %3068 = vmatprep.subr.mxu0 0.0
        %3069 = vmatpush1.xpose.msra.mxu0 0.0
        %3070 = vmatprep.subr.mxu0 0.0
        %3071 = vmatpush1.xpose.msra.mxu0 0.0
        %3072 = vmatprep.subr.mxu0 0.0
        %3073 = vmatpush1.xpose.msra.mxu0 0.0
        %3074 = vmatprep.subr.mxu0 0.0
        %3075 = vmatpush1.xpose.msra.mxu0 0.0
        %3076 = vmatprep.subr.mxu0 0.0
        %3077 = vmatpush1.xpose.msra.mxu0 0.0
        %3078 = vmatprep.subr.mxu0 0.0
        %3079 = vmatpush1.xpose.msra.mxu0 0.0
        %3080 = vmatprep.subr.mxu0 0.0
        %3081 = vmatpush1.xpose.msra.mxu0 0.0
        %3082 = vmatprep.subr.mxu0 0.0
        %3083 = vmatpush1.xpose.msra.mxu0 0.0
        %3084 = vmatprep.subr.mxu0 0.0
        %3085 = vmatpush1.xpose.msra.mxu0 0.0
        %3086 = vmatprep.subr.mxu0 0.0
        %3087 = vmatpush1.xpose.msra.mxu0 %v3054
        %3088 = vmatprep.subr.mxu0 0.0
        %3089 = vmatpush2.xpose.msra.mxu0 0.0
        %3090 = vmatprep.subr.mxu0 0.0
        %3091 = vmatpush2.xpose.msra.mxu0 0.0
        %3092 = vmatprep.subr.mxu0 0.0
        %3093 = vmatpush2.xpose.msra.mxu0 0.0
        %3094 = vmatprep.subr.mxu0 0.0
        %3095 = vmatpush2.xpose.msra.mxu0 0.0
        %3096 = vmatprep.subr.mxu0 0.0
        %3097 = vmatpush2.xpose.msra.mxu0 0.0
        %3098 = vmatprep.subr.mxu0 0.0
        %3099 = vmatpush2.xpose.msra.mxu0 0.0
        %3100 = vmatprep.subr.mxu0 0.0
        %3101 = vmatpush2.xpose.msra.mxu0 0.0
        %3102 = vmatprep.subr.mxu0 0.0
        %3103 = vmatpush2.xpose.msra.mxu0 0.0
        %3104 = vmatprep.subr.mxu0 0.0
        %3105 = vmatpush2.xpose.msra.mxu0 0.0
        %3106 = vmatprep.subr.mxu0 0.0
        %3107 = vmatpush2.xpose.msra.mxu0 0.0
        %3108 = vmatprep.subr.mxu0 0.0
        %3109 = vmatpush2.xpose.msra.mxu0 0.0
        %3110 = vmatprep.subr.mxu0 0.0
        %3111 = vmatpush2.xpose.msra.mxu0 0.0
        %3112 = vmatprep.subr.mxu0 0.0
        %3113 = vmatpush2.xpose.msra.mxu0 0.0
        %3114 = vmatprep.subr.mxu0 0.0
        %3115 = vmatpush2.xpose.msra.mxu0 0.0
        %3116 = vmatprep.subr.mxu0 0.0
        %3117 = vmatpush2.xpose.msra.mxu0 0.0
        %3118 = vmatprep.subr.mxu0 0.0
        %3119 = vmatpush2.xpose.msra.mxu0 0.0
        %3120 = vmatprep.mubr.f32.mxu0 0.0
        %3121 = vmatmul.mubr.f32.gmra.mxu0 %v3051
        %v3122 = vpop.f32.mrf.mxu0
        %v3123 = vadd.f32 0.0, %v3122
        %v3124 = vpop.f32.mrf.mxu0
        %3125 = vdwg.mxu0
        %v3127 = vsel %vm2137, %v1958, 0
        %v3130 = vsel %vm2137, %v2134, 0
        %3132 = vmatprep.subr.mxu0 0.0
        %3133 = vmatpush1.xpose.msra.mxu0 0.0
        %3134 = vmatprep.subr.mxu0 0.0
        %3135 = vmatpush1.xpose.msra.mxu0 0.0
        %3136 = vmatprep.subr.mxu0 0.0
        %3137 = vmatpush1.xpose.msra.mxu0 0.0
        %3138 = vmatprep.subr.mxu0 0.0
        %3139 = vmatpush1.xpose.msra.mxu0 0.0
        %3140 = vmatprep.subr.mxu0 0.0
        %3141 = vmatpush1.xpose.msra.mxu0 0.0
        %3142 = vmatprep.subr.mxu0 0.0
        %3143 = vmatpush1.xpose.msra.mxu0 0.0
        %3144 = vmatprep.subr.mxu0 0.0
        %3145 = vmatpush1.xpose.msra.mxu0 0.0
        %3146 = vmatprep.subr.mxu0 0.0
        %3147 = vmatpush1.xpose.msra.mxu0 0.0
        %3148 = vmatprep.subr.mxu0 0.0
        %3149 = vmatpush1.xpose.msra.mxu0 0.0
        %3150 = vmatprep.subr.mxu0 0.0
        %3151 = vmatpush1.xpose.msra.mxu0 0.0
        %3152 = vmatprep.subr.mxu0 0.0
        %3153 = vmatpush1.xpose.msra.mxu0 0.0
        %3154 = vmatprep.subr.mxu0 0.0
        %3155 = vmatpush1.xpose.msra.mxu0 0.0
        %3156 = vmatprep.subr.mxu0 0.0
        %3157 = vmatpush1.xpose.msra.mxu0 0.0
        %3158 = vmatprep.subr.mxu0 0.0
        %3159 = vmatpush1.xpose.msra.mxu0 0.0
        %3160 = vmatprep.subr.mxu0 0.0
        %3161 = vmatpush1.xpose.msra.mxu0 0.0
        %3162 = vmatprep.subr.mxu0 0.0
        %3163 = vmatpush1.xpose.msra.mxu0 %v3130
        %3164 = vmatprep.subr.mxu0 0.0
        %3165 = vmatpush2.xpose.msra.mxu0 0.0
        %3166 = vmatprep.subr.mxu0 0.0
        %3167 = vmatpush2.xpose.msra.mxu0 0.0
        %3168 = vmatprep.subr.mxu0 0.0
        %3169 = vmatpush2.xpose.msra.mxu0 0.0
        %3170 = vmatprep.subr.mxu0 0.0
        %3171 = vmatpush2.xpose.msra.mxu0 0.0
        %3172 = vmatprep.subr.mxu0 0.0
        %3173 = vmatpush2.xpose.msra.mxu0 0.0
        %3174 = vmatprep.subr.mxu0 0.0
        %3175 = vmatpush2.xpose.msra.mxu0 0.0
        %3176 = vmatprep.subr.mxu0 0.0
        %3177 = vmatpush2.xpose.msra.mxu0 0.0
        %3178 = vmatprep.subr.mxu0 0.0
        %3179 = vmatpush2.xpose.msra.mxu0 0.0
        %3180 = vmatprep.subr.mxu0 0.0
        %3181 = vmatpush2.xpose.msra.mxu0 0.0
        %3182 = vmatprep.subr.mxu0 0.0
        %3183 = vmatpush2.xpose.msra.mxu0 0.0
        %3184 = vmatprep.subr.mxu0 0.0
        %3185 = vmatpush2.xpose.msra.mxu0 0.0
        %3186 = vmatprep.subr.mxu0 0.0
        %3187 = vmatpush2.xpose.msra.mxu0 0.0
        %3188 = vmatprep.subr.mxu0 0.0
        %3189 = vmatpush2.xpose.msra.mxu0 0.0
        %3190 = vmatprep.subr.mxu0 0.0
        %3191 = vmatpush2.xpose.msra.mxu0 0.0
        %3192 = vmatprep.subr.mxu0 0.0
        %3193 = vmatpush2.xpose.msra.mxu0 0.0
        %3194 = vmatprep.subr.mxu0 0.0
        %3195 = vmatpush2.xpose.msra.mxu0 0.0
        %3196 = vmatprep.mubr.f32.mxu0 0.0
        %3197 = vmatmul.mubr.f32.gmra.mxu0 %v3127
        %v3198 = vpop.f32.mrf.mxu0
        %v3199 = vadd.f32 0.0, %v3198
        %v3200 = vpop.f32.mrf.mxu0
        %3201 = vdwg.mxu0
        %v3203 = vsel %vm2137, %v1959, 0
        %v3206 = vsel %vm2137, %v2135, 0
        %3208 = vmatprep.subr.mxu0 0.0
        %3209 = vmatpush1.xpose.msra.mxu0 0.0
        %3210 = vmatprep.subr.mxu0 0.0
        %3211 = vmatpush1.xpose.msra.mxu0 0.0
        %3212 = vmatprep.subr.mxu0 0.0
        %3213 = vmatpush1.xpose.msra.mxu0 0.0
        %3214 = vmatprep.subr.mxu0 0.0
        %3215 = vmatpush1.xpose.msra.mxu0 0.0
        %3216 = vmatprep.subr.mxu0 0.0
        %3217 = vmatpush1.xpose.msra.mxu0 0.0
        %3218 = vmatprep.subr.mxu0 0.0
        %3219 = vmatpush1.xpose.msra.mxu0 0.0
        %3220 = vmatprep.subr.mxu0 0.0
        %3221 = vmatpush1.xpose.msra.mxu0 0.0
        %3222 = vmatprep.subr.mxu0 0.0
        %3223 = vmatpush1.xpose.msra.mxu0 0.0
        %3224 = vmatprep.subr.mxu0 0.0
        %3225 = vmatpush1.xpose.msra.mxu0 0.0
        %3226 = vmatprep.subr.mxu0 0.0
        %3227 = vmatpush1.xpose.msra.mxu0 0.0
        %3228 = vmatprep.subr.mxu0 0.0
        %3229 = vmatpush1.xpose.msra.mxu0 0.0
        %3230 = vmatprep.subr.mxu0 0.0
        %3231 = vmatpush1.xpose.msra.mxu0 0.0
        %3232 = vmatprep.subr.mxu0 0.0
        %3233 = vmatpush1.xpose.msra.mxu0 0.0
        %3234 = vmatprep.subr.mxu0 0.0
        %3235 = vmatpush1.xpose.msra.mxu0 0.0
        %3236 = vmatprep.subr.mxu0 0.0
        %3237 = vmatpush1.xpose.msra.mxu0 0.0
        %3238 = vmatprep.subr.mxu0 0.0
        %3239 = vmatpush1.xpose.msra.mxu0 %v3206
        %3240 = vmatprep.subr.mxu0 0.0
        %3241 = vmatpush2.xpose.msra.mxu0 0.0
        %3242 = vmatprep.subr.mxu0 0.0
        %3243 = vmatpush2.xpose.msra.mxu0 0.0
        %3244 = vmatprep.subr.mxu0 0.0
        %3245 = vmatpush2.xpose.msra.mxu0 0.0
        %3246 = vmatprep.subr.mxu0 0.0
        %3247 = vmatpush2.xpose.msra.mxu0 0.0
        %3248 = vmatprep.subr.mxu0 0.0
        %3249 = vmatpush2.xpose.msra.mxu0 0.0
        %3250 = vmatprep.subr.mxu0 0.0
        %3251 = vmatpush2.xpose.msra.mxu0 0.0
        %3252 = vmatprep.subr.mxu0 0.0
        %3253 = vmatpush2.xpose.msra.mxu0 0.0
        %3254 = vmatprep.subr.mxu0 0.0
        %3255 = vmatpush2.xpose.msra.mxu0 0.0
        %3256 = vmatprep.subr.mxu0 0.0
        %3257 = vmatpush2.xpose.msra.mxu0 0.0
        %3258 = vmatprep.subr.mxu0 0.0
        %3259 = vmatpush2.xpose.msra.mxu0 0.0
        %3260 = vmatprep.subr.mxu0 0.0
        %3261 = vmatpush2.xpose.msra.mxu0 0.0
        %3262 = vmatprep.subr.mxu0 0.0
        %3263 = vmatpush2.xpose.msra.mxu0 0.0
        %3264 = vmatprep.subr.mxu0 0.0
        %3265 = vmatpush2.xpose.msra.mxu0 0.0
        %3266 = vmatprep.subr.mxu0 0.0
        %3267 = vmatpush2.xpose.msra.mxu0 0.0
        %3268 = vmatprep.subr.mxu0 0.0
        %3269 = vmatpush2.xpose.msra.mxu0 0.0
        %3270 = vmatprep.subr.mxu0 0.0
        %3271 = vmatpush2.xpose.msra.mxu0 0.0
        %3272 = vmatprep.mubr.f32.mxu0 0.0
        %3273 = vmatmul.mubr.f32.gmra.mxu0 %v3203
        %v3274 = vpop.f32.mrf.mxu0
        %v3275 = vadd.f32 0.0, %v3274
        %v3276 = vpop.f32.mrf.mxu0
        %3277 = vdwg.mxu0
        %v3279 = vsel %vm2137, %v1960, 0
        %v3282 = vsel %vm2137, %v2136, 0
        %3284 = vmatprep.subr.mxu0 0.0
        %3285 = vmatpush1.xpose.msra.mxu0 0.0
        %3286 = vmatprep.subr.mxu0 0.0
        %3287 = vmatpush1.xpose.msra.mxu0 0.0
        %3288 = vmatprep.subr.mxu0 0.0
        %3289 = vmatpush1.xpose.msra.mxu0 0.0
        %3290 = vmatprep.subr.mxu0 0.0
        %3291 = vmatpush1.xpose.msra.mxu0 0.0
        %3292 = vmatprep.subr.mxu0 0.0
        %3293 = vmatpush1.xpose.msra.mxu0 0.0
        %3294 = vmatprep.subr.mxu0 0.0
        %3295 = vmatpush1.xpose.msra.mxu0 0.0
        %3296 = vmatprep.subr.mxu0 0.0
        %3297 = vmatpush1.xpose.msra.mxu0 0.0
        %3298 = vmatprep.subr.mxu0 0.0
        %3299 = vmatpush1.xpose.msra.mxu0 0.0
        %3300 = vmatprep.subr.mxu0 0.0
        %3301 = vmatpush1.xpose.msra.mxu0 0.0
        %3302 = vmatprep.subr.mxu0 0.0
        %3303 = vmatpush1.xpose.msra.mxu0 0.0
        %3304 = vmatprep.subr.mxu0 0.0
        %3305 = vmatpush1.xpose.msra.mxu0 0.0
        %3306 = vmatprep.subr.mxu0 0.0
        %3307 = vmatpush1.xpose.msra.mxu0 0.0
        %3308 = vmatprep.subr.mxu0 0.0
        %3309 = vmatpush1.xpose.msra.mxu0 0.0
        %3310 = vmatprep.subr.mxu0 0.0
        %3311 = vmatpush1.xpose.msra.mxu0 0.0
        %3312 = vmatprep.subr.mxu0 0.0
        %3313 = vmatpush1.xpose.msra.mxu0 0.0
        %3314 = vmatprep.subr.mxu0 0.0
        %3315 = vmatpush1.xpose.msra.mxu0 %v3282
        %3316 = vmatprep.subr.mxu0 0.0
        %3317 = vmatpush2.xpose.msra.mxu0 0.0
        %3318 = vmatprep.subr.mxu0 0.0
        %3319 = vmatpush2.xpose.msra.mxu0 0.0
        %3320 = vmatprep.subr.mxu0 0.0
        %3321 = vmatpush2.xpose.msra.mxu0 0.0
        %3322 = vmatprep.subr.mxu0 0.0
        %3323 = vmatpush2.xpose.msra.mxu0 0.0
        %3324 = vmatprep.subr.mxu0 0.0
        %3325 = vmatpush2.xpose.msra.mxu0 0.0
        %3326 = vmatprep.subr.mxu0 0.0
        %3327 = vmatpush2.xpose.msra.mxu0 0.0
        %3328 = vmatprep.subr.mxu0 0.0
        %3329 = vmatpush2.xpose.msra.mxu0 0.0
        %3330 = vmatprep.subr.mxu0 0.0
        %3331 = vmatpush2.xpose.msra.mxu0 0.0
        %3332 = vmatprep.subr.mxu0 0.0
        %3333 = vmatpush2.xpose.msra.mxu0 0.0
        %3334 = vmatprep.subr.mxu0 0.0
        %3335 = vmatpush2.xpose.msra.mxu0 0.0
        %3336 = vmatprep.subr.mxu0 0.0
        %3337 = vmatpush2.xpose.msra.mxu0 0.0
        %3338 = vmatprep.subr.mxu0 0.0
        %3339 = vmatpush2.xpose.msra.mxu0 0.0
        %3340 = vmatprep.subr.mxu0 0.0
        %3341 = vmatpush2.xpose.msra.mxu0 0.0
        %3342 = vmatprep.subr.mxu0 0.0
        %3343 = vmatpush2.xpose.msra.mxu0 0.0
        %3344 = vmatprep.subr.mxu0 0.0
        %3345 = vmatpush2.xpose.msra.mxu0 0.0
        %3346 = vmatprep.subr.mxu0 0.0
        %3347 = vmatpush2.xpose.msra.mxu0 0.0
        %3348 = vmatprep.mubr.f32.mxu0 0.0
        %3349 = vmatmul.mubr.f32.gmra.mxu0 %v3279
        %v3350 = vpop.f32.mrf.mxu0
        %v3351 = vadd.f32 0.0, %v3350
        %v3352 = vpop.f32.mrf.mxu0
        %3353 = vdwg.mxu0
        %v3354 = vmul.f32 %v2211, 0.35355338
        %v3355 = vmul.f32 %v2287, 0.35355338
        %v3356 = vmul.f32 %v2363, 0.35355338
        %v3357 = vmul.f32 %v2439, 0.35355338
        %v3358 = vmul.f32 %v2515, 0.35355338
        %v3359 = vmul.f32 %v2591, 0.35355338
        %v3360 = vmul.f32 %v2667, 0.35355338
        %v3361 = vmul.f32 %v2743, 0.35355338
        %v3362 = vmul.f32 %v2819, 0.35355338
        %v3363 = vmul.f32 %v2895, 0.35355338
        %v3364 = vmul.f32 %v2971, 0.35355338
        %v3365 = vmul.f32 %v3047, 0.35355338
        %v3366 = vmul.f32 %v3123, 0.35355338
        %v3367 = vmul.f32 %v3199, 0.35355338
        %v3368 = vmul.f32 %v3275, 0.35355338
        %v3369 = vmul.f32 %v3351, 0.35355338
        %vm3370 = vcmask 11264
        %v3371 = vsel %vm3370, %v3354, -inf
        %3372 = vmax.xlane.f32.xlu0 %v3371
        %v3373 = vpop.xlane.xlu0 %3372
        %v3374 = vsel %vm3370, %v3355, -inf
        %3375 = vmax.xlane.f32.xlu0 %v3374
        %v3376 = vpop.xlane.xlu0 %3375
        %v3377 = vsel %vm3370, %v3356, -inf
        %3378 = vmax.xlane.f32.xlu0 %v3377
        %v3379 = vpop.xlane.xlu0 %3378
        %v3380 = vsel %vm3370, %v3357, -inf
        %3381 = vmax.xlane.f32.xlu0 %v3380
        %v3382 = vpop.xlane.xlu0 %3381
        %v3383 = vsel %vm3370, %v3358, -inf
        %3384 = vmax.xlane.f32.xlu0 %v3383
        %v3385 = vpop.xlane.xlu0 %3384
        %v3386 = vsel %vm3370, %v3359, -inf
        %3387 = vmax.xlane.f32.xlu0 %v3386
        %v3388 = vpop.xlane.xlu0 %3387
        %v3389 = vsel %vm3370, %v3360, -inf
        %3390 = vmax.xlane.f32.xlu0 %v3389
        %v3391 = vpop.xlane.xlu0 %3390
        %v3392 = vsel %vm3370, %v3361, -inf
        %3393 = vmax.xlane.f32.xlu0 %v3392
        %v3394 = vpop.xlane.xlu0 %3393
        %v3395 = vsel %vm3370, %v3362, -inf
        %3396 = vmax.xlane.f32.xlu0 %v3395
        %v3397 = vpop.xlane.xlu0 %3396
        %v3398 = vsel %vm3370, %v3363, -inf
        %3399 = vmax.xlane.f32.xlu0 %v3398
        %v3400 = vpop.xlane.xlu0 %3399
        %v3401 = vsel %vm3370, %v3364, -inf
        %3402 = vmax.xlane.f32.xlu0 %v3401
        %v3403 = vpop.xlane.xlu0 %3402
        %v3404 = vsel %vm3370, %v3365, -inf
        %3405 = vmax.xlane.f32.xlu0 %v3404
        %v3406 = vpop.xlane.xlu0 %3405
        %v3407 = vsel %vm3370, %v3366, -inf
        %3408 = vmax.xlane.f32.xlu0 %v3407
        %v3409 = vpop.xlane.xlu0 %3408
        %v3410 = vsel %vm3370, %v3367, -inf
        %3411 = vmax.xlane.f32.xlu0 %v3410
        %v3412 = vpop.xlane.xlu0 %3411
        %v3413 = vsel %vm3370, %v3368, -inf
        %3414 = vmax.xlane.f32.xlu0 %v3413
        %v3415 = vpop.xlane.xlu0 %3414
        %v3416 = vsel %vm3370, %v3369, -inf
        %3417 = vmax.xlane.f32.xlu0 %v3416
        %v3418 = vpop.xlane.xlu0 %3417
        %v3419 = vsub.f32 %v3354, %v3373
        %v3420 = vsub.f32 %v3355, %v3376
        %v3421 = vsub.f32 %v3356, %v3379
        %v3422 = vsub.f32 %v3357, %v3382
        %v3423 = vsub.f32 %v3358, %v3385
        %v3424 = vsub.f32 %v3359, %v3388
        %v3425 = vsub.f32 %v3360, %v3391
        %v3426 = vsub.f32 %v3361, %v3394
        %v3427 = vsub.f32 %v3362, %v3397
        %v3428 = vsub.f32 %v3363, %v3400
        %v3429 = vsub.f32 %v3364, %v3403
        %v3430 = vsub.f32 %v3365, %v3406
        %v3431 = vsub.f32 %v3366, %v3409
        %v3432 = vsub.f32 %v3367, %v3412
        %v3433 = vsub.f32 %v3368, %v3415
        %v3434 = vsub.f32 %v3369, %v3418
        %v3435 = vmul.f32 %v3419, 1.442695
        %v3436 = vpow.pop %v3435
        %v3437 = vmul.f32 %v3420, 1.442695
        %v3438 = vpow.pop %v3437
        %v3439 = vmul.f32 %v3421, 1.442695
        %v3440 = vpow.pop %v3439
        %v3441 = vmul.f32 %v3422, 1.442695
        %v3442 = vpow.pop %v3441
        %v3443 = vmul.f32 %v3423, 1.442695
        %v3444 = vpow.pop %v3443
        %v3445 = vmul.f32 %v3424, 1.442695
        %v3446 = vpow.pop %v3445
        %v3447 = vmul.f32 %v3425, 1.442695
        %v3448 = vpow.pop %v3447
        %v3449 = vmul.f32 %v3426, 1.442695
        %v3450 = vpow.pop %v3449
        %v3451 = vmul.f32 %v3427, 1.442695
        %v3452 = vpow.pop %v3451
        %v3453 = vmul.f32 %v3428, 1.442695
        %v3454 = vpow.pop %v3453
        %v3455 = vmul.f32 %v3429, 1.442695
        %v3456 = vpow.pop %v3455
        %v3457 = vmul.f32 %v3430, 1.442695
        %v3458 = vpow.pop %v3457
        %v3459 = vmul.f32 %v3431, 1.442695
        %v3460 = vpow.pop %v3459
        %v3461 = vmul.f32 %v3432, 1.442695
        %v3462 = vpow.pop %v3461
        %v3463 = vmul.f32 %v3433, 1.442695
        %v3464 = vpow.pop %v3463
        %v3465 = vmul.f32 %v3434, 1.442695
        %v3466 = vpow.pop %v3465
        %v3467 = vsel %vm3370, %v3436, 0.0
        %3468 = vadd.xlane.f32.xlu0 %v3467
        %v3469 = vpop.xlane.xlu0 %3468
        %v3470 = vsel %vm3370, %v3438, 0.0
        %3471 = vadd.xlane.f32.xlu0 %v3470
        %v3472 = vpop.xlane.xlu0 %3471
        %v3473 = vsel %vm3370, %v3440, 0.0
        %3474 = vadd.xlane.f32.xlu0 %v3473
        %v3475 = vpop.xlane.xlu0 %3474
        %v3476 = vsel %vm3370, %v3442, 0.0
        %3477 = vadd.xlane.f32.xlu0 %v3476
        %v3478 = vpop.xlane.xlu0 %3477
        %v3479 = vsel %vm3370, %v3444, 0.0
        %3480 = vadd.xlane.f32.xlu0 %v3479
        %v3481 = vpop.xlane.xlu0 %3480
        %v3482 = vsel %vm3370, %v3446, 0.0
        %3483 = vadd.xlane.f32.xlu0 %v3482
        %v3484 = vpop.xlane.xlu0 %3483
        %v3485 = vsel %vm3370, %v3448, 0.0
        %3486 = vadd.xlane.f32.xlu0 %v3485
        %v3487 = vpop.xlane.xlu0 %3486
        %v3488 = vsel %vm3370, %v3450, 0.0
        %3489 = vadd.xlane.f32.xlu0 %v3488
        %v3490 = vpop.xlane.xlu0 %3489
        %v3491 = vsel %vm3370, %v3452, 0.0
        %3492 = vadd.xlane.f32.xlu0 %v3491
        %v3493 = vpop.xlane.xlu0 %3492
        %v3494 = vsel %vm3370, %v3454, 0.0
        %3495 = vadd.xlane.f32.xlu0 %v3494
        %v3496 = vpop.xlane.xlu0 %3495
        %v3497 = vsel %vm3370, %v3456, 0.0
        %3498 = vadd.xlane.f32.xlu0 %v3497
        %v3499 = vpop.xlane.xlu0 %3498
        %v3500 = vsel %vm3370, %v3458, 0.0
        %3501 = vadd.xlane.f32.xlu0 %v3500
        %v3502 = vpop.xlane.xlu0 %3501
        %v3503 = vsel %vm3370, %v3460, 0.0
        %3504 = vadd.xlane.f32.xlu0 %v3503
        %v3505 = vpop.xlane.xlu0 %3504
        %v3506 = vsel %vm3370, %v3462, 0.0
        %3507 = vadd.xlane.f32.xlu0 %v3506
        %v3508 = vpop.xlane.xlu0 %3507
        %v3509 = vsel %vm3370, %v3464, 0.0
        %3510 = vadd.xlane.f32.xlu0 %v3509
        %v3511 = vpop.xlane.xlu0 %3510
        %v3512 = vsel %vm3370, %v3466, 0.0
        %3513 = vadd.xlane.f32.xlu0 %v3512
        %v3514 = vpop.xlane.xlu0 %3513
        %v3515 = vrcp.pop %v3469
        %v3516 = vrcp.pop %v3472
        %v3517 = vrcp.pop %v3475
        %v3518 = vrcp.pop %v3478
        %v3519 = vrcp.pop %v3481
        %v3520 = vrcp.pop %v3484
        %v3521 = vrcp.pop %v3487
        %v3522 = vrcp.pop %v3490
        %v3523 = vrcp.pop %v3493
        %v3524 = vrcp.pop %v3496
        %v3525 = vrcp.pop %v3499
        %v3526 = vrcp.pop %v3502
        %v3527 = vrcp.pop %v3505
        %v3528 = vrcp.pop %v3508
        %v3529 = vrcp.pop %v3511
        %v3530 = vrcp.pop %v3514
        %v3531 = vmul.f32 %v3436, %v3515
        %v3532 = vmul.f32 %v3438, %v3516
        %v3533 = vmul.f32 %v3440, %v3517
        %v3534 = vmul.f32 %v3442, %v3518
        %v3535 = vmul.f32 %v3444, %v3519
        %v3536 = vmul.f32 %v3446, %v3520
        %v3537 = vmul.f32 %v3448, %v3521
        %v3538 = vmul.f32 %v3450, %v3522
        %v3539 = vmul.f32 %v3452, %v3523
        %v3540 = vmul.f32 %v3454, %v3524
        %v3541 = vmul.f32 %v3456, %v3525
        %v3542 = vmul.f32 %v3458, %v3526
        %v3543 = vmul.f32 %v3460, %v3527
        %v3544 = vmul.f32 %v3462, %v3528
        %v3545 = vmul.f32 %v3464, %v3529
        %v3546 = vmul.f32 %v3466, %v3530
        %vm3547 = vcmask 15360
        %v3549 = vsel %vm3547, %v3531, 0
        %vm3551 = vcmask 1041408
        %v3553 = vsel %vm3551, %v1498, 0
        %3555 = vmatprep.subr.mxu0 0.0
        %3556 = vmatpush1.msra.mxu0 0.0
        %3557 = vmatprep.subr.mxu0 0.0
        %3558 = vmatpush1.msra.mxu0 0.0
        %3559 = vmatprep.subr.mxu0 0.0
        %3560 = vmatpush1.msra.mxu0 0.0
        %3561 = vmatprep.subr.mxu0 0.0
        %3562 = vmatpush1.msra.mxu0 0.0
        %3563 = vmatprep.subr.mxu0 0.0
        %3564 = vmatpush1.msra.mxu0 0.0
        %3565 = vmatprep.subr.mxu0 0.0
        %3566 = vmatpush1.msra.mxu0 0.0
        %3567 = vmatprep.subr.mxu0 0.0
        %3568 = vmatpush1.msra.mxu0 0.0
        %3569 = vmatprep.subr.mxu0 0.0
        %3570 = vmatpush1.msra.mxu0 0.0
        %3571 = vmatprep.subr.mxu0 0.0
        %3572 = vmatpush1.msra.mxu0 0.0
        %3573 = vmatprep.subr.mxu0 0.0
        %3574 = vmatpush1.msra.mxu0 0.0
        %3575 = vmatprep.subr.mxu0 0.0
        %3576 = vmatpush1.msra.mxu0 0.0
        %3577 = vmatprep.subr.mxu0 0.0
        %3578 = vmatpush1.msra.mxu0 0.0
        %3579 = vmatprep.subr.mxu0 0.0
        %3580 = vmatpush1.msra.mxu0 0.0
        %3581 = vmatprep.subr.mxu0 0.0
        %3582 = vmatpush1.msra.mxu0 0.0
        %3583 = vmatprep.subr.mxu0 0.0
        %3584 = vmatpush1.msra.mxu0 0.0
        %3585 = vmatprep.subr.mxu0 0.0
        %3586 = vmatpush1.msra.mxu0 %v3553
        %3587 = vmatprep.subr.mxu0 0.0
        %3588 = vmatpush2.msra.mxu0 0.0
        %3589 = vmatprep.subr.mxu0 0.0
        %3590 = vmatpush2.msra.mxu0 0.0
        %3591 = vmatprep.subr.mxu0 0.0
        %3592 = vmatpush2.msra.mxu0 0.0
        %3593 = vmatprep.subr.mxu0 0.0
        %3594 = vmatpush2.msra.mxu0 0.0
        %3595 = vmatprep.subr.mxu0 0.0
        %3596 = vmatpush2.msra.mxu0 0.0
        %3597 = vmatprep.subr.mxu0 0.0
        %3598 = vmatpush2.msra.mxu0 0.0
        %3599 = vmatprep.subr.mxu0 0.0
        %3600 = vmatpush2.msra.mxu0 0.0
        %3601 = vmatprep.subr.mxu0 0.0
        %3602 = vmatpush2.msra.mxu0 0.0
        %3603 = vmatprep.subr.mxu0 0.0
        %3604 = vmatpush2.msra.mxu0 0.0
        %3605 = vmatprep.subr.mxu0 0.0
        %3606 = vmatpush2.msra.mxu0 0.0
        %3607 = vmatprep.subr.mxu0 0.0
        %3608 = vmatpush2.msra.mxu0 0.0
        %3609 = vmatprep.subr.mxu0 0.0
        %3610 = vmatpush2.msra.mxu0 0.0
        %3611 = vmatprep.subr.mxu0 0.0
        %3612 = vmatpush2.msra.mxu0 0.0
        %3613 = vmatprep.subr.mxu0 0.0
        %3614 = vmatpush2.msra.mxu0 0.0
        %3615 = vmatprep.subr.mxu0 0.0
        %3616 = vmatpush2.msra.mxu0 0.0
        %3617 = vmatprep.subr.mxu0 0.0
        %3618 = vmatpush2.msra.mxu0 0.0
        %3619 = vmatprep.mubr.f32.mxu0 0.0
        %3620 = vmatmul.mubr.f32.gmra.mxu0 %v3549
        %v3621 = vpop.f32.mrf.mxu0
        %v3622 = vadd.f32 0.0, %v3621
        %v3623 = vpop.f32.mrf.mxu0
        %3624 = vdwg.mxu0
        %v3626 = vsel %vm3547, %v3532, 0
        %v3629 = vsel %vm3551, %v1522, 0
        %3631 = vmatprep.subr.mxu0 0.0
        %3632 = vmatpush1.msra.mxu0 0.0
        %3633 = vmatprep.subr.mxu0 0.0
        %3634 = vmatpush1.msra.mxu0 0.0
        %3635 = vmatprep.subr.mxu0 0.0
        %3636 = vmatpush1.msra.mxu0 0.0
        %3637 = vmatprep.subr.mxu0 0.0
        %3638 = vmatpush1.msra.mxu0 0.0
        %3639 = vmatprep.subr.mxu0 0.0
        %3640 = vmatpush1.msra.mxu0 0.0
        %3641 = vmatprep.subr.mxu0 0.0
        %3642 = vmatpush1.msra.mxu0 0.0
        %3643 = vmatprep.subr.mxu0 0.0
        %3644 = vmatpush1.msra.mxu0 0.0
        %3645 = vmatprep.subr.mxu0 0.0
        %3646 = vmatpush1.msra.mxu0 0.0
        %3647 = vmatprep.subr.mxu0 0.0
        %3648 = vmatpush1.msra.mxu0 0.0
        %3649 = vmatprep.subr.mxu0 0.0
        %3650 = vmatpush1.msra.mxu0 0.0
        %3651 = vmatprep.subr.mxu0 0.0
        %3652 = vmatpush1.msra.mxu0 0.0
        %3653 = vmatprep.subr.mxu0 0.0
        %3654 = vmatpush1.msra.mxu0 0.0
        %3655 = vmatprep.subr.mxu0 0.0
        %3656 = vmatpush1.msra.mxu0 0.0
        %3657 = vmatprep.subr.mxu0 0.0
        %3658 = vmatpush1.msra.mxu0 0.0
        %3659 = vmatprep.subr.mxu0 0.0
        %3660 = vmatpush1.msra.mxu0 0.0
        %3661 = vmatprep.subr.mxu0 0.0
        %3662 = vmatpush1.msra.mxu0 %v3629
        %3663 = vmatprep.subr.mxu0 0.0
        %3664 = vmatpush2.msra.mxu0 0.0
        %3665 = vmatprep.subr.mxu0 0.0
        %3666 = vmatpush2.msra.mxu0 0.0
        %3667 = vmatprep.subr.mxu0 0.0
        %3668 = vmatpush2.msra.mxu0 0.0
        %3669 = vmatprep.subr.mxu0 0.0
        %3670 = vmatpush2.msra.mxu0 0.0
        %3671 = vmatprep.subr.mxu0 0.0
        %3672 = vmatpush2.msra.mxu0 0.0
        %3673 = vmatprep.subr.mxu0 0.0
        %3674 = vmatpush2.msra.mxu0 0.0
        %3675 = vmatprep.subr.mxu0 0.0
        %3676 = vmatpush2.msra.mxu0 0.0
        %3677 = vmatprep.subr.mxu0 0.0
        %3678 = vmatpush2.msra.mxu0 0.0
        %3679 = vmatprep.subr.mxu0 0.0
        %3680 = vmatpush2.msra.mxu0 0.0
        %3681 = vmatprep.subr.mxu0 0.0
        %3682 = vmatpush2.msra.mxu0 0.0
        %3683 = vmatprep.subr.mxu0 0.0
        %3684 = vmatpush2.msra.mxu0 0.0
        %3685 = vmatprep.subr.mxu0 0.0
        %3686 = vmatpush2.msra.mxu0 0.0
        %3687 = vmatprep.subr.mxu0 0.0
        %3688 = vmatpush2.msra.mxu0 0.0
        %3689 = vmatprep.subr.mxu0 0.0
        %3690 = vmatpush2.msra.mxu0 0.0
        %3691 = vmatprep.subr.mxu0 0.0
        %3692 = vmatpush2.msra.mxu0 0.0
        %3693 = vmatprep.subr.mxu0 0.0
        %3694 = vmatpush2.msra.mxu0 0.0
        %3695 = vmatprep.mubr.f32.mxu0 0.0
        %3696 = vmatmul.mubr.f32.gmra.mxu0 %v3626
        %v3697 = vpop.f32.mrf.mxu0
        %v3698 = vadd.f32 0.0, %v3697
        %v3699 = vpop.f32.mrf.mxu0
        %3700 = vdwg.mxu0
        %v3702 = vsel %vm3547, %v3533, 0
        %v3705 = vsel %vm3551, %v1505, 0
        %3707 = vmatprep.subr.mxu0 0.0
        %3708 = vmatpush1.msra.mxu0 0.0
        %3709 = vmatprep.subr.mxu0 0.0
        %3710 = vmatpush1.msra.mxu0 0.0
        %3711 = vmatprep.subr.mxu0 0.0
        %3712 = vmatpush1.msra.mxu0 0.0
        %3713 = vmatprep.subr.mxu0 0.0
        %3714 = vmatpush1.msra.mxu0 0.0
        %3715 = vmatprep.subr.mxu0 0.0
        %3716 = vmatpush1.msra.mxu0 0.0
        %3717 = vmatprep.subr.mxu0 0.0
        %3718 = vmatpush1.msra.mxu0 0.0
        %3719 = vmatprep.subr.mxu0 0.0
        %3720 = vmatpush1.msra.mxu0 0.0
        %3721 = vmatprep.subr.mxu0 0.0
        %3722 = vmatpush1.msra.mxu0 0.0
        %3723 = vmatprep.subr.mxu0 0.0
        %3724 = vmatpush1.msra.mxu0 0.0
        %3725 = vmatprep.subr.mxu0 0.0
        %3726 = vmatpush1.msra.mxu0 0.0
        %3727 = vmatprep.subr.mxu0 0.0
        %3728 = vmatpush1.msra.mxu0 0.0
        %3729 = vmatprep.subr.mxu0 0.0
        %3730 = vmatpush1.msra.mxu0 0.0
        %3731 = vmatprep.subr.mxu0 0.0
        %3732 = vmatpush1.msra.mxu0 0.0
        %3733 = vmatprep.subr.mxu0 0.0
        %3734 = vmatpush1.msra.mxu0 0.0
        %3735 = vmatprep.subr.mxu0 0.0
        %3736 = vmatpush1.msra.mxu0 0.0
        %3737 = vmatprep.subr.mxu0 0.0
        %3738 = vmatpush1.msra.mxu0 %v3705
        %3739 = vmatprep.subr.mxu0 0.0
        %3740 = vmatpush2.msra.mxu0 0.0
        %3741 = vmatprep.subr.mxu0 0.0
        %3742 = vmatpush2.msra.mxu0 0.0
        %3743 = vmatprep.subr.mxu0 0.0
        %3744 = vmatpush2.msra.mxu0 0.0
        %3745 = vmatprep.subr.mxu0 0.0
        %3746 = vmatpush2.msra.mxu0 0.0
        %3747 = vmatprep.subr.mxu0 0.0
        %3748 = vmatpush2.msra.mxu0 0.0
        %3749 = vmatprep.subr.mxu0 0.0
        %3750 = vmatpush2.msra.mxu0 0.0
        %3751 = vmatprep.subr.mxu0 0.0
        %3752 = vmatpush2.msra.mxu0 0.0
        %3753 = vmatprep.subr.mxu0 0.0
        %3754 = vmatpush2.msra.mxu0 0.0
        %3755 = vmatprep.subr.mxu0 0.0
        %3756 = vmatpush2.msra.mxu0 0.0
        %3757 = vmatprep.subr.mxu0 0.0
        %3758 = vmatpush2.msra.mxu0 0.0
        %3759 = vmatprep.subr.mxu0 0.0
        %3760 = vmatpush2.msra.mxu0 0.0
        %3761 = vmatprep.subr.mxu0 0.0
        %3762 = vmatpush2.msra.mxu0 0.0
        %3763 = vmatprep.subr.mxu0 0.0
        %3764 = vmatpush2.msra.mxu0 0.0
        %3765 = vmatprep.subr.mxu0 0.0
        %3766 = vmatpush2.msra.mxu0 0.0
        %3767 = vmatprep.subr.mxu0 0.0
        %3768 = vmatpush2.msra.mxu0 0.0
        %3769 = vmatprep.subr.mxu0 0.0
        %3770 = vmatpush2.msra.mxu0 0.0
        %3771 = vmatprep.mubr.f32.mxu0 0.0
        %3772 = vmatmul.mubr.f32.gmra.mxu0 %v3702
        %v3773 = vpop.f32.mrf.mxu0
        %v3774 = vadd.f32 0.0, %v3773
        %v3775 = vpop.f32.mrf.mxu0
        %3776 = vdwg.mxu0
        %v3778 = vsel %vm3547, %v3534, 0
        %v3781 = vsel %vm3551, %v1523, 0
        %3783 = vmatprep.subr.mxu0 0.0
        %3784 = vmatpush1.msra.mxu0 0.0
        %3785 = vmatprep.subr.mxu0 0.0
        %3786 = vmatpush1.msra.mxu0 0.0
        %3787 = vmatprep.subr.mxu0 0.0
        %3788 = vmatpush1.msra.mxu0 0.0
        %3789 = vmatprep.subr.mxu0 0.0
        %3790 = vmatpush1.msra.mxu0 0.0
        %3791 = vmatprep.subr.mxu0 0.0
        %3792 = vmatpush1.msra.mxu0 0.0
        %3793 = vmatprep.subr.mxu0 0.0
        %3794 = vmatpush1.msra.mxu0 0.0
        %3795 = vmatprep.subr.mxu0 0.0
        %3796 = vmatpush1.msra.mxu0 0.0
        %3797 = vmatprep.subr.mxu0 0.0
        %3798 = vmatpush1.msra.mxu0 0.0
        %3799 = vmatprep.subr.mxu0 0.0
        %3800 = vmatpush1.msra.mxu0 0.0
        %3801 = vmatprep.subr.mxu0 0.0
        %3802 = vmatpush1.msra.mxu0 0.0
        %3803 = vmatprep.subr.mxu0 0.0
        %3804 = vmatpush1.msra.mxu0 0.0
        %3805 = vmatprep.subr.mxu0 0.0
        %3806 = vmatpush1.msra.mxu0 0.0
        %3807 = vmatprep.subr.mxu0 0.0
        %3808 = vmatpush1.msra.mxu0 0.0
        %3809 = vmatprep.subr.mxu0 0.0
        %3810 = vmatpush1.msra.mxu0 0.0
        %3811 = vmatprep.subr.mxu0 0.0
        %3812 = vmatpush1.msra.mxu0 0.0
        %3813 = vmatprep.subr.mxu0 0.0
        %3814 = vmatpush1.msra.mxu0 %v3781
        %3815 = vmatprep.subr.mxu0 0.0
        %3816 = vmatpush2.msra.mxu0 0.0
        %3817 = vmatprep.subr.mxu0 0.0
        %3818 = vmatpush2.msra.mxu0 0.0
        %3819 = vmatprep.subr.mxu0 0.0
        %3820 = vmatpush2.msra.mxu0 0.0
        %3821 = vmatprep.subr.mxu0 0.0
        %3822 = vmatpush2.msra.mxu0 0.0
        %3823 = vmatprep.subr.mxu0 0.0
        %3824 = vmatpush2.msra.mxu0 0.0
        %3825 = vmatprep.subr.mxu0 0.0
        %3826 = vmatpush2.msra.mxu0 0.0
        %3827 = vmatprep.subr.mxu0 0.0
        %3828 = vmatpush2.msra.mxu0 0.0
        %3829 = vmatprep.subr.mxu0 0.0
        %3830 = vmatpush2.msra.mxu0 0.0
        %3831 = vmatprep.subr.mxu0 0.0
        %3832 = vmatpush2.msra.mxu0 0.0
        %3833 = vmatprep.subr.mxu0 0.0
        %3834 = vmatpush2.msra.mxu0 0.0
        %3835 = vmatprep.subr.mxu0 0.0
        %3836 = vmatpush2.msra.mxu0 0.0
        %3837 = vmatprep.subr.mxu0 0.0
        %3838 = vmatpush2.msra.mxu0 0.0
        %3839 = vmatprep.subr.mxu0 0.0
        %3840 = vmatpush2.msra.mxu0 0.0
        %3841 = vmatprep.subr.mxu0 0.0
        %3842 = vmatpush2.msra.mxu0 0.0
        %3843 = vmatprep.subr.mxu0 0.0
        %3844 = vmatpush2.msra.mxu0 0.0
        %3845 = vmatprep.subr.mxu0 0.0
        %3846 = vmatpush2.msra.mxu0 0.0
        %3847 = vmatprep.mubr.f32.mxu0 0.0
        %3848 = vmatmul.mubr.f32.gmra.mxu0 %v3778
        %v3849 = vpop.f32.mrf.mxu0
        %v3850 = vadd.f32 0.0, %v3849
        %v3851 = vpop.f32.mrf.mxu0
        %3852 = vdwg.mxu0
        %v3854 = vsel %vm3547, %v3535, 0
        %v3857 = vsel %vm3551, %v1514, 0
        %3859 = vmatprep.subr.mxu0 0.0
        %3860 = vmatpush1.msra.mxu0 0.0
        %3861 = vmatprep.subr.mxu0 0.0
        %3862 = vmatpush1.msra.mxu0 0.0
        %3863 = vmatprep.subr.mxu0 0.0
        %3864 = vmatpush1.msra.mxu0 0.0
        %3865 = vmatprep.subr.mxu0 0.0
        %3866 = vmatpush1.msra.mxu0 0.0
        %3867 = vmatprep.subr.mxu0 0.0
        %3868 = vmatpush1.msra.mxu0 0.0
        %3869 = vmatprep.subr.mxu0 0.0
        %3870 = vmatpush1.msra.mxu0 0.0
        %3871 = vmatprep.subr.mxu0 0.0
        %3872 = vmatpush1.msra.mxu0 0.0
        %3873 = vmatprep.subr.mxu0 0.0
        %3874 = vmatpush1.msra.mxu0 0.0
        %3875 = vmatprep.subr.mxu0 0.0
        %3876 = vmatpush1.msra.mxu0 0.0
        %3877 = vmatprep.subr.mxu0 0.0
        %3878 = vmatpush1.msra.mxu0 0.0
        %3879 = vmatprep.subr.mxu0 0.0
        %3880 = vmatpush1.msra.mxu0 0.0
        %3881 = vmatprep.subr.mxu0 0.0
        %3882 = vmatpush1.msra.mxu0 0.0
        %3883 = vmatprep.subr.mxu0 0.0
        %3884 = vmatpush1.msra.mxu0 0.0
        %3885 = vmatprep.subr.mxu0 0.0
        %3886 = vmatpush1.msra.mxu0 0.0
        %3887 = vmatprep.subr.mxu0 0.0
        %3888 = vmatpush1.msra.mxu0 0.0
        %3889 = vmatprep.subr.mxu0 0.0
        %3890 = vmatpush1.msra.mxu0 %v3857
        %3891 = vmatprep.subr.mxu0 0.0
        %3892 = vmatpush2.msra.mxu0 0.0
        %3893 = vmatprep.subr.mxu0 0.0
        %3894 = vmatpush2.msra.mxu0 0.0
        %3895 = vmatprep.subr.mxu0 0.0
        %3896 = vmatpush2.msra.mxu0 0.0
        %3897 = vmatprep.subr.mxu0 0.0
        %3898 = vmatpush2.msra.mxu0 0.0
        %3899 = vmatprep.subr.mxu0 0.0
        %3900 = vmatpush2.msra.mxu0 0.0
        %3901 = vmatprep.subr.mxu0 0.0
        %3902 = vmatpush2.msra.mxu0 0.0
        %3903 = vmatprep.subr.mxu0 0.0
        %3904 = vmatpush2.msra.mxu0 0.0
        %3905 = vmatprep.subr.mxu0 0.0
        %3906 = vmatpush2.msra.mxu0 0.0
        %3907 = vmatprep.subr.mxu0 0.0
        %3908 = vmatpush2.msra.mxu0 0.0
        %3909 = vmatprep.subr.mxu0 0.0
        %3910 = vmatpush2.msra.mxu0 0.0
        %3911 = vmatprep.subr.mxu0 0.0
        %3912 = vmatpush2.msra.mxu0 0.0
        %3913 = vmatprep.subr.mxu0 0.0
        %3914 = vmatpush2.msra.mxu0 0.0
        %3915 = vmatprep.subr.mxu0 0.0
        %3916 = vmatpush2.msra.mxu0 0.0
        %3917 = vmatprep.subr.mxu0 0.0
        %3918 = vmatpush2.msra.mxu0 0.0
        %3919 = vmatprep.subr.mxu0 0.0
        %3920 = vmatpush2.msra.mxu0 0.0
        %3921 = vmatprep.subr.mxu0 0.0
        %3922 = vmatpush2.msra.mxu0 0.0
        %3923 = vmatprep.mubr.f32.mxu0 0.0
        %3924 = vmatmul.mubr.f32.gmra.mxu0 %v3854
        %v3925 = vpop.f32.mrf.mxu0
        %v3926 = vadd.f32 0.0, %v3925
        %v3927 = vpop.f32.mrf.mxu0
        %3928 = vdwg.mxu0
        %v3930 = vsel %vm3547, %v3536, 0
        %v3933 = vsel %vm3551, %v1524, 0
        %3935 = vmatprep.subr.mxu0 0.0
        %3936 = vmatpush1.msra.mxu0 0.0
        %3937 = vmatprep.subr.mxu0 0.0
        %3938 = vmatpush1.msra.mxu0 0.0
        %3939 = vmatprep.subr.mxu0 0.0
        %3940 = vmatpush1.msra.mxu0 0.0
        %3941 = vmatprep.subr.mxu0 0.0
        %3942 = vmatpush1.msra.mxu0 0.0
        %3943 = vmatprep.subr.mxu0 0.0
        %3944 = vmatpush1.msra.mxu0 0.0
        %3945 = vmatprep.subr.mxu0 0.0
        %3946 = vmatpush1.msra.mxu0 0.0
        %3947 = vmatprep.subr.mxu0 0.0
        %3948 = vmatpush1.msra.mxu0 0.0
        %3949 = vmatprep.subr.mxu0 0.0
        %3950 = vmatpush1.msra.mxu0 0.0
        %3951 = vmatprep.subr.mxu0 0.0
        %3952 = vmatpush1.msra.mxu0 0.0
        %3953 = vmatprep.subr.mxu0 0.0
        %3954 = vmatpush1.msra.mxu0 0.0
        %3955 = vmatprep.subr.mxu0 0.0
        %3956 = vmatpush1.msra.mxu0 0.0
        %3957 = vmatprep.subr.mxu0 0.0
        %3958 = vmatpush1.msra.mxu0 0.0
        %3959 = vmatprep.subr.mxu0 0.0
        %3960 = vmatpush1.msra.mxu0 0.0
        %3961 = vmatprep.subr.mxu0 0.0
        %3962 = vmatpush1.msra.mxu0 0.0
        %3963 = vmatprep.subr.mxu0 0.0
        %3964 = vmatpush1.msra.mxu0 0.0
        %3965 = vmatprep.subr.mxu0 0.0
        %3966 = vmatpush1.msra.mxu0 %v3933
        %3967 = vmatprep.subr.mxu0 0.0
        %3968 = vmatpush2.msra.mxu0 0.0
        %3969 = vmatprep.subr.mxu0 0.0
        %3970 = vmatpush2.msra.mxu0 0.0
        %3971 = vmatprep.subr.mxu0 0.0
        %3972 = vmatpush2.msra.mxu0 0.0
        %3973 = vmatprep.subr.mxu0 0.0
        %3974 = vmatpush2.msra.mxu0 0.0
        %3975 = vmatprep.subr.mxu0 0.0
        %3976 = vmatpush2.msra.mxu0 0.0
        %3977 = vmatprep.subr.mxu0 0.0
        %3978 = vmatpush2.msra.mxu0 0.0
        %3979 = vmatprep.subr.mxu0 0.0
        %3980 = vmatpush2.msra.mxu0 0.0
        %3981 = vmatprep.subr.mxu0 0.0
        %3982 = vmatpush2.msra.mxu0 0.0
        %3983 = vmatprep.subr.mxu0 0.0
        %3984 = vmatpush2.msra.mxu0 0.0
        %3985 = vmatprep.subr.mxu0 0.0
        %3986 = vmatpush2.msra.mxu0 0.0
        %3987 = vmatprep.subr.mxu0 0.0
        %3988 = vmatpush2.msra.mxu0 0.0
        %3989 = vmatprep.subr.mxu0 0.0
        %3990 = vmatpush2.msra.mxu0 0.0
        %3991 = vmatprep.subr.mxu0 0.0
        %3992 = vmatpush2.msra.mxu0 0.0
        %3993 = vmatprep.subr.mxu0 0.0
        %3994 = vmatpush2.msra.mxu0 0.0
        %3995 = vmatprep.subr.mxu0 0.0
        %3996 = vmatpush2.msra.mxu0 0.0
        %3997 = vmatprep.subr.mxu0 0.0
        %3998 = vmatpush2.msra.mxu0 0.0
        %3999 = vmatprep.mubr.f32.mxu0 0.0
        %4000 = vmatmul.mubr.f32.gmra.mxu0 %v3930
        %v4001 = vpop.f32.mrf.mxu0
        %v4002 = vadd.f32 0.0, %v4001
        %v4003 = vpop.f32.mrf.mxu0
        %4004 = vdwg.mxu0
        %v4006 = vsel %vm3547, %v3537, 0
        %v4009 = vsel %vm3551, %v1521, 0
        %4011 = vmatprep.subr.mxu0 0.0
        %4012 = vmatpush1.msra.mxu0 0.0
        %4013 = vmatprep.subr.mxu0 0.0
        %4014 = vmatpush1.msra.mxu0 0.0
        %4015 = vmatprep.subr.mxu0 0.0
        %4016 = vmatpush1.msra.mxu0 0.0
        %4017 = vmatprep.subr.mxu0 0.0
        %4018 = vmatpush1.msra.mxu0 0.0
        %4019 = vmatprep.subr.mxu0 0.0
        %4020 = vmatpush1.msra.mxu0 0.0
        %4021 = vmatprep.subr.mxu0 0.0
        %4022 = vmatpush1.msra.mxu0 0.0
        %4023 = vmatprep.subr.mxu0 0.0
        %4024 = vmatpush1.msra.mxu0 0.0
        %4025 = vmatprep.subr.mxu0 0.0
        %4026 = vmatpush1.msra.mxu0 0.0
        %4027 = vmatprep.subr.mxu0 0.0
        %4028 = vmatpush1.msra.mxu0 0.0
        %4029 = vmatprep.subr.mxu0 0.0
        %4030 = vmatpush1.msra.mxu0 0.0
        %4031 = vmatprep.subr.mxu0 0.0
        %4032 = vmatpush1.msra.mxu0 0.0
        %4033 = vmatprep.subr.mxu0 0.0
        %4034 = vmatpush1.msra.mxu0 0.0
        %4035 = vmatprep.subr.mxu0 0.0
        %4036 = vmatpush1.msra.mxu0 0.0
        %4037 = vmatprep.subr.mxu0 0.0
        %4038 = vmatpush1.msra.mxu0 0.0
        %4039 = vmatprep.subr.mxu0 0.0
        %4040 = vmatpush1.msra.mxu0 0.0
        %4041 = vmatprep.subr.mxu0 0.0
        %4042 = vmatpush1.msra.mxu0 %v4009
        %4043 = vmatprep.subr.mxu0 0.0
        %4044 = vmatpush2.msra.mxu0 0.0
        %4045 = vmatprep.subr.mxu0 0.0
        %4046 = vmatpush2.msra.mxu0 0.0
        %4047 = vmatprep.subr.mxu0 0.0
        %4048 = vmatpush2.msra.mxu0 0.0
        %4049 = vmatprep.subr.mxu0 0.0
        %4050 = vmatpush2.msra.mxu0 0.0
        %4051 = vmatprep.subr.mxu0 0.0
        %4052 = vmatpush2.msra.mxu0 0.0
        %4053 = vmatprep.subr.mxu0 0.0
        %4054 = vmatpush2.msra.mxu0 0.0
        %4055 = vmatprep.subr.mxu0 0.0
        %4056 = vmatpush2.msra.mxu0 0.0
        %4057 = vmatprep.subr.mxu0 0.0
        %4058 = vmatpush2.msra.mxu0 0.0
        %4059 = vmatprep.subr.mxu0 0.0
        %4060 = vmatpush2.msra.mxu0 0.0
        %4061 = vmatprep.subr.mxu0 0.0
        %4062 = vmatpush2.msra.mxu0 0.0
        %4063 = vmatprep.subr.mxu0 0.0
        %4064 = vmatpush2.msra.mxu0 0.0
        %4065 = vmatprep.subr.mxu0 0.0
        %4066 = vmatpush2.msra.mxu0 0.0
        %4067 = vmatprep.subr.mxu0 0.0
        %4068 = vmatpush2.msra.mxu0 0.0
        %4069 = vmatprep.subr.mxu0 0.0
        %4070 = vmatpush2.msra.mxu0 0.0
        %4071 = vmatprep.subr.mxu0 0.0
        %4072 = vmatpush2.msra.mxu0 0.0
        %4073 = vmatprep.subr.mxu0 0.0
        %4074 = vmatpush2.msra.mxu0 0.0
        %4075 = vmatprep.mubr.f32.mxu0 0.0
        %4076 = vmatmul.mubr.f32.gmra.mxu0 %v4006
        %v4077 = vpop.f32.mrf.mxu0
        %v4078 = vadd.f32 0.0, %v4077
        %v4079 = vpop.f32.mrf.mxu0
        %4080 = vdwg.mxu0
        %v4082 = vsel %vm3547, %v3538, 0
        %v4085 = vsel %vm3551, %v1525, 0
        %4087 = vmatprep.subr.mxu0 0.0
        %4088 = vmatpush1.msra.mxu0 0.0
        %4089 = vmatprep.subr.mxu0 0.0
        %4090 = vmatpush1.msra.mxu0 0.0
        %4091 = vmatprep.subr.mxu0 0.0
        %4092 = vmatpush1.msra.mxu0 0.0
        %4093 = vmatprep.subr.mxu0 0.0
        %4094 = vmatpush1.msra.mxu0 0.0
        %4095 = vmatprep.subr.mxu0 0.0
        %4096 = vmatpush1.msra.mxu0 0.0
        %4097 = vmatprep.subr.mxu0 0.0
        %4098 = vmatpush1.msra.mxu0 0.0
        %4099 = vmatprep.subr.mxu0 0.0
        %4100 = vmatpush1.msra.mxu0 0.0
        %4101 = vmatprep.subr.mxu0 0.0
        %4102 = vmatpush1.msra.mxu0 0.0
        %4103 = vmatprep.subr.mxu0 0.0
        %4104 = vmatpush1.msra.mxu0 0.0
        %4105 = vmatprep.subr.mxu0 0.0
        %4106 = vmatpush1.msra.mxu0 0.0
        %4107 = vmatprep.subr.mxu0 0.0
        %4108 = vmatpush1.msra.mxu0 0.0
        %4109 = vmatprep.subr.mxu0 0.0
        %4110 = vmatpush1.msra.mxu0 0.0
        %4111 = vmatprep.subr.mxu0 0.0
        %4112 = vmatpush1.msra.mxu0 0.0
        %4113 = vmatprep.subr.mxu0 0.0
        %4114 = vmatpush1.msra.mxu0 0.0
        %4115 = vmatprep.subr.mxu0 0.0
        %4116 = vmatpush1.msra.mxu0 0.0
        %4117 = vmatprep.subr.mxu0 0.0
        %4118 = vmatpush1.msra.mxu0 %v4085
        %4119 = vmatprep.subr.mxu0 0.0
        %4120 = vmatpush2.msra.mxu0 0.0
        %4121 = vmatprep.subr.mxu0 0.0
        %4122 = vmatpush2.msra.mxu0 0.0
        %4123 = vmatprep.subr.mxu0 0.0
        %4124 = vmatpush2.msra.mxu0 0.0
        %4125 = vmatprep.subr.mxu0 0.0
        %4126 = vmatpush2.msra.mxu0 0.0
        %4127 = vmatprep.subr.mxu0 0.0
        %4128 = vmatpush2.msra.mxu0 0.0
        %4129 = vmatprep.subr.mxu0 0.0
        %4130 = vmatpush2.msra.mxu0 0.0
        %4131 = vmatprep.subr.mxu0 0.0
        %4132 = vmatpush2.msra.mxu0 0.0
        %4133 = vmatprep.subr.mxu0 0.0
        %4134 = vmatpush2.msra.mxu0 0.0
        %4135 = vmatprep.subr.mxu0 0.0
        %4136 = vmatpush2.msra.mxu0 0.0
        %4137 = vmatprep.subr.mxu0 0.0
        %4138 = vmatpush2.msra.mxu0 0.0
        %4139 = vmatprep.subr.mxu0 0.0
        %4140 = vmatpush2.msra.mxu0 0.0
        %4141 = vmatprep.subr.mxu0 0.0
        %4142 = vmatpush2.msra.mxu0 0.0
        %4143 = vmatprep.subr.mxu0 0.0
        %4144 = vmatpush2.msra.mxu0 0.0
        %4145 = vmatprep.subr.mxu0 0.0
        %4146 = vmatpush2.msra.mxu0 0.0
        %4147 = vmatprep.subr.mxu0 0.0
        %4148 = vmatpush2.msra.mxu0 0.0
        %4149 = vmatprep.subr.mxu0 0.0
        %4150 = vmatpush2.msra.mxu0 0.0
        %4151 = vmatprep.mubr.f32.mxu0 0.0
        %4152 = vmatmul.mubr.f32.gmra.mxu0 %v4082
        %v4153 = vpop.f32.mrf.mxu0
        %v4154 = vadd.f32 0.0, %v4153
        %v4155 = vpop.f32.mrf.mxu0
        %4156 = vdwg.mxu0
        %v4158 = vsel %vm3547, %v3539, 0
        %v4161 = vsel %vm3551, %v1564, 0
        %4163 = vmatprep.subr.mxu0 0.0
        %4164 = vmatpush1.msra.mxu0 0.0
        %4165 = vmatprep.subr.mxu0 0.0
        %4166 = vmatpush1.msra.mxu0 0.0
        %4167 = vmatprep.subr.mxu0 0.0
        %4168 = vmatpush1.msra.mxu0 0.0
        %4169 = vmatprep.subr.mxu0 0.0
        %4170 = vmatpush1.msra.mxu0 0.0
        %4171 = vmatprep.subr.mxu0 0.0
        %4172 = vmatpush1.msra.mxu0 0.0
        %4173 = vmatprep.subr.mxu0 0.0
        %4174 = vmatpush1.msra.mxu0 0.0
        %4175 = vmatprep.subr.mxu0 0.0
        %4176 = vmatpush1.msra.mxu0 0.0
        %4177 = vmatprep.subr.mxu0 0.0
        %4178 = vmatpush1.msra.mxu0 0.0
        %4179 = vmatprep.subr.mxu0 0.0
        %4180 = vmatpush1.msra.mxu0 0.0
        %4181 = vmatprep.subr.mxu0 0.0
        %4182 = vmatpush1.msra.mxu0 0.0
        %4183 = vmatprep.subr.mxu0 0.0
        %4184 = vmatpush1.msra.mxu0 0.0
        %4185 = vmatprep.subr.mxu0 0.0
        %4186 = vmatpush1.msra.mxu0 0.0
        %4187 = vmatprep.subr.mxu0 0.0
        %4188 = vmatpush1.msra.mxu0 0.0
        %4189 = vmatprep.subr.mxu0 0.0
        %4190 = vmatpush1.msra.mxu0 0.0
        %4191 = vmatprep.subr.mxu0 0.0
        %4192 = vmatpush1.msra.mxu0 0.0
        %4193 = vmatprep.subr.mxu0 0.0
        %4194 = vmatpush1.msra.mxu0 %v4161
        %4195 = vmatprep.subr.mxu0 0.0
        %4196 = vmatpush2.msra.mxu0 0.0
        %4197 = vmatprep.subr.mxu0 0.0
        %4198 = vmatpush2.msra.mxu0 0.0
        %4199 = vmatprep.subr.mxu0 0.0
        %4200 = vmatpush2.msra.mxu0 0.0
        %4201 = vmatprep.subr.mxu0 0.0
        %4202 = vmatpush2.msra.mxu0 0.0
        %4203 = vmatprep.subr.mxu0 0.0
        %4204 = vmatpush2.msra.mxu0 0.0
        %4205 = vmatprep.subr.mxu0 0.0
        %4206 = vmatpush2.msra.mxu0 0.0
        %4207 = vmatprep.subr.mxu0 0.0
        %4208 = vmatpush2.msra.mxu0 0.0
        %4209 = vmatprep.subr.mxu0 0.0
        %4210 = vmatpush2.msra.mxu0 0.0
        %4211 = vmatprep.subr.mxu0 0.0
        %4212 = vmatpush2.msra.mxu0 0.0
        %4213 = vmatprep.subr.mxu0 0.0
        %4214 = vmatpush2.msra.mxu0 0.0
        %4215 = vmatprep.subr.mxu0 0.0
        %4216 = vmatpush2.msra.mxu0 0.0
        %4217 = vmatprep.subr.mxu0 0.0
        %4218 = vmatpush2.msra.mxu0 0.0
        %4219 = vmatprep.subr.mxu0 0.0
        %4220 = vmatpush2.msra.mxu0 0.0
        %4221 = vmatprep.subr.mxu0 0.0
        %4222 = vmatpush2.msra.mxu0 0.0
        %4223 = vmatprep.subr.mxu0 0.0
        %4224 = vmatpush2.msra.mxu0 0.0
        %4225 = vmatprep.subr.mxu0 0.0
        %4226 = vmatpush2.msra.mxu0 0.0
        %4227 = vmatprep.mubr.f32.mxu0 0.0
        %4228 = vmatmul.mubr.f32.gmra.mxu0 %v4158
        %v4229 = vpop.f32.mrf.mxu0
        %v4230 = vadd.f32 0.0, %v4229
        %v4231 = vpop.f32.mrf.mxu0
        %4232 = vdwg.mxu0
        %v4234 = vsel %vm3547, %v3540, 0
        %v4237 = vsel %vm3551, %v1588, 0
        %4239 = vmatprep.subr.mxu0 0.0
        %4240 = vmatpush1.msra.mxu0 0.0
        %4241 = vmatprep.subr.mxu0 0.0
        %4242 = vmatpush1.msra.mxu0 0.0
        %4243 = vmatprep.subr.mxu0 0.0
        %4244 = vmatpush1.msra.mxu0 0.0
        %4245 = vmatprep.subr.mxu0 0.0
        %4246 = vmatpush1.msra.mxu0 0.0
        %4247 = vmatprep.subr.mxu0 0.0
        %4248 = vmatpush1.msra.mxu0 0.0
        %4249 = vmatprep.subr.mxu0 0.0
        %4250 = vmatpush1.msra.mxu0 0.0
        %4251 = vmatprep.subr.mxu0 0.0
        %4252 = vmatpush1.msra.mxu0 0.0
        %4253 = vmatprep.subr.mxu0 0.0
        %4254 = vmatpush1.msra.mxu0 0.0
        %4255 = vmatprep.subr.mxu0 0.0
        %4256 = vmatpush1.msra.mxu0 0.0
        %4257 = vmatprep.subr.mxu0 0.0
        %4258 = vmatpush1.msra.mxu0 0.0
        %4259 = vmatprep.subr.mxu0 0.0
        %4260 = vmatpush1.msra.mxu0 0.0
        %4261 = vmatprep.subr.mxu0 0.0
        %4262 = vmatpush1.msra.mxu0 0.0
        %4263 = vmatprep.subr.mxu0 0.0
        %4264 = vmatpush1.msra.mxu0 0.0
        %4265 = vmatprep.subr.mxu0 0.0
        %4266 = vmatpush1.msra.mxu0 0.0
        %4267 = vmatprep.subr.mxu0 0.0
        %4268 = vmatpush1.msra.mxu0 0.0
        %4269 = vmatprep.subr.mxu0 0.0
        %4270 = vmatpush1.msra.mxu0 %v4237
        %4271 = vmatprep.subr.mxu0 0.0
        %4272 = vmatpush2.msra.mxu0 0.0
        %4273 = vmatprep.subr.mxu0 0.0
        %4274 = vmatpush2.msra.mxu0 0.0
        %4275 = vmatprep.subr.mxu0 0.0
        %4276 = vmatpush2.msra.mxu0 0.0
        %4277 = vmatprep.subr.mxu0 0.0
        %4278 = vmatpush2.msra.mxu0 0.0
        %4279 = vmatprep.subr.mxu0 0.0
        %4280 = vmatpush2.msra.mxu0 0.0
        %4281 = vmatprep.subr.mxu0 0.0
        %4282 = vmatpush2.msra.mxu0 0.0
        %4283 = vmatprep.subr.mxu0 0.0
        %4284 = vmatpush2.msra.mxu0 0.0
        %4285 = vmatprep.subr.mxu0 0.0
        %4286 = vmatpush2.msra.mxu0 0.0
        %4287 = vmatprep.subr.mxu0 0.0
        %4288 = vmatpush2.msra.mxu0 0.0
        %4289 = vmatprep.subr.mxu0 0.0
        %4290 = vmatpush2.msra.mxu0 0.0
        %4291 = vmatprep.subr.mxu0 0.0
        %4292 = vmatpush2.msra.mxu0 0.0
        %4293 = vmatprep.subr.mxu0 0.0
        %4294 = vmatpush2.msra.mxu0 0.0
        %4295 = vmatprep.subr.mxu0 0.0
        %4296 = vmatpush2.msra.mxu0 0.0
        %4297 = vmatprep.subr.mxu0 0.0
        %4298 = vmatpush2.msra.mxu0 0.0
        %4299 = vmatprep.subr.mxu0 0.0
        %4300 = vmatpush2.msra.mxu0 0.0
        %4301 = vmatprep.subr.mxu0 0.0
        %4302 = vmatpush2.msra.mxu0 0.0
        %4303 = vmatprep.mubr.f32.mxu0 0.0
        %4304 = vmatmul.mubr.f32.gmra.mxu0 %v4234
        %v4305 = vpop.f32.mrf.mxu0
        %v4306 = vadd.f32 0.0, %v4305
        %v4307 = vpop.f32.mrf.mxu0
        %4308 = vdwg.mxu0
        %v4310 = vsel %vm3547, %v3541, 0
        %v4313 = vsel %vm3551, %v1571, 0
        %4315 = vmatprep.subr.mxu0 0.0
        %4316 = vmatpush1.msra.mxu0 0.0
        %4317 = vmatprep.subr.mxu0 0.0
        %4318 = vmatpush1.msra.mxu0 0.0
        %4319 = vmatprep.subr.mxu0 0.0
        %4320 = vmatpush1.msra.mxu0 0.0
        %4321 = vmatprep.subr.mxu0 0.0
        %4322 = vmatpush1.msra.mxu0 0.0
        %4323 = vmatprep.subr.mxu0 0.0
        %4324 = vmatpush1.msra.mxu0 0.0
        %4325 = vmatprep.subr.mxu0 0.0
        %4326 = vmatpush1.msra.mxu0 0.0
        %4327 = vmatprep.subr.mxu0 0.0
        %4328 = vmatpush1.msra.mxu0 0.0
        %4329 = vmatprep.subr.mxu0 0.0
        %4330 = vmatpush1.msra.mxu0 0.0
        %4331 = vmatprep.subr.mxu0 0.0
        %4332 = vmatpush1.msra.mxu0 0.0
        %4333 = vmatprep.subr.mxu0 0.0
        %4334 = vmatpush1.msra.mxu0 0.0
        %4335 = vmatprep.subr.mxu0 0.0
        %4336 = vmatpush1.msra.mxu0 0.0
        %4337 = vmatprep.subr.mxu0 0.0
        %4338 = vmatpush1.msra.mxu0 0.0
        %4339 = vmatprep.subr.mxu0 0.0
        %4340 = vmatpush1.msra.mxu0 0.0
        %4341 = vmatprep.subr.mxu0 0.0
        %4342 = vmatpush1.msra.mxu0 0.0
        %4343 = vmatprep.subr.mxu0 0.0
        %4344 = vmatpush1.msra.mxu0 0.0
        %4345 = vmatprep.subr.mxu0 0.0
        %4346 = vmatpush1.msra.mxu0 %v4313
        %4347 = vmatprep.subr.mxu0 0.0
        %4348 = vmatpush2.msra.mxu0 0.0
        %4349 = vmatprep.subr.mxu0 0.0
        %4350 = vmatpush2.msra.mxu0 0.0
        %4351 = vmatprep.subr.mxu0 0.0
        %4352 = vmatpush2.msra.mxu0 0.0
        %4353 = vmatprep.subr.mxu0 0.0
        %4354 = vmatpush2.msra.mxu0 0.0
        %4355 = vmatprep.subr.mxu0 0.0
        %4356 = vmatpush2.msra.mxu0 0.0
        %4357 = vmatprep.subr.mxu0 0.0
        %4358 = vmatpush2.msra.mxu0 0.0
        %4359 = vmatprep.subr.mxu0 0.0
        %4360 = vmatpush2.msra.mxu0 0.0
        %4361 = vmatprep.subr.mxu0 0.0
        %4362 = vmatpush2.msra.mxu0 0.0
        %4363 = vmatprep.subr.mxu0 0.0
        %4364 = vmatpush2.msra.mxu0 0.0
        %4365 = vmatprep.subr.mxu0 0.0
        %4366 = vmatpush2.msra.mxu0 0.0
        %4367 = vmatprep.subr.mxu0 0.0
        %4368 = vmatpush2.msra.mxu0 0.0
        %4369 = vmatprep.subr.mxu0 0.0
        %4370 = vmatpush2.msra.mxu0 0.0
        %4371 = vmatprep.subr.mxu0 0.0
        %4372 = vmatpush2.msra.mxu0 0.0
        %4373 = vmatprep.subr.mxu0 0.0
        %4374 = vmatpush2.msra.mxu0 0.0
        %4375 = vmatprep.subr.mxu0 0.0
        %4376 = vmatpush2.msra.mxu0 0.0
        %4377 = vmatprep.subr.mxu0 0.0
        %4378 = vmatpush2.msra.mxu0 0.0
        %4379 = vmatprep.mubr.f32.mxu0 0.0
        %4380 = vmatmul.mubr.f32.gmra.mxu0 %v4310
        %v4381 = vpop.f32.mrf.mxu0
        %v4382 = vadd.f32 0.0, %v4381
        %v4383 = vpop.f32.mrf.mxu0
        %4384 = vdwg.mxu0
        %v4386 = vsel %vm3547, %v3542, 0
        %v4389 = vsel %vm3551, %v1589, 0
        %4391 = vmatprep.subr.mxu0 0.0
        %4392 = vmatpush1.msra.mxu0 0.0
        %4393 = vmatprep.subr.mxu0 0.0
        %4394 = vmatpush1.msra.mxu0 0.0
        %4395 = vmatprep.subr.mxu0 0.0
        %4396 = vmatpush1.msra.mxu0 0.0
        %4397 = vmatprep.subr.mxu0 0.0
        %4398 = vmatpush1.msra.mxu0 0.0
        %4399 = vmatprep.subr.mxu0 0.0
        %4400 = vmatpush1.msra.mxu0 0.0
        %4401 = vmatprep.subr.mxu0 0.0
        %4402 = vmatpush1.msra.mxu0 0.0
        %4403 = vmatprep.subr.mxu0 0.0
        %4404 = vmatpush1.msra.mxu0 0.0
        %4405 = vmatprep.subr.mxu0 0.0
        %4406 = vmatpush1.msra.mxu0 0.0
        %4407 = vmatprep.subr.mxu0 0.0
        %4408 = vmatpush1.msra.mxu0 0.0
        %4409 = vmatprep.subr.mxu0 0.0
        %4410 = vmatpush1.msra.mxu0 0.0
        %4411 = vmatprep.subr.mxu0 0.0
        %4412 = vmatpush1.msra.mxu0 0.0
        %4413 = vmatprep.subr.mxu0 0.0
        %4414 = vmatpush1.msra.mxu0 0.0
        %4415 = vmatprep.subr.mxu0 0.0
        %4416 = vmatpush1.msra.mxu0 0.0
        %4417 = vmatprep.subr.mxu0 0.0
        %4418 = vmatpush1.msra.mxu0 0.0
        %4419 = vmatprep.subr.mxu0 0.0
        %4420 = vmatpush1.msra.mxu0 0.0
        %4421 = vmatprep.subr.mxu0 0.0
        %4422 = vmatpush1.msra.mxu0 %v4389
        %4423 = vmatprep.subr.mxu0 0.0
        %4424 = vmatpush2.msra.mxu0 0.0
        %4425 = vmatprep.subr.mxu0 0.0
        %4426 = vmatpush2.msra.mxu0 0.0
        %4427 = vmatprep.subr.mxu0 0.0
        %4428 = vmatpush2.msra.mxu0 0.0
        %4429 = vmatprep.subr.mxu0 0.0
        %4430 = vmatpush2.msra.mxu0 0.0
        %4431 = vmatprep.subr.mxu0 0.0
        %4432 = vmatpush2.msra.mxu0 0.0
        %4433 = vmatprep.subr.mxu0 0.0
        %4434 = vmatpush2.msra.mxu0 0.0
        %4435 = vmatprep.subr.mxu0 0.0
        %4436 = vmatpush2.msra.mxu0 0.0
        %4437 = vmatprep.subr.mxu0 0.0
        %4438 = vmatpush2.msra.mxu0 0.0
        %4439 = vmatprep.subr.mxu0 0.0
        %4440 = vmatpush2.msra.mxu0 0.0
        %4441 = vmatprep.subr.mxu0 0.0
        %4442 = vmatpush2.msra.mxu0 0.0
        %4443 = vmatprep.subr.mxu0 0.0
        %4444 = vmatpush2.msra.mxu0 0.0
        %4445 = vmatprep.subr.mxu0 0.0
        %4446 = vmatpush2.msra.mxu0 0.0
        %4447 = vmatprep.subr.mxu0 0.0
        %4448 = vmatpush2.msra.mxu0 0.0
        %4449 = vmatprep.subr.mxu0 0.0
        %4450 = vmatpush2.msra.mxu0 0.0
        %4451 = vmatprep.subr.mxu0 0.0
        %4452 = vmatpush2.msra.mxu0 0.0
        %4453 = vmatprep.subr.mxu0 0.0
        %4454 = vmatpush2.msra.mxu0 0.0
        %4455 = vmatprep.mubr.f32.mxu0 0.0
        %4456 = vmatmul.mubr.f32.gmra.mxu0 %v4386
        %v4457 = vpop.f32.mrf.mxu0
        %v4458 = vadd.f32 0.0, %v4457
        %v4459 = vpop.f32.mrf.mxu0
        %4460 = vdwg.mxu0
        %v4462 = vsel %vm3547, %v3543, 0
        %v4465 = vsel %vm3551, %v1580, 0
        %4467 = vmatprep.subr.mxu0 0.0
        %4468 = vmatpush1.msra.mxu0 0.0
        %4469 = vmatprep.subr.mxu0 0.0
        %4470 = vmatpush1.msra.mxu0 0.0
        %4471 = vmatprep.subr.mxu0 0.0
        %4472 = vmatpush1.msra.mxu0 0.0
        %4473 = vmatprep.subr.mxu0 0.0
        %4474 = vmatpush1.msra.mxu0 0.0
        %4475 = vmatprep.subr.mxu0 0.0
        %4476 = vmatpush1.msra.mxu0 0.0
        %4477 = vmatprep.subr.mxu0 0.0
        %4478 = vmatpush1.msra.mxu0 0.0
        %4479 = vmatprep.subr.mxu0 0.0
        %4480 = vmatpush1.msra.mxu0 0.0
        %4481 = vmatprep.subr.mxu0 0.0
        %4482 = vmatpush1.msra.mxu0 0.0
        %4483 = vmatprep.subr.mxu0 0.0
        %4484 = vmatpush1.msra.mxu0 0.0
        %4485 = vmatprep.subr.mxu0 0.0
        %4486 = vmatpush1.msra.mxu0 0.0
        %4487 = vmatprep.subr.mxu0 0.0
        %4488 = vmatpush1.msra.mxu0 0.0
        %4489 = vmatprep.subr.mxu0 0.0
        %4490 = vmatpush1.msra.mxu0 0.0
        %4491 = vmatprep.subr.mxu0 0.0
        %4492 = vmatpush1.msra.mxu0 0.0
        %4493 = vmatprep.subr.mxu0 0.0
        %4494 = vmatpush1.msra.mxu0 0.0
        %4495 = vmatprep.subr.mxu0 0.0
        %4496 = vmatpush1.msra.mxu0 0.0
        %4497 = vmatprep.subr.mxu0 0.0
        %4498 = vmatpush1.msra.mxu0 %v4465
        %4499 = vmatprep.subr.mxu0 0.0
        %4500 = vmatpush2.msra.mxu0 0.0
        %4501 = vmatprep.subr.mxu0 0.0
        %4502 = vmatpush2.msra.mxu0 0.0
        %4503 = vmatprep.subr.mxu0 0.0
        %4504 = vmatpush2.msra.mxu0 0.0
        %4505 = vmatprep.subr.mxu0 0.0
        %4506 = vmatpush2.msra.mxu0 0.0
        %4507 = vmatprep.subr.mxu0 0.0
        %4508 = vmatpush2.msra.mxu0 0.0
        %4509 = vmatprep.subr.mxu0 0.0
        %4510 = vmatpush2.msra.mxu0 0.0
        %4511 = vmatprep.subr.mxu0 0.0
        %4512 = vmatpush2.msra.mxu0 0.0
        %4513 = vmatprep.subr.mxu0 0.0
        %4514 = vmatpush2.msra.mxu0 0.0
        %4515 = vmatprep.subr.mxu0 0.0
        %4516 = vmatpush2.msra.mxu0 0.0
        %4517 = vmatprep.subr.mxu0 0.0
        %4518 = vmatpush2.msra.mxu0 0.0
        %4519 = vmatprep.subr.mxu0 0.0
        %4520 = vmatpush2.msra.mxu0 0.0
        %4521 = vmatprep.subr.mxu0 0.0
        %4522 = vmatpush2.msra.mxu0 0.0
        %4523 = vmatprep.subr.mxu0 0.0
        %4524 = vmatpush2.msra.mxu0 0.0
        %4525 = vmatprep.subr.mxu0 0.0
        %4526 = vmatpush2.msra.mxu0 0.0
        %4527 = vmatprep.subr.mxu0 0.0
        %4528 = vmatpush2.msra.mxu0 0.0
        %4529 = vmatprep.subr.mxu0 0.0
        %4530 = vmatpush2.msra.mxu0 0.0
        %4531 = vmatprep.mubr.f32.mxu0 0.0
        %4532 = vmatmul.mubr.f32.gmra.mxu0 %v4462
        %v4533 = vpop.f32.mrf.mxu0
        %v4534 = vadd.f32 0.0, %v4533
        %v4535 = vpop.f32.mrf.mxu0
        %4536 = vdwg.mxu0
        %v4538 = vsel %vm3547, %v3544, 0
        %v4541 = vsel %vm3551, %v1590, 0
        %4543 = vmatprep.subr.mxu0 0.0
        %4544 = vmatpush1.msra.mxu0 0.0
        %4545 = vmatprep.subr.mxu0 0.0
        %4546 = vmatpush1.msra.mxu0 0.0
        %4547 = vmatprep.subr.mxu0 0.0
        %4548 = vmatpush1.msra.mxu0 0.0
        %4549 = vmatprep.subr.mxu0 0.0
        %4550 = vmatpush1.msra.mxu0 0.0
        %4551 = vmatprep.subr.mxu0 0.0
        %4552 = vmatpush1.msra.mxu0 0.0
        %4553 = vmatprep.subr.mxu0 0.0
        %4554 = vmatpush1.msra.mxu0 0.0
        %4555 = vmatprep.subr.mxu0 0.0
        %4556 = vmatpush1.msra.mxu0 0.0
        %4557 = vmatprep.subr.mxu0 0.0
        %4558 = vmatpush1.msra.mxu0 0.0
        %4559 = vmatprep.subr.mxu0 0.0
        %4560 = vmatpush1.msra.mxu0 0.0
        %4561 = vmatprep.subr.mxu0 0.0
        %4562 = vmatpush1.msra.mxu0 0.0
        %4563 = vmatprep.subr.mxu0 0.0
        %4564 = vmatpush1.msra.mxu0 0.0
        %4565 = vmatprep.subr.mxu0 0.0
        %4566 = vmatpush1.msra.mxu0 0.0
        %4567 = vmatprep.subr.mxu0 0.0
        %4568 = vmatpush1.msra.mxu0 0.0
        %4569 = vmatprep.subr.mxu0 0.0
        %4570 = vmatpush1.msra.mxu0 0.0
        %4571 = vmatprep.subr.mxu0 0.0
        %4572 = vmatpush1.msra.mxu0 0.0
        %4573 = vmatprep.subr.mxu0 0.0
        %4574 = vmatpush1.msra.mxu0 %v4541
        %4575 = vmatprep.subr.mxu0 0.0
        %4576 = vmatpush2.msra.mxu0 0.0
        %4577 = vmatprep.subr.mxu0 0.0
        %4578 = vmatpush2.msra.mxu0 0.0
        %4579 = vmatprep.subr.mxu0 0.0
        %4580 = vmatpush2.msra.mxu0 0.0
        %4581 = vmatprep.subr.mxu0 0.0
        %4582 = vmatpush2.msra.mxu0 0.0
        %4583 = vmatprep.subr.mxu0 0.0
        %4584 = vmatpush2.msra.mxu0 0.0
        %4585 = vmatprep.subr.mxu0 0.0
        %4586 = vmatpush2.msra.mxu0 0.0
        %4587 = vmatprep.subr.mxu0 0.0
        %4588 = vmatpush2.msra.mxu0 0.0
        %4589 = vmatprep.subr.mxu0 0.0
        %4590 = vmatpush2.msra.mxu0 0.0
        %4591 = vmatprep.subr.mxu0 0.0
        %4592 = vmatpush2.msra.mxu0 0.0
        %4593 = vmatprep.subr.mxu0 0.0
        %4594 = vmatpush2.msra.mxu0 0.0
        %4595 = vmatprep.subr.mxu0 0.0
        %4596 = vmatpush2.msra.mxu0 0.0
        %4597 = vmatprep.subr.mxu0 0.0
        %4598 = vmatpush2.msra.mxu0 0.0
        %4599 = vmatprep.subr.mxu0 0.0
        %4600 = vmatpush2.msra.mxu0 0.0
        %4601 = vmatprep.subr.mxu0 0.0
        %4602 = vmatpush2.msra.mxu0 0.0
        %4603 = vmatprep.subr.mxu0 0.0
        %4604 = vmatpush2.msra.mxu0 0.0
        %4605 = vmatprep.subr.mxu0 0.0
        %4606 = vmatpush2.msra.mxu0 0.0
        %4607 = vmatprep.mubr.f32.mxu0 0.0
        %4608 = vmatmul.mubr.f32.gmra.mxu0 %v4538
        %v4609 = vpop.f32.mrf.mxu0
        %v4610 = vadd.f32 0.0, %v4609
        %v4611 = vpop.f32.mrf.mxu0
        %4612 = vdwg.mxu0
        %v4614 = vsel %vm3547, %v3545, 0
        %v4617 = vsel %vm3551, %v1587, 0
        %4619 = vmatprep.subr.mxu0 0.0
        %4620 = vmatpush1.msra.mxu0 0.0
        %4621 = vmatprep.subr.mxu0 0.0
        %4622 = vmatpush1.msra.mxu0 0.0
        %4623 = vmatprep.subr.mxu0 0.0
        %4624 = vmatpush1.msra.mxu0 0.0
        %4625 = vmatprep.subr.mxu0 0.0
        %4626 = vmatpush1.msra.mxu0 0.0
        %4627 = vmatprep.subr.mxu0 0.0
        %4628 = vmatpush1.msra.mxu0 0.0
        %4629 = vmatprep.subr.mxu0 0.0
        %4630 = vmatpush1.msra.mxu0 0.0
        %4631 = vmatprep.subr.mxu0 0.0
        %4632 = vmatpush1.msra.mxu0 0.0
        %4633 = vmatprep.subr.mxu0 0.0
        %4634 = vmatpush1.msra.mxu0 0.0
        %4635 = vmatprep.subr.mxu0 0.0
        %4636 = vmatpush1.msra.mxu0 0.0
        %4637 = vmatprep.subr.mxu0 0.0
        %4638 = vmatpush1.msra.mxu0 0.0
        %4639 = vmatprep.subr.mxu0 0.0
        %4640 = vmatpush1.msra.mxu0 0.0
        %4641 = vmatprep.subr.mxu0 0.0
        %4642 = vmatpush1.msra.mxu0 0.0
        %4643 = vmatprep.subr.mxu0 0.0
        %4644 = vmatpush1.msra.mxu0 0.0
        %4645 = vmatprep.subr.mxu0 0.0
        %4646 = vmatpush1.msra.mxu0 0.0
        %4647 = vmatprep.subr.mxu0 0.0
        %4648 = vmatpush1.msra.mxu0 0.0
        %4649 = vmatprep.subr.mxu0 0.0
        %4650 = vmatpush1.msra.mxu0 %v4617
        %4651 = vmatprep.subr.mxu0 0.0
        %4652 = vmatpush2.msra.mxu0 0.0
        %4653 = vmatprep.subr.mxu0 0.0
        %4654 = vmatpush2.msra.mxu0 0.0
        %4655 = vmatprep.subr.mxu0 0.0
        %4656 = vmatpush2.msra.mxu0 0.0
        %4657 = vmatprep.subr.mxu0 0.0
        %4658 = vmatpush2.msra.mxu0 0.0
        %4659 = vmatprep.subr.mxu0 0.0
        %4660 = vmatpush2.msra.mxu0 0.0
        %4661 = vmatprep.subr.mxu0 0.0
        %4662 = vmatpush2.msra.mxu0 0.0
        %4663 = vmatprep.subr.mxu0 0.0
        %4664 = vmatpush2.msra.mxu0 0.0
        %4665 = vmatprep.subr.mxu0 0.0
        %4666 = vmatpush2.msra.mxu0 0.0
        %4667 = vmatprep.subr.mxu0 0.0
        %4668 = vmatpush2.msra.mxu0 0.0
        %4669 = vmatprep.subr.mxu0 0.0
        %4670 = vmatpush2.msra.mxu0 0.0
        %4671 = vmatprep.subr.mxu0 0.0
        %4672 = vmatpush2.msra.mxu0 0.0
        %4673 = vmatprep.subr.mxu0 0.0
        %4674 = vmatpush2.msra.mxu0 0.0
        %4675 = vmatprep.subr.mxu0 0.0
        %4676 = vmatpush2.msra.mxu0 0.0
        %4677 = vmatprep.subr.mxu0 0.0
        %4678 = vmatpush2.msra.mxu0 0.0
        %4679 = vmatprep.subr.mxu0 0.0
        %4680 = vmatpush2.msra.mxu0 0.0
        %4681 = vmatprep.subr.mxu0 0.0
        %4682 = vmatpush2.msra.mxu0 0.0
        %4683 = vmatprep.mubr.f32.mxu0 0.0
        %4684 = vmatmul.mubr.f32.gmra.mxu0 %v4614
        %v4685 = vpop.f32.mrf.mxu0
        %v4686 = vadd.f32 0.0, %v4685
        %v4687 = vpop.f32.mrf.mxu0
        %4688 = vdwg.mxu0
        %v4690 = vsel %vm3547, %v3546, 0
        %v4693 = vsel %vm3551, %v1591, 0
        %4695 = vmatprep.subr.mxu0 0.0
        %4696 = vmatpush1.msra.mxu0 0.0
        %4697 = vmatprep.subr.mxu0 0.0
        %4698 = vmatpush1.msra.mxu0 0.0
        %4699 = vmatprep.subr.mxu0 0.0
        %4700 = vmatpush1.msra.mxu0 0.0
        %4701 = vmatprep.subr.mxu0 0.0
        %4702 = vmatpush1.msra.mxu0 0.0
        %4703 = vmatprep.subr.mxu0 0.0
        %4704 = vmatpush1.msra.mxu0 0.0
        %4705 = vmatprep.subr.mxu0 0.0
        %4706 = vmatpush1.msra.mxu0 0.0
        %4707 = vmatprep.subr.mxu0 0.0
        %4708 = vmatpush1.msra.mxu0 0.0
        %4709 = vmatprep.subr.mxu0 0.0
        %4710 = vmatpush1.msra.mxu0 0.0
        %4711 = vmatprep.subr.mxu0 0.0
        %4712 = vmatpush1.msra.mxu0 0.0
        %4713 = vmatprep.subr.mxu0 0.0
        %4714 = vmatpush1.msra.mxu0 0.0
        %4715 = vmatprep.subr.mxu0 0.0
        %4716 = vmatpush1.msra.mxu0 0.0
        %4717 = vmatprep.subr.mxu0 0.0
        %4718 = vmatpush1.msra.mxu0 0.0
        %4719 = vmatprep.subr.mxu0 0.0
        %4720 = vmatpush1.msra.mxu0 0.0
        %4721 = vmatprep.subr.mxu0 0.0
        %4722 = vmatpush1.msra.mxu0 0.0
        %4723 = vmatprep.subr.mxu0 0.0
        %4724 = vmatpush1.msra.mxu0 0.0
        %4725 = vmatprep.subr.mxu0 0.0
        %4726 = vmatpush1.msra.mxu0 %v4693
        %4727 = vmatprep.subr.mxu0 0.0
        %4728 = vmatpush2.msra.mxu0 0.0
        %4729 = vmatprep.subr.mxu0 0.0
        %4730 = vmatpush2.msra.mxu0 0.0
        %4731 = vmatprep.subr.mxu0 0.0
        %4732 = vmatpush2.msra.mxu0 0.0
        %4733 = vmatprep.subr.mxu0 0.0
        %4734 = vmatpush2.msra.mxu0 0.0
        %4735 = vmatprep.subr.mxu0 0.0
        %4736 = vmatpush2.msra.mxu0 0.0
        %4737 = vmatprep.subr.mxu0 0.0
        %4738 = vmatpush2.msra.mxu0 0.0
        %4739 = vmatprep.subr.mxu0 0.0
        %4740 = vmatpush2.msra.mxu0 0.0
        %4741 = vmatprep.subr.mxu0 0.0
        %4742 = vmatpush2.msra.mxu0 0.0
        %4743 = vmatprep.subr.mxu0 0.0
        %4744 = vmatpush2.msra.mxu0 0.0
        %4745 = vmatprep.subr.mxu0 0.0
        %4746 = vmatpush2.msra.mxu0 0.0
        %4747 = vmatprep.subr.mxu0 0.0
        %4748 = vmatpush2.msra.mxu0 0.0
        %4749 = vmatprep.subr.mxu0 0.0
        %4750 = vmatpush2.msra.mxu0 0.0
        %4751 = vmatprep.subr.mxu0 0.0
        %4752 = vmatpush2.msra.mxu0 0.0
        %4753 = vmatprep.subr.mxu0 0.0
        %4754 = vmatpush2.msra.mxu0 0.0
        %4755 = vmatprep.subr.mxu0 0.0
        %4756 = vmatpush2.msra.mxu0 0.0
        %4757 = vmatprep.subr.mxu0 0.0
        %4758 = vmatpush2.msra.mxu0 0.0
        %4759 = vmatprep.mubr.f32.mxu0 0.0
        %4760 = vmatmul.mubr.f32.gmra.mxu0 %v4690
        %v4761 = vpop.f32.mrf.mxu0
        %v4762 = vadd.f32 0.0, %v4761
        %v4763 = vpop.f32.mrf.mxu0
        %4764 = vdwg.mxu0
        %v4765 = vcombine.low %v3622, %v3774
        %v4767 = vunpack.c.l.s4 1983009808
        %v4768 = vunpack.c.0.s8 %v4767
        %v4769 = vlaneseq
        %v4770 = vshrl.u32 %v4769, 7
        %v4771 = vsub.s32 %v4768, %v4770
        %v4772 = vrot.slane %v4765, %v4771
        %v4773 = vcombine.low %v3698, %v3850
        %v4775 = vunpack.c.l.s4 1983009808
        %v4776 = vunpack.c.0.s8 %v4775
        %v4777 = vlaneseq
        %v4778 = vshrl.u32 %v4777, 7
        %v4779 = vsub.s32 %v4776, %v4778
        %v4780 = vrot.slane %v4773, %v4779
        %v4781 = vcombine.low %v3926, %v4078
        %v4783 = vunpack.c.l.s4 1983009808
        %v4784 = vunpack.c.0.s8 %v4783
        %v4785 = vlaneseq
        %v4786 = vshrl.u32 %v4785, 7
        %v4787 = vsub.s32 %v4784, %v4786
        %v4788 = vrot.slane %v4781, %v4787
        %v4789 = vcombine.low %v4002, %v4154
        %v4791 = vunpack.c.l.s4 1983009808
        %v4792 = vunpack.c.0.s8 %v4791
        %v4793 = vlaneseq
        %v4794 = vshrl.u32 %v4793, 7
        %v4795 = vsub.s32 %v4792, %v4794
        %v4796 = vrot.slane %v4789, %v4795
        %v4797 = vcombine.low %v4772, %v4780
        %v4798 = vcombine.high %v4772, %v4780
        %v4800 = vunpack.c.l.s4 1934713408
        %v4801 = vunpack.c.0.s8 %v4800
        %v4802 = vlaneseq
        %v4803 = vshrl.u32 %v4802, 7
        %v4804 = vsub.s32 %v4801, %v4803
        %v4805 = vrot.slane %v4797, %v4804
        %v4807 = vunpack.c.l.s4 1934713408
        %v4808 = vunpack.c.0.s8 %v4807
        %v4809 = vlaneseq
        %v4810 = vshrl.u32 %v4809, 7
        %v4811 = vsub.s32 %v4808, %v4810
        %v4812 = vrot.slane %v4798, %v4811
        %v4813 = vcombine.low %v4788, %v4796
        %v4814 = vcombine.high %v4788, %v4796
        %v4816 = vunpack.c.l.s4 1934713408
        %v4817 = vunpack.c.0.s8 %v4816
        %v4818 = vlaneseq
        %v4819 = vshrl.u32 %v4818, 7
        %v4820 = vsub.s32 %v4817, %v4819
        %v4821 = vrot.slane %v4813, %v4820
        %v4823 = vunpack.c.l.s4 1934713408
        %v4824 = vunpack.c.0.s8 %v4823
        %v4825 = vlaneseq
        %v4826 = vshrl.u32 %v4825, 7
        %v4827 = vsub.s32 %v4824, %v4826
        %v4828 = vrot.slane %v4814, %v4827
        %v4829 = vcombine.low %v4805, %v4821
        %v4830 = vcombine.high %v4805, %v4821
        %v4831 = vcombine.low %v4812, %v4828
        %v4832 = vcombine.high %v4812, %v4828
        %v4833 = vcombine.low %v4230, %v4382
        %v4835 = vunpack.c.l.s4 1983009808
        %v4836 = vunpack.c.0.s8 %v4835
        %v4837 = vlaneseq
        %v4838 = vshrl.u32 %v4837, 7
        %v4839 = vsub.s32 %v4836, %v4838
        %v4840 = vrot.slane %v4833, %v4839
        %v4841 = vcombine.low %v4306, %v4458
        %v4843 = vunpack.c.l.s4 1983009808
        %v4844 = vunpack.c.0.s8 %v4843
        %v4845 = vlaneseq
        %v4846 = vshrl.u32 %v4845, 7
        %v4847 = vsub.s32 %v4844, %v4846
        %v4848 = vrot.slane %v4841, %v4847
        %v4849 = vcombine.low %v4534, %v4686
        %v4851 = vunpack.c.l.s4 1983009808
        %v4852 = vunpack.c.0.s8 %v4851
        %v4853 = vlaneseq
        %v4854 = vshrl.u32 %v4853, 7
        %v4855 = vsub.s32 %v4852, %v4854
        %v4856 = vrot.slane %v4849, %v4855
        %v4857 = vcombine.low %v4610, %v4762
        %v4859 = vunpack.c.l.s4 1983009808
        %v4860 = vunpack.c.0.s8 %v4859
        %v4861 = vlaneseq
        %v4862 = vshrl.u32 %v4861, 7
        %v4863 = vsub.s32 %v4860, %v4862
        %v4864 = vrot.slane %v4857, %v4863
        %v4865 = vcombine.low %v4840, %v4848
        %v4866 = vcombine.high %v4840, %v4848
        %v4868 = vunpack.c.l.s4 1934713408
        %v4869 = vunpack.c.0.s8 %v4868
        %v4870 = vlaneseq
        %v4871 = vshrl.u32 %v4870, 7
        %v4872 = vsub.s32 %v4869, %v4871
        %v4873 = vrot.slane %v4865, %v4872
        %v4875 = vunpack.c.l.s4 1934713408
        %v4876 = vunpack.c.0.s8 %v4875
        %v4877 = vlaneseq
        %v4878 = vshrl.u32 %v4877, 7
        %v4879 = vsub.s32 %v4876, %v4878
        %v4880 = vrot.slane %v4866, %v4879
        %v4881 = vcombine.low %v4856, %v4864
        %v4882 = vcombine.high %v4856, %v4864
        %v4884 = vunpack.c.l.s4 1934713408
        %v4885 = vunpack.c.0.s8 %v4884
        %v4886 = vlaneseq
        %v4887 = vshrl.u32 %v4886, 7
        %v4888 = vsub.s32 %v4885, %v4887
        %v4889 = vrot.slane %v4881, %v4888
        %v4891 = vunpack.c.l.s4 1934713408
        %v4892 = vunpack.c.0.s8 %v4891
        %v4893 = vlaneseq
        %v4894 = vshrl.u32 %v4893, 7
        %v4895 = vsub.s32 %v4892, %v4894
        %v4896 = vrot.slane %v4882, %v4895
        %v4897 = vcombine.low %v4873, %v4889
        %v4898 = vcombine.high %v4873, %v4889
        %v4899 = vcombine.low %v4880, %v4896
        %v4900 = vcombine.high %v4880, %v4896
        %4903 = vrot.lane.b32.xlu0 %v4830, 8
        %v4904 = vpop.permute.xlu0 %4903
        %4905 = vrot.lane.b32.xlu0 %v4898, 8
        %v4906 = vpop.permute.xlu0 %4905
        %4911 = vrot.lane.b32.xlu0 %v4831, 16
        %v4912 = vpop.permute.xlu0 %4911
        %4913 = vrot.lane.b32.xlu0 %v4899, 16
        %v4914 = vpop.permute.xlu0 %4913
        %4919 = vrot.lane.b32.xlu0 %v4832, 24
        %v4920 = vpop.permute.xlu0 %4919
        %4921 = vrot.lane.b32.xlu0 %v4900, 24
        %v4922 = vpop.permute.xlu0 %4921
        %v4925 = vsel %vm2137, %v4829, %v4904
        %v4926 = vsel %vm2137, %v4897, %v4906
        %vm4927 = vcmask 130048
        %v4928 = vsel %vm4927, %v4925, %v4912
        %v4929 = vsel %vm4927, %v4926, %v4914
        %vm4930 = vcmask 195584
        %v4931 = vsel %vm4930, %v4928, %v4920
        %v4932 = vsel %vm4930, %v4929, %v4922
        %v4933 = vld [vmem:[%s727] sm:$0xff]
        %v4934 = vld [vmem:[%s727 + $0x8] sm:$0xff]
        %v4935 = vld [vmem:[%s727 + $0x10] sm:$0xff]
        %v4936 = vld [vmem:[%s727 + $0x18] sm:$0xff]
        %v4938 = vsel %vm889, %v4931, 0
        %v4941 = vsel %vm889, %v4932, 0
        %4943 = vmatprep.subr.mxu0 0.0
        %4944 = vmatpush1.msra.mxu0 0.0
        %4945 = vmatprep.subr.mxu0 0.0
        %4946 = vmatpush1.msra.mxu0 0.0
        %4947 = vmatprep.subr.mxu0 0.0
        %4948 = vmatpush1.msra.mxu0 0.0
        %4949 = vmatprep.subr.mxu0 0.0
        %4950 = vmatpush1.msra.mxu0 0.0
        %4951 = vmatprep.subr.mxu0 0.0
        %4952 = vmatpush1.msra.mxu0 0.0
        %4953 = vmatprep.subr.mxu0 0.0
        %4954 = vmatpush1.msra.mxu0 0.0
        %4955 = vmatprep.subr.mxu0 0.0
        %4956 = vmatpush1.msra.mxu0 0.0
        %4957 = vmatprep.subr.mxu0 0.0
        %4958 = vmatpush1.msra.mxu0 0.0
        %4959 = vmatprep.subr.mxu0 0.0
        %4960 = vmatpush1.msra.mxu0 0.0
        %4961 = vmatprep.subr.mxu0 0.0
        %4962 = vmatpush1.msra.mxu0 0.0
        %4963 = vmatprep.subr.mxu0 0.0
        %4964 = vmatpush1.msra.mxu0 0.0
        %4965 = vmatprep.subr.mxu0 0.0
        %4966 = vmatpush1.msra.mxu0 0.0
        %4967 = vmatprep.subr.mxu0 0.0
        %4968 = vmatpush1.msra.mxu0 %v4936
        %4969 = vmatprep.subr.mxu0 0.0
        %4970 = vmatpush1.msra.mxu0 %v4935
        %4971 = vmatprep.subr.mxu0 0.0
        %4972 = vmatpush1.msra.mxu0 %v4934
        %4973 = vmatprep.subr.mxu0 0.0
        %4974 = vmatpush1.msra.mxu0 %v4933
        %4975 = vmatprep.subr.mxu0 0.0
        %4976 = vmatpush2.msra.mxu0 0.0
        %4977 = vmatprep.subr.mxu0 0.0
        %4978 = vmatpush2.msra.mxu0 0.0
        %4979 = vmatprep.subr.mxu0 0.0
        %4980 = vmatpush2.msra.mxu0 0.0
        %4981 = vmatprep.subr.mxu0 0.0
        %4982 = vmatpush2.msra.mxu0 0.0
        %4983 = vmatprep.subr.mxu0 0.0
        %4984 = vmatpush2.msra.mxu0 0.0
        %4985 = vmatprep.subr.mxu0 0.0
        %4986 = vmatpush2.msra.mxu0 0.0
        %4987 = vmatprep.subr.mxu0 0.0
        %4988 = vmatpush2.msra.mxu0 0.0
        %4989 = vmatprep.subr.mxu0 0.0
        %4990 = vmatpush2.msra.mxu0 0.0
        %4991 = vmatprep.subr.mxu0 0.0
        %4992 = vmatpush2.msra.mxu0 0.0
        %4993 = vmatprep.subr.mxu0 0.0
        %4994 = vmatpush2.msra.mxu0 0.0
        %4995 = vmatprep.subr.mxu0 0.0
        %4996 = vmatpush2.msra.mxu0 0.0
        %4997 = vmatprep.subr.mxu0 0.0
        %4998 = vmatpush2.msra.mxu0 0.0
        %4999 = vmatprep.subr.mxu0 0.0
        %5000 = vmatpush2.msra.mxu0 0.0
        %5001 = vmatprep.subr.mxu0 0.0
        %5002 = vmatpush2.msra.mxu0 0.0
        %5003 = vmatprep.subr.mxu0 0.0
        %5004 = vmatpush2.msra.mxu0 0.0
        %5005 = vmatprep.subr.mxu0 0.0
        %5006 = vmatpush2.msra.mxu0 0.0
        %5007 = vmatprep.mubr.f32.mxu0 0.0
        %5008 = vmatmul.mubr.f32.gmra.mxu0 %v4938
        %v5009 = vpop.f32.mrf.mxu0
        %v5010 = vadd.f32 0.0, %v5009
        %v5011 = vpop.f32.mrf.mxu0
        %5012 = vmatprep.mubr.f32.mxu0 0.0
        %5013 = vmatmul.mubr.f32.gmra.mxu0 %v4941
        %v5014 = vpop.f32.mrf.mxu0
        %v5015 = vadd.f32 0.0, %v5014
        %v5016 = vpop.f32.mrf.mxu0
        %5017 = vdwg.mxu0
        %v5018 = vadd.f32 %v852, %v5010
        %v5019 = vadd.f32 %v853, %v5015
        %v5020 = vld [vmem:[%s748] sm:$0x1]
        %v5021 = vmul.f32 %v5018, %v5018
        %v5022 = vmul.f32 %v5019, %v5019
        %v5023 = vsel %vm889, %v5021, 0.0
        %5024 = vadd.xlane.f32.xlu0 %v5023
        %v5025 = vpop.xlane.xlu0 %5024
        %v5026 = vsel %vm889, %v5022, 0.0
        %5027 = vadd.xlane.f32.xlu0 %v5026
        %v5028 = vpop.xlane.xlu0 %5027
        %v5029 = vmul.f32 %v5025, %v896
        %v5030 = vmul.f32 %v5028, %v896
        %v5031 = vadd.f32 %v5029, 1e-06
        %v5032 = vadd.f32 %v5030, 1e-06
        %v5033 = vrsqrt.pop %v5031
        %v5034 = vrsqrt.pop %v5032
        %v5035 = vmul.f32 %v5018, %v5033
        %v5036 = vmul.f32 %v5019, %v5034
        %v5038 = vlaneseq
        %v5039 = vshrl.u32 %v5038, 7
        %v5040 = vsub.s32 0, %v5039
        %v5041 = vrot.slane %v5020, %v5040
        %v5043 = vmul.f32 %v5035, %v5041
        %v5044 = vmul.f32 %v5036, %v5041
        %v5045 = vld [vmem:[%s732] sm:$0xff]
        %v5046 = vld [vmem:[%s732 + $0x8] sm:$0xff]
        %v5047 = vld [vmem:[%s732 + $0x10] sm:$0xff]
        %v5048 = vld [vmem:[%s732 + $0x18] sm:$0xff]
        %v5050 = vsel %vm889, %v5043, 0
        %v5053 = vsel %vm889, %v5044, 0
        %5055 = vmatprep.subr.mxu0 0.0
        %5056 = vmatpush1.msra.mxu0 0.0
        %5057 = vmatprep.subr.mxu0 0.0
        %5058 = vmatpush1.msra.mxu0 0.0
        %5059 = vmatprep.subr.mxu0 0.0
        %5060 = vmatpush1.msra.mxu0 0.0
        %5061 = vmatprep.subr.mxu0 0.0
        %5062 = vmatpush1.msra.mxu0 0.0
        %5063 = vmatprep.subr.mxu0 0.0
        %5064 = vmatpush1.msra.mxu0 0.0
        %5065 = vmatprep.subr.mxu0 0.0
        %5066 = vmatpush1.msra.mxu0 0.0
        %5067 = vmatprep.subr.mxu0 0.0
        %5068 = vmatpush1.msra.mxu0 0.0
        %5069 = vmatprep.subr.mxu0 0.0
        %5070 = vmatpush1.msra.mxu0 0.0
        %5071 = vmatprep.subr.mxu0 0.0
        %5072 = vmatpush1.msra.mxu0 0.0
        %5073 = vmatprep.subr.mxu0 0.0
        %5074 = vmatpush1.msra.mxu0 0.0
        %5075 = vmatprep.subr.mxu0 0.0
        %5076 = vmatpush1.msra.mxu0 0.0
        %5077 = vmatprep.subr.mxu0 0.0
        %5078 = vmatpush1.msra.mxu0 0.0
        %5079 = vmatprep.subr.mxu0 0.0
        %5080 = vmatpush1.msra.mxu0 %v5048
        %5081 = vmatprep.subr.mxu0 0.0
        %5082 = vmatpush1.msra.mxu0 %v5047
        %5083 = vmatprep.subr.mxu0 0.0
        %5084 = vmatpush1.msra.mxu0 %v5046
        %5085 = vmatprep.subr.mxu0 0.0
        %5086 = vmatpush1.msra.mxu0 %v5045
        %5087 = vmatprep.subr.mxu0 0.0
        %5088 = vmatpush2.msra.mxu0 0.0
        %5089 = vmatprep.subr.mxu0 0.0
        %5090 = vmatpush2.msra.mxu0 0.0
        %5091 = vmatprep.subr.mxu0 0.0
        %5092 = vmatpush2.msra.mxu0 0.0
        %5093 = vmatprep.subr.mxu0 0.0
        %5094 = vmatpush2.msra.mxu0 0.0
        %5095 = vmatprep.subr.mxu0 0.0
        %5096 = vmatpush2.msra.mxu0 0.0
        %5097 = vmatprep.subr.mxu0 0.0
        %5098 = vmatpush2.msra.mxu0 0.0
        %5099 = vmatprep.subr.mxu0 0.0
        %5100 = vmatpush2.msra.mxu0 0.0
        %5101 = vmatprep.subr.mxu0 0.0
        %5102 = vmatpush2.msra.mxu0 0.0
        %5103 = vmatprep.subr.mxu0 0.0
        %5104 = vmatpush2.msra.mxu0 0.0
        %5105 = vmatprep.subr.mxu0 0.0
        %5106 = vmatpush2.msra.mxu0 0.0
        %5107 = vmatprep.subr.mxu0 0.0
        %5108 = vmatpush2.msra.mxu0 0.0
        %5109 = vmatprep.subr.mxu0 0.0
        %5110 = vmatpush2.msra.mxu0 0.0
        %5111 = vmatprep.subr.mxu0 0.0
        %5112 = vmatpush2.msra.mxu0 0.0
        %5113 = vmatprep.subr.mxu0 0.0
        %5114 = vmatpush2.msra.mxu0 0.0
        %5115 = vmatprep.subr.mxu0 0.0
        %5116 = vmatpush2.msra.mxu0 0.0
        %5117 = vmatprep.subr.mxu0 0.0
        %5118 = vmatpush2.msra.mxu0 0.0
        %5119 = vmatprep.mubr.f32.mxu0 0.0
        %5120 = vmatmul.mubr.f32.gmra.mxu0 %v5050
        %v5121 = vpop.f32.mrf.mxu0
        %v5122 = vadd.f32 0.0, %v5121
        %v5123 = vpop.f32.mrf.mxu0
        %5124 = vmatprep.mubr.f32.mxu0 0.0
        %5125 = vmatmul.mubr.f32.gmra.mxu0 %v5053
        %v5126 = vpop.f32.mrf.mxu0
        %v5127 = vadd.f32 0.0, %v5126
        %v5128 = vpop.f32.mrf.mxu0
        %5129 = vdwg.mxu0
        %v5130 = vsub.f32 0.0, %v5122
        %v5131 = vsub.f32 0.0, %v5127
        %v5132 = vmul.f32 %v5130, 1.442695
        %v5133 = vpow.pop %v5132
        %v5134 = vmul.f32 %v5131, 1.442695
        %v5135 = vpow.pop %v5134
        %v5136 = vadd.f32 %v5133, 1.0
        %v5137 = vadd.f32 %v5135, 1.0
        %v5138 = vrcp.pop %v5136
        %v5139 = vmul.f32 1.0, %v5138
        %v5140 = vrcp.pop %v5137
        %v5141 = vmul.f32 1.0, %v5140
        %v5142 = vmul.f32 %v5122, %v5139
        %v5143 = vmul.f32 %v5127, %v5141
        %v5144 = vld [vmem:[%s742] sm:$0xff]
        %v5145 = vld [vmem:[%s742 + $0x8] sm:$0xff]
        %v5146 = vld [vmem:[%s742 + $0x10] sm:$0xff]
        %v5147 = vld [vmem:[%s742 + $0x18] sm:$0xff]
        %5148 = vmatprep.subr.mxu0 0.0
        %5149 = vmatpush1.msra.mxu0 0.0
        %5150 = vmatprep.subr.mxu0 0.0
        %5151 = vmatpush1.msra.mxu0 0.0
        %5152 = vmatprep.subr.mxu0 0.0
        %5153 = vmatpush1.msra.mxu0 0.0
        %5154 = vmatprep.subr.mxu0 0.0
        %5155 = vmatpush1.msra.mxu0 0.0
        %5156 = vmatprep.subr.mxu0 0.0
        %5157 = vmatpush1.msra.mxu0 0.0
        %5158 = vmatprep.subr.mxu0 0.0
        %5159 = vmatpush1.msra.mxu0 0.0
        %5160 = vmatprep.subr.mxu0 0.0
        %5161 = vmatpush1.msra.mxu0 0.0
        %5162 = vmatprep.subr.mxu0 0.0
        %5163 = vmatpush1.msra.mxu0 0.0
        %5164 = vmatprep.subr.mxu0 0.0
        %5165 = vmatpush1.msra.mxu0 0.0
        %5166 = vmatprep.subr.mxu0 0.0
        %5167 = vmatpush1.msra.mxu0 0.0
        %5168 = vmatprep.subr.mxu0 0.0
        %5169 = vmatpush1.msra.mxu0 0.0
        %5170 = vmatprep.subr.mxu0 0.0
        %5171 = vmatpush1.msra.mxu0 0.0
        %5172 = vmatprep.subr.mxu0 0.0
        %5173 = vmatpush1.msra.mxu0 %v5147
        %5174 = vmatprep.subr.mxu0 0.0
        %5175 = vmatpush1.msra.mxu0 %v5146
        %5176 = vmatprep.subr.mxu0 0.0
        %5177 = vmatpush1.msra.mxu0 %v5145
        %5178 = vmatprep.subr.mxu0 0.0
        %5179 = vmatpush1.msra.mxu0 %v5144
        %5180 = vmatprep.subr.mxu0 0.0
        %5181 = vmatpush2.msra.mxu0 0.0
        %5182 = vmatprep.subr.mxu0 0.0
        %5183 = vmatpush2.msra.mxu0 0.0
        %5184 = vmatprep.subr.mxu0 0.0
        %5185 = vmatpush2.msra.mxu0 0.0
        %5186 = vmatprep.subr.mxu0 0.0
        %5187 = vmatpush2.msra.mxu0 0.0
        %5188 = vmatprep.subr.mxu0 0.0
        %5189 = vmatpush2.msra.mxu0 0.0
        %5190 = vmatprep.subr.mxu0 0.0
        %5191 = vmatpush2.msra.mxu0 0.0
        %5192 = vmatprep.subr.mxu0 0.0
        %5193 = vmatpush2.msra.mxu0 0.0
        %5194 = vmatprep.subr.mxu0 0.0
        %5195 = vmatpush2.msra.mxu0 0.0
        %5196 = vmatprep.subr.mxu0 0.0
        %5197 = vmatpush2.msra.mxu0 0.0
        %5198 = vmatprep.subr.mxu0 0.0
        %5199 = vmatpush2.msra.mxu0 0.0
        %5200 = vmatprep.subr.mxu0 0.0
        %5201 = vmatpush2.msra.mxu0 0.0
        %5202 = vmatprep.subr.mxu0 0.0
        %5203 = vmatpush2.msra.mxu0 0.0
        %5204 = vmatprep.subr.mxu0 0.0
        %5205 = vmatpush2.msra.mxu0 0.0
        %5206 = vmatprep.subr.mxu0 0.0
        %5207 = vmatpush2.msra.mxu0 0.0
        %5208 = vmatprep.subr.mxu0 0.0
        %5209 = vmatpush2.msra.mxu0 0.0
        %5210 = vmatprep.subr.mxu0 0.0
        %5211 = vmatpush2.msra.mxu0 0.0
        %5212 = vmatprep.mubr.f32.mxu0 0.0
        %5213 = vmatmul.mubr.f32.gmra.mxu0 %v5050
        %v5214 = vpop.f32.mrf.mxu0
        %v5215 = vadd.f32 0.0, %v5214
        %v5216 = vpop.f32.mrf.mxu0
        %5217 = vmatprep.mubr.f32.mxu0 0.0
        %5218 = vmatmul.mubr.f32.gmra.mxu0 %v5053
        %v5219 = vpop.f32.mrf.mxu0
        %v5220 = vadd.f32 0.0, %v5219
        %v5221 = vpop.f32.mrf.mxu0
        %5222 = vdwg.mxu0
        %v5223 = vmul.f32 %v5142, %v5215
        %v5224 = vmul.f32 %v5143, %v5220
        %v5225 = vld [vmem:[%s737] sm:$0xff]
        %v5226 = vld [vmem:[%s737 + $0x8] sm:$0xff]
        %v5227 = vld [vmem:[%s737 + $0x10] sm:$0xff]
        %v5228 = vld [vmem:[%s737 + $0x18] sm:$0xff]
        %v5229 = vld [vmem:[%s737 + $0x20] sm:$0xff]
        %v5230 = vld [vmem:[%s737 + $0x28] sm:$0xff]
        %v5231 = vld [vmem:[%s737 + $0x30] sm:$0xff]
        %v5232 = vld [vmem:[%s737 + $0x38] sm:$0xff]
        %vm5233 = vcmask 523264
        %v5235 = vsel %vm5233, %v5223, 0
        %v5238 = vsel %vm5233, %v5224, 0
        %5240 = vmatprep.subr.mxu0 0.0
        %5241 = vmatpush1.msra.mxu0 0.0
        %5242 = vmatprep.subr.mxu0 0.0
        %5243 = vmatpush1.msra.mxu0 0.0
        %5244 = vmatprep.subr.mxu0 0.0
        %5245 = vmatpush1.msra.mxu0 0.0
        %5246 = vmatprep.subr.mxu0 0.0
        %5247 = vmatpush1.msra.mxu0 0.0
        %5248 = vmatprep.subr.mxu0 0.0
        %5249 = vmatpush1.msra.mxu0 0.0
        %5250 = vmatprep.subr.mxu0 0.0
        %5251 = vmatpush1.msra.mxu0 0.0
        %5252 = vmatprep.subr.mxu0 0.0
        %5253 = vmatpush1.msra.mxu0 0.0
        %5254 = vmatprep.subr.mxu0 0.0
        %5255 = vmatpush1.msra.mxu0 0.0
        %5256 = vmatprep.subr.mxu0 0.0
        %5257 = vmatpush1.msra.mxu0 %v5232
        %5258 = vmatprep.subr.mxu0 0.0
        %5259 = vmatpush1.msra.mxu0 %v5231
        %5260 = vmatprep.subr.mxu0 0.0
        %5261 = vmatpush1.msra.mxu0 %v5230
        %5262 = vmatprep.subr.mxu0 0.0
        %5263 = vmatpush1.msra.mxu0 %v5229
        %5264 = vmatprep.subr.mxu0 0.0
        %5265 = vmatpush1.msra.mxu0 %v5228
        %5266 = vmatprep.subr.mxu0 0.0
        %5267 = vmatpush1.msra.mxu0 %v5227
        %5268 = vmatprep.subr.mxu0 0.0
        %5269 = vmatpush1.msra.mxu0 %v5226
        %5270 = vmatprep.subr.mxu0 0.0
        %5271 = vmatpush1.msra.mxu0 %v5225
        %5272 = vmatprep.subr.mxu0 0.0
        %5273 = vmatpush2.msra.mxu0 0.0
        %5274 = vmatprep.subr.mxu0 0.0
        %5275 = vmatpush2.msra.mxu0 0.0
        %5276 = vmatprep.subr.mxu0 0.0
        %5277 = vmatpush2.msra.mxu0 0.0
        %5278 = vmatprep.subr.mxu0 0.0
        %5279 = vmatpush2.msra.mxu0 0.0
        %5280 = vmatprep.subr.mxu0 0.0
        %5281 = vmatpush2.msra.mxu0 0.0
        %5282 = vmatprep.subr.mxu0 0.0
        %5283 = vmatpush2.msra.mxu0 0.0
        %5284 = vmatprep.subr.mxu0 0.0
        %5285 = vmatpush2.msra.mxu0 0.0
        %5286 = vmatprep.subr.mxu0 0.0
        %5287 = vmatpush2.msra.mxu0 0.0
        %5288 = vmatprep.subr.mxu0 0.0
        %5289 = vmatpush2.msra.mxu0 0.0
        %5290 = vmatprep.subr.mxu0 0.0
        %5291 = vmatpush2.msra.mxu0 0.0
        %5292 = vmatprep.subr.mxu0 0.0
        %5293 = vmatpush2.msra.mxu0 0.0
        %5294 = vmatprep.subr.mxu0 0.0
        %5295 = vmatpush2.msra.mxu0 0.0
        %5296 = vmatprep.subr.mxu0 0.0
        %5297 = vmatpush2.msra.mxu0 0.0
        %5298 = vmatprep.subr.mxu0 0.0
        %5299 = vmatpush2.msra.mxu0 0.0
        %5300 = vmatprep.subr.mxu0 0.0
        %5301 = vmatpush2.msra.mxu0 0.0
        %5302 = vmatprep.subr.mxu0 0.0
        %5303 = vmatpush2.msra.mxu0 0.0
        %5304 = vmatprep.mubr.f32.mxu0 0.0
        %5305 = vmatmul.mubr.f32.gmra.mxu0 %v5235
        %v5306 = vpop.f32.mrf.mxu0
        %v5307 = vadd.f32 0.0, %v5306
        %v5308 = vpop.f32.mrf.mxu0
        %5309 = vmatprep.mubr.f32.mxu0 0.0
        %5310 = vmatmul.mubr.f32.gmra.mxu0 %v5238
        %v5311 = vpop.f32.mrf.mxu0
        %v5312 = vadd.f32 0.0, %v5311
        %v5313 = vpop.f32.mrf.mxu0
        %5314 = vdwg.mxu0
        %v5315 = vadd.f32 %v5018, %v5307
        %v5316 = vadd.f32 %v5019, %v5312
        %5317 = vst.msk [vmem:[#allocation2] sm:$0xff] %vm889, %v5315
        %5318 = vst.msk [vmem:[#allocation2 + $0x8] sm:$0xff] %vm889, %v5316
        %p5319 = scmp.eq.s32.totalorder %s35, 1
        // Predicated region
        $region97: #{tpu_custom_call.1} parent=91 // pred_check
          %p5320 = pneg %p5319
        $region98: #{tpu_custom_call.1} parent=91 // pred_check_branch
          %5322 = sbr.rel (%p5320) target = $region100
        $region99: #{tpu_custom_call.1} parent=91 // pred_region
          %v5323 = vld [vmem:[%s12] sm:$0x1]
          %v5324 = vmul.f32 %v5315, %v5315
          %v5325 = vmul.f32 %v5316, %v5316
          %v5326 = vsel %vm889, %v5324, 0.0
          %5327 = vadd.xlane.f32.xlu0 %v5326
          %v5328 = vpop.xlane.xlu0 %5327
          %v5329 = vsel %vm889, %v5325, 0.0
          %5330 = vadd.xlane.f32.xlu0 %v5329
          %v5331 = vpop.xlane.xlu0 %5330
          %v5332 = vmul.f32 %v5328, %v896
          %v5333 = vmul.f32 %v5331, %v896
          %v5334 = vadd.f32 %v5332, 1e-06
          %v5335 = vadd.f32 %v5333, 1e-06
          %v5336 = vrsqrt.pop %v5334
          %v5337 = vrsqrt.pop %v5335
          %v5338 = vmul.f32 %v5315, %v5336
          %v5339 = vmul.f32 %v5316, %v5337
          %v5341 = vlaneseq
          %v5342 = vshrl.u32 %v5341, 7
          %v5343 = vsub.s32 0, %v5342
          %v5344 = vrot.slane %v5323, %v5343
          %v5346 = vmul.f32 %v5338, %v5344
          %v5347 = vmul.f32 %v5339, %v5344
          %v5348 = vld [vmem:[%s15] sm:$0x1]
          %v5350 = vlaneseq
          %v5351 = vshrl.u32 %v5350, 7
          %v5352 = vsub.s32 0, %v5351
          %v5353 = vrot.slane %v5348, %v5352
          %v5355 = vmul.f32 %v5346, %v5353
          %v5356 = vmul.f32 %v5347, %v5353
          %v5357 = vsel %vm889, %v5355, 0.0
          %5358 = vadd.xlane.f32.xlu0 %v5357
          %v5359 = vpop.xlane.xlu0 %5358
          %v5360 = vsel %vm889, %v5356, 0.0
          %5361 = vadd.xlane.f32.xlu0 %v5360
          %v5362 = vpop.xlane.xlu0 %5361
          %v5365 = vlaneseq
          %v5366 = vand.u32 %v5365, 127
          %v5367 = vlaneseq
          %v5368 = vshrl.u32 %v5367, 7
          %v5369 = vsub.s32 %v5366, %v5368
          %v5370 = vrot.slane %v5359, %v5369
          %v5371 = vlaneseq
          %v5372 = vshrl.u32 %v5371, 7
          %v5373 = vsub.s32 %v5366, %v5372
          %v5374 = vrot.slane %v5362, %v5373
          %vm5375 = vcmask 1041409
          %v5376 = vsel %vm5375, %v5374, %v5370
          %vm5378 = vcmask 58368
          %v5379 = vsel %vm5378, %v5376, -inf
          %5380 = vmax.xlane.f32.xlu0 %v5379
          %v5381 = vpop.xlane.xlu0 %5380
          %v5383 = vlaneseq
          %v5384 = vshrl.u32 %v5383, 7
          %v5385 = vsub.s32 0, %v5384
          %v5386 = vrot.slane %v5381, %v5385
          %v5387 = vlaneseq
          %v5388 = vshrl.u32 %v5387, 7
          %v5389 = vsub.s32 1, %v5388
          %v5390 = vrot.slane %v5381, %v5389
          %v5393 = vsub.f32 %v5359, %v5386
          %v5394 = vsub.f32 %v5362, %v5390
          %v5395 = vmul.f32 %v5393, 1.442695
          %v5396 = vpow.pop %v5395
          %v5397 = vmul.f32 %v5394, 1.442695
          %v5398 = vpow.pop %v5397
          %5401 = vset.pattern.permute.xlu0 0
          %5402 = vperm.xlu0 %5401, %v5396
          %v5403 = vpop.permute.xlu0 %5402
          %5404 = vset.pattern.permute.xlu0 0
          %5405 = vperm.xlu0 %5404, %v5398
          %v5406 = vpop.permute.xlu0 %5405
          %v5407 = vlaneseq
          %v5408 = vshrl.u32 %v5407, 7
          %v5409 = vsub.s32 %v5366, %v5408
          %v5410 = vrot.slane %v5403, %v5409
          %v5411 = vlaneseq
          %v5412 = vshrl.u32 %v5411, 7
          %v5413 = vsub.s32 %v5366, %v5412
          %v5414 = vrot.slane %v5406, %v5413
          %v5415 = vsel %vm5375, %v5414, %v5410
          %v5417 = vsel %vm5378, %v5415, 0.0
          %5418 = vadd.xlane.f32.xlu0 %v5417
          %v5419 = vpop.xlane.xlu0 %5418
          %v5420 = vrcp.pop %v5419
          %v5422 = vlaneseq
          %v5423 = vshrl.u32 %v5422, 7
          %v5424 = vsub.s32 0, %v5423
          %v5425 = vrot.slane %v5420, %v5424
          %v5426 = vlaneseq
          %v5427 = vshrl.u32 %v5426, 7
          %v5428 = vsub.s32 1, %v5427
          %v5429 = vrot.slane %v5420, %v5428
          %v5432 = vmul.f32 %v5396, %v5425
          %v5433 = vmul.f32 %v5398, %v5429
          %5435 = vset.pattern.permute.xlu0 0
          %5436 = vperm.xlu0 %5435, %v5432
          %v5437 = vpop.permute.xlu0 %5436
          %5440 = vset.pattern.permute.xlu0 0
          %5441 = vperm.xlu0 %5440, %v5433
          %v5442 = vpop.permute.xlu0 %5441
          %v5444 = vmul.f32 %v5346, %v5437
          %v5445 = vmul.f32 %v5347, %v5442
          %v5446 = vsel %vm889, %v5444, 0.0
          %v5447 = vrot.slane %v5446, 4
          %v5448 = vadd.f32 %v5446, %v5447
          %v5449 = vrot.slane %v5448, 2
          %v5450 = vadd.f32 %v5448, %v5449
          %v5451 = vrot.slane %v5450, 1
          %v5452 = vadd.f32 %v5450, %v5451
          %v5453 = vsel %vm889, %v5445, 0.0
          %v5454 = vrot.slane %v5453, 4
          %v5455 = vadd.f32 %v5453, %v5454
          %v5456 = vrot.slane %v5455, 2
          %v5457 = vadd.f32 %v5455, %v5456
          %v5458 = vrot.slane %v5457, 1
          %v5459 = vadd.f32 %v5457, %v5458
          %v5460 = vld [vmem:[%s16] sm:$0xff]
          %v5461 = vld [vmem:[%s16 + $0x8] sm:$0xff]
          %v5462 = vld [vmem:[%s16 + $0x10] sm:$0xff]
          %v5463 = vld [vmem:[%s16 + $0x18] sm:$0xff]
          %v5464 = vld [vmem:[%s17] sm:$0x1]
          %v5466 = vlaneseq
          %v5467 = vshrl.u32 %v5466, 7
          %v5468 = vsub.s32 0, %v5467
          %v5469 = vrot.slane %v5464, %v5468
          %v5473 = vsel %vm5375, %v5459, %v5452
          %v5474 = vsel %vm889, %v5473, 0
          %5476 = vmatprep.subr.mxu0 0.0
          %5477 = vmatpush1.msra.mxu0 0.0
          %5478 = vmatprep.subr.mxu0 0.0
          %5479 = vmatpush1.msra.mxu0 0.0
          %5480 = vmatprep.subr.mxu0 0.0
          %5481 = vmatpush1.msra.mxu0 0.0
          %5482 = vmatprep.subr.mxu0 0.0
          %5483 = vmatpush1.msra.mxu0 0.0
          %5484 = vmatprep.subr.mxu0 0.0
          %5485 = vmatpush1.msra.mxu0 0.0
          %5486 = vmatprep.subr.mxu0 0.0
          %5487 = vmatpush1.msra.mxu0 0.0
          %5488 = vmatprep.subr.mxu0 0.0
          %5489 = vmatpush1.msra.mxu0 0.0
          %5490 = vmatprep.subr.mxu0 0.0
          %5491 = vmatpush1.msra.mxu0 0.0
          %5492 = vmatprep.subr.mxu0 0.0
          %5493 = vmatpush1.msra.mxu0 0.0
          %5494 = vmatprep.subr.mxu0 0.0
          %5495 = vmatpush1.msra.mxu0 0.0
          %5496 = vmatprep.subr.mxu0 0.0
          %5497 = vmatpush1.msra.mxu0 0.0
          %5498 = vmatprep.subr.mxu0 0.0
          %5499 = vmatpush1.msra.mxu0 0.0
          %5500 = vmatprep.subr.mxu0 0.0
          %5501 = vmatpush1.msra.mxu0 %v5463
          %5502 = vmatprep.subr.mxu0 0.0
          %5503 = vmatpush1.msra.mxu0 %v5462
          %5504 = vmatprep.subr.mxu0 0.0
          %5505 = vmatpush1.msra.mxu0 %v5461
          %5506 = vmatprep.subr.mxu0 0.0
          %5507 = vmatpush1.msra.mxu0 %v5460
          %5508 = vmatprep.subr.mxu0 0.0
          %5509 = vmatpush2.msra.mxu0 0.0
          %5510 = vmatprep.subr.mxu0 0.0
          %5511 = vmatpush2.msra.mxu0 0.0
          %5512 = vmatprep.subr.mxu0 0.0
          %5513 = vmatpush2.msra.mxu0 0.0
          %5514 = vmatprep.subr.mxu0 0.0
          %5515 = vmatpush2.msra.mxu0 0.0
          %5516 = vmatprep.subr.mxu0 0.0
          %5517 = vmatpush2.msra.mxu0 0.0
          %5518 = vmatprep.subr.mxu0 0.0
          %5519 = vmatpush2.msra.mxu0 0.0
          %5520 = vmatprep.subr.mxu0 0.0
          %5521 = vmatpush2.msra.mxu0 0.0
          %5522 = vmatprep.subr.mxu0 0.0
          %5523 = vmatpush2.msra.mxu0 0.0
          %5524 = vmatprep.subr.mxu0 0.0
          %5525 = vmatpush2.msra.mxu0 0.0
          %5526 = vmatprep.subr.mxu0 0.0
          %5527 = vmatpush2.msra.mxu0 0.0
          %5528 = vmatprep.subr.mxu0 0.0
          %5529 = vmatpush2.msra.mxu0 0.0
          %5530 = vmatprep.subr.mxu0 0.0
          %5531 = vmatpush2.msra.mxu0 0.0
          %5532 = vmatprep.subr.mxu0 0.0
          %5533 = vmatpush2.msra.mxu0 0.0
          %5534 = vmatprep.subr.mxu0 0.0
          %5535 = vmatpush2.msra.mxu0 0.0
          %5536 = vmatprep.subr.mxu0 0.0
          %5537 = vmatpush2.msra.mxu0 0.0
          %5538 = vmatprep.subr.mxu0 0.0
          %5539 = vmatpush2.msra.mxu0 0.0
          %5540 = vmatprep.mubr.f32.mxu0 0.0
          %5541 = vmatmul.mubr.f32.gmra.mxu0 %v5474
          %v5542 = vpop.f32.mrf.mxu0
          %v5543 = vadd.f32 %v5469, %v5542
          %v5544 = vpop.f32.mrf.mxu0
          %5545 = vdwg.mxu0
          %vm5546 = vcmask 9216
          %5547 = vst.msk [vmem:[#allocation3] sm:$0x3] %vm5546, %v5543
        $region100: #{tpu_custom_call.1} parent=91 // pred_fallthru
          _
        // Predicated region
        $region101: #{tpu_custom_call.1} parent=91 // pred_check
          %p5548 = pneg %p488
        $region102: #{tpu_custom_call.1} parent=91 // pred_check_branch
          %5550 = sbr.rel (%p5548) target = $region104
        $region103: #{tpu_custom_call.1} parent=91 // pred_region
          %s5552 = ssub.s32 32, 32
          %5553 = vsyncadd [#allocation4], %s5552
          %s5554 = smul.addr %s34, 32
          %s5555 = scalar_lea.hbm %s18, %s5554
          %s5557 = sshll.u32 [#allocation3], 4
          %s5558 = int_to_ptr.vmem [resolvable:$true] %s5557
          %5560 = dma.vmem_to_hbm [thread:$0]  %s5558, 32, %s5555, [#allocation4]
        $region104: #{tpu_custom_call.1} parent=91 // pred_fallthru
          _
        // Predicated region
        $region105: #{tpu_custom_call.1} parent=91 // pred_check
          %p5561 = pneg %p488
        $region106: #{tpu_custom_call.1} parent=91 // pred_check_branch
          %5563 = sbr.rel (%p5561) target = $region108
        $region107: #{tpu_custom_call.1} parent=91 // pred_region
          %5564 = dma.done [#allocation4], 32
        $region108: #{tpu_custom_call.1} parent=91 // pred_fallthru
          _
      $region92: #{tpu_custom_call.1} parent=5 // pred_fallthru
        _
      %p5565 = scmp.le.s32.totalorder 2, %s25
      // Predicated region
      $region109: #{tpu_custom_call.1} parent=5 // pred_check
        %p5566 = pneg %p5565
      $region110: #{tpu_custom_call.1} parent=5 // pred_check_branch
        %5568 = sbr.rel (%p5566) target = $region112
      $region111: #{tpu_custom_call.1} parent=5 // pred_region
        %s5569 = ssub.s32 %s25, 2
      $region112: #{tpu_custom_call.1} parent=5 // pred_fallthru
        _
    $region6: #{tpu_custom_call.1} parent=1 // loop_footer
      %s29 = sadd.s32 1, %s25
    $region7: #{tpu_custom_call.1} parent=1 // loop_footer_branch
      %24 = sbr.rel target = $region3
    $region8: #{tpu_custom_call.1} parent=1 // loop_exit
      _
    %5570 = vsyncpa [#allocation4], 1
    %s5571 = scalar_lea.sflag [#allocation4], 1
    %5572 = vsyncpa %s5571, 1

</llo_original>
